<compile_context>
chip_gen: v5e
topology: v5e:2x2
jax: 0.10.0
libtpu: 0.0.40
codegen_flags: <defaults>
</compile_context>

<pallas_src>
import functools
import math

import jax
import jax.numpy as jnp
from jax.experimental import pallas as pl
from jax.experimental.pallas import tpu as pltpu

ADAPTER_DIM = 32     # reference Adapter.down_dim
ADAPTER_PAD = 128    # zero-padded to a full 128-lane tile (exactly equivalent math)

_STACKED_KEYS = (
    "wq", "bq", "wk", "bk", "wv", "bv", "wp", "bp",
    "a1w", "a1b", "a2w", "a2b", "ln1g", "ln1b",
    "wi", "bi", "wo", "bo",
    "c1w", "c1b", "c2w", "c2b", "ln2g", "ln2b",
)


# ----------------------------- in-kernel helpers -----------------------------

def _gelu(x):
    # exact gelu (erf based), matches torch.nn.functional.gelu default
    return 0.5 * x * (1.0 + jax.lax.erf(x * 0.7071067811865476))


def _layernorm(x, g, b, eps=1e-12):
    mean = jnp.mean(x, axis=-1, keepdims=True)
    var = jnp.mean((x - mean) ** 2, axis=-1, keepdims=True)
    return (x - mean) * jax.lax.rsqrt(var + eps) * g + b


def _softmax(att):
    m = jnp.max(att, axis=-1, keepdims=True)
    e = jnp.exp(att - m)
    denom = jnp.sum(e, axis=-1, keepdims=True)
    return e * pl.reciprocal(denom, approx=True)   # divide on the EUP slot


def _adapter(x, w1, b1, w2, b2):
    # x: (rows, C) f32; w1/w2 bf16 (padded to ADAPTER_PAD); biases f32
    h = _gelu(jnp.dot(x.astype(jnp.bfloat16), w1,
                      preferred_element_type=jnp.float32) + b1)
    return jnp.dot(h.astype(jnp.bfloat16), w2,
                   preferred_element_type=jnp.float32) + b2 + x


# ----------------------------- fused encoder kernel --------------------------

def _encoder_kernel(n_head,
                    emb_ref, mask_ref, eg_ref, eb_ref,
                    wq_ref, bq_ref, wk_ref, bk_ref, wv_ref, bv_ref,
                    wp_ref, bp_ref,
                    a1w_ref, a1b_ref, a2w_ref, a2b_ref, ln1g_ref, ln1b_ref,
                    wi_ref, bi_ref, wo_ref, bo_ref,
                    c1w_ref, c1b_ref, c2w_ref, c2b_ref, ln2g_ref, ln2b_ref,
                    o_ref, x_state):
    nb, seq, C = emb_ref.shape
    rows = nb * seq
    hd = C // n_head
    scale = 1.0 / math.sqrt(hd)
    layer = pl.program_id(1)

    # Layer 0: fused embedding layernorm (emb = tok + seg + pos, summed outside).
    @pl.when(layer == 0)
    def _():
        emb = emb_ref[...].reshape(rows, C)
        x_state[...] = _layernorm(emb, eg_ref[...], eb_ref[...])

    x = x_state[...]                           # (rows, C) f32, resident across layers
    xb = x.astype(jnp.bfloat16)

    # --- self attention -------------------------------------------------------
    q = jnp.dot(xb, wq_ref[0], preferred_element_type=jnp.float32) + bq_ref[0]
    k = jnp.dot(xb, wk_ref[0], preferred_element_type=jnp.float32) + bk_ref[0]
    v = jnp.dot(xb, wv_ref[0], preferred_element_type=jnp.float32) + bv_ref[0]

    def split_heads(a):                        # (rows, C) -> (n_head * nb, seq, hd)
        parts = [a[:, h * hd:(h + 1) * hd].reshape(nb, seq, hd)
                 for h in range(n_head)]
        return jnp.concatenate(parts, axis=0).astype(jnp.bfloat16)

    qh = split_heads(q)
    kh = split_heads(k)
    vh = split_heads(v)

    # batched scores over (head, batch): (H*nb, seq, seq) in f32
    att = jnp.einsum('bqd,bkd->bqk', qh, kh, preferred_element_type=jnp.float32)
    bias = jnp.broadcast_to(mask_ref[...][None], (n_head, nb, 1, seq))
    att = att * scale + bias.reshape(n_head * nb, 1, seq)
    att = _softmax(att)

    y = jnp.einsum('bqk,bkd->bqd', att.astype(jnp.bfloat16), vh,
                   preferred_element_type=jnp.float32)            # (H*nb, seq, hd)
    y = jnp.concatenate(
        [y[h * nb:(h + 1) * nb].reshape(rows, hd) for h in range(n_head)],
        axis=-1)                                                  # (rows, C) f32

    # output projection + adapter + residual + layernorm (SelfAttention.forward)
    y = jnp.dot(y.astype(jnp.bfloat16), wp_ref[0],
                preferred_element_type=jnp.float32) + bp_ref[0]
    y = _adapter(y, a1w_ref[0], a1b_ref[0], a2w_ref[0], a2b_ref[0])
    h1 = _layernorm(y + x, ln1g_ref[0], ln1b_ref[0])

    # --- feed forward: 4C intermediate -> gelu -> output, adapter, residual, LN
    t = _gelu(jnp.dot(h1.astype(jnp.bfloat16), wi_ref[0],
                      preferred_element_type=jnp.float32) + bi_ref[0])
    t = jnp.dot(t.astype(jnp.bfloat16), wo_ref[0],
                preferred_element_type=jnp.float32) + bo_ref[0]
    t = _adapter(t, c1w_ref[0], c1b_ref[0], c2w_ref[0], c2b_ref[0])
    x_new = _layernorm(h1 + t, ln2g_ref[0], ln2b_ref[0])

    x_state[...] = x_new                       # carry to next layer step
    o_ref[...] = x_new.reshape(nb, seq, C)     # resident output block (write-through)


# ------------------------------- host wrappers --------------------------------

def _pick_batch_block(B, T, target_rows=512):
    nb = max(1, min(B, max(1, target_rows // max(T, 1))))
    while B % nb:
        nb -= 1
    return nb


def encoder_forward(emb, mask_bias, params, cfg):
    B, T, C = emb.shape
    L = cfg["n_layer"]
    H = cfg["n_head"]
    assert C % H == 0
    nb = _pick_batch_block(B, T)
    stack = params["stack"]
    ws = [stack[k] for k in _STACKED_KEYS]

    def stacked_spec(a):
        nd = a.ndim
        return pl.BlockSpec((1,) + a.shape[1:],
                            lambda b, l: (l,) + (0,) * (nd - 1))

    in_specs = [
        pl.BlockSpec((nb, T, C), lambda b, l: (b, 0, 0)),   # embedding sum
        pl.BlockSpec((nb, 1, T), lambda b, l: (b, 0, 0)),   # additive key-mask bias
        pl.BlockSpec((1, C), lambda b, l: (0, 0)),          # emb LN gamma
        pl.BlockSpec((1, C), lambda b, l: (0, 0)),          # emb LN beta
    ] + [stacked_spec(w) for w in ws]
    out_specs = pl.BlockSpec((nb, T, C), lambda b, l: (b, 0, 0))

    # advisory cost estimate for XLA scheduling around the custom call
    P = ADAPTER_PAD
    rows_total = B * T
    flops = L * (2 * rows_total * (12 * C * C + 4 * C * P) + 4 * B * T * T * C)
    transcendentals = L * (B * H * T * T + rows_total * (4 * C + 2 * P)) + rows_total
    bytes_accessed = (sum(int(w.nbytes) for w in ws)
                      + int(emb.nbytes) + int(mask_bias.nbytes)
                      + int(params["emb_ln_g"].nbytes)
                      + int(params["emb_ln_b"].nbytes)
                      + B * T * C * 4)

    # VMEM budget: double-buffered per-layer weight blocks + activation blocks.
    per_layer_weight_bytes = sum(int(w.nbytes) // L for w in ws)
    act_bytes = 3 * nb * T * C * 4 + nb * T * 4
    vmem_limit = int(min(64 * 1024 * 1024,
                         max(32 * 1024 * 1024,
                             2 * per_layer_weight_bytes + 2 * act_bytes + (4 << 20))))

    return pl.pallas_call(
        functools.partial(_encoder_kernel, H),
        out_shape=jax.ShapeDtypeStruct((B, T, C), jnp.float32),
        grid=(B // nb, L),
        in_specs=in_specs,
        out_specs=out_specs,
        scratch_shapes=[pltpu.VMEM((nb * T, C), jnp.float32)],
        compiler_params=pltpu.CompilerParams(
            dimension_semantics=("parallel", "arbitrary"),
            vmem_limit_bytes=vmem_limit),
        cost_estimate=pl.CostEstimate(flops=int(flops),
                                      transcendentals=int(transcendentals),
                                      bytes_accessed=int(bytes_accessed)),
    )(emb, mask_bias, params["emb_ln_g"], params["emb_ln_b"], *ws)


def transformer_forward(token_ids, mask, segment_ids, params, cfg):
    B, T = token_ids.shape
    # Embedding-table gathers are plain-JAX glue; add + layernorm is fused into
    # the layer-0 step of the encoder kernel.
    tok = params["tok_emb"][token_ids]            # (B, T, C)
    seg = params["seg_emb"][segment_ids]          # (B, T, C)
    pos = params["pos_emb"][:T]                   # (T, C)
    emb = tok + seg + pos
    # additive key-mask bias: 0 where attended, -1e9 where masked
    mask_bias = ((mask.astype(jnp.float32) - 1.0) * 1e9).reshape(B, 1, T)
    return encoder_forward(emb, mask_bias, params, cfg)

# TODO(synk): `class_head` / `mlm_head` (Classifier, MLM decoder) are not part of
# Transformer.forward and Classifier is undefined in the reference; omitted.


# ------------------------------ parameter setup --------------------------------

def _linear(key, fan_in, fan_out):
    kw, kb = jax.random.split(key)
    w = jax.random.normal(kw, (fan_in, fan_out), jnp.float32) * 0.02   # (in, out)
    b = jax.random.normal(kb, (1, fan_out), jnp.float32) * 0.02
    return w, b


def init_params(key, cfg):
    C = cfg["n_embd"]
    keys = jax.random.split(key, 8 + cfg["n_layer"])
    params = {}
    tok = jax.random.normal(keys[0], (cfg["vocab_size"], C), jnp.float32) * 0.02
    params["tok_emb"] = tok.at[0].set(0.0)          # padding_idx=0
    params["seg_emb"] = jax.random.normal(
        keys[1], (cfg["type_vocab_size"], C), jnp.float32) * 0.02
    params["pos_emb"] = jax.random.normal(
        keys[2], (cfg["max_position_embeddings"], C), jnp.float32) * 0.02
    params["emb_ln_g"] = jnp.ones((1, C), jnp.float32)
    params["emb_ln_b"] = jnp.zeros((1, C), jnp.float32)

    layers = []
    for li in range(cfg["n_layer"]):
        lk = jax.random.split(keys[8 + li], 12)
        lp = {}
        lp["wq"], lp["bq"] = _linear(lk[0], C, C)
        lp["wk"], lp["bk"] = _linear(lk[1], C, C)
        lp["wv"], lp["bv"] = _linear(lk[2], C, C)
        lp["wp"], lp["bp"] = _linear(lk[3], C, C)
        lp["attn_ad_w1"], lp["attn_ad_b1"] = _linear(lk[4], C, ADAPTER_DIM)
        lp["attn_ad_w2"], lp["attn_ad_b2"] = _linear(lk[5], ADAPTER_DIM, C)
        lp["attn_ln_g"] = jnp.ones((1, C), jnp.float32)
        lp["attn_ln_b"] = jnp.zeros((1, C), jnp.float32)
        lp["wi"], lp["bi"] = _linear(lk[6], C, 4 * C)
        lp["wo"], lp["bo"] = _linear(lk[7], 4 * C, C)
        lp["blk_ad_w1"], lp["blk_ad_b1"] = _linear(lk[8], C, ADAPTER_DIM)
        lp["blk_ad_w2"], lp["blk_ad_b2"] = _linear(lk[9], ADAPTER_DIM, C)
        lp["blk_ln_g"] = jnp.ones((1, C), jnp.float32)
        lp["blk_ln_b"] = jnp.zeros((1, C), jnp.float32)
        layers.append(lp)
    params["layers"] = layers
    return params


def pack_params(raw):
    """Stack per-layer weights, zero-pad adapters to 128 lanes, cast matmul
    weights to bf16 (f32 accumulation happens in-kernel)."""
    layers = raw["layers"]
    P, d = ADAPTER_PAD, ADAPTER_DIM
    bf16 = lambda a: a.astype(jnp.bfloat16)

    def stack(k):
        return jnp.stack([lp[k] for lp in layers], axis=0)

    packed = {
        "wq": bf16(stack("wq")), "bq": stack("bq"),
        "wk": bf16(stack("wk")), "bk": stack("bk"),
        "wv": bf16(stack("wv")), "bv": stack("bv"),
        "wp": bf16(stack("wp")), "bp": stack("bp"),
        "a1w": bf16(jnp.pad(stack("attn_ad_w1"), ((0, 0), (0, 0), (0, P - d)))),
        "a1b": jnp.pad(stack("attn_ad_b1"), ((0, 0), (0, 0), (0, P - d))),
        "a2w": bf16(jnp.pad(stack("attn_ad_w2"), ((0, 0), (0, P - d), (0, 0)))),
        "a2b": stack("attn_ad_b2"),
        "ln1g": stack("attn_ln_g"), "ln1b": stack("attn_ln_b"),
        "wi": bf16(stack("wi")), "bi": stack("bi"),
        "wo": bf16(stack("wo")), "bo": stack("bo"),
        "c1w": bf16(jnp.pad(stack("blk_ad_w1"), ((0, 0), (0, 0), (0, P - d)))),
        "c1b": jnp.pad(stack("blk_ad_b1"), ((0, 0), (0, 0), (0, P - d))),
        "c2w": bf16(jnp.pad(stack("blk_ad_w2"), ((0, 0), (0, P - d), (0, 0)))),
        "c2b": stack("blk_ad_b2"),
        "ln2g": stack("blk_ln_g"), "ln2b": stack("blk_ln_b"),
    }
    return {
        "tok_emb": raw["tok_emb"], "seg_emb": raw["seg_emb"],
        "pos_emb": raw["pos_emb"],
        "emb_ln_g": raw["emb_ln_g"], "emb_ln_b": raw["emb_ln_b"],
        "stack": packed,
    }


# ----------------------------------- main --------------------------------------

if __name__ == "__main__":
    cfg = dict(
        vocab_size=100,
        type_vocab_size=2,
        max_position_embeddings=64,
        n_embd=32,
        n_head=4,
        n_layer=2,
    )
    B, T = 2, 8

    key = jax.random.PRNGKey(0)
    kp, kt, ks = jax.random.split(key, 3)
    params = pack_params(init_params(kp, cfg))

    token_ids = jax.random.randint(kt, (B, T), 1, cfg["vocab_size"], dtype=jnp.int32)
    segment_ids = jax.random.randint(ks, (B, T), 0, cfg["type_vocab_size"],
                                     dtype=jnp.int32)
    mask = jnp.ones((B, T), jnp.int32).at[0, T - 2:].set(0)   # mask last 2 keys of b=0

    out = transformer_forward(token_ids, mask, segment_ids, params, cfg)
    out = jax.block_until_ready(out)
    assert out.shape == (B, T, cfg["n_embd"])
    assert bool(jnp.all(jnp.isfinite(out)))
    print("KERNEL_OK")
</pallas_src>

<mosaic_0001>
module attributes {stable_mosaic.version = 11 : i64} {
  func.func @_encoder_kernel(%arg0: i32, %arg1: i32, %arg2: memref<2x8x32xf32, #tpu.memory_space<vmem>>, %arg3: memref<2x1x8xf32, #tpu.memory_space<vmem>>, %arg4: memref<1x32xf32, #tpu.memory_space<vmem>>, %arg5: memref<1x32xf32, #tpu.memory_space<vmem>>, %arg6: memref<1x32x32xbf16, #tpu.memory_space<vmem>>, %arg7: memref<1x1x32xf32, #tpu.memory_space<vmem>>, %arg8: memref<1x32x32xbf16, #tpu.memory_space<vmem>>, %arg9: memref<1x1x32xf32, #tpu.memory_space<vmem>>, %arg10: memref<1x32x32xbf16, #tpu.memory_space<vmem>>, %arg11: memref<1x1x32xf32, #tpu.memory_space<vmem>>, %arg12: memref<1x32x32xbf16, #tpu.memory_space<vmem>>, %arg13: memref<1x1x32xf32, #tpu.memory_space<vmem>>, %arg14: memref<1x32x128xbf16, #tpu.memory_space<vmem>>, %arg15: memref<1x1x128xf32, #tpu.memory_space<vmem>>, %arg16: memref<1x128x32xbf16, #tpu.memory_space<vmem>>, %arg17: memref<1x1x32xf32, #tpu.memory_space<vmem>>, %arg18: memref<1x1x32xf32, #tpu.memory_space<vmem>>, %arg19: memref<1x1x32xf32, #tpu.memory_space<vmem>>, %arg20: memref<1x32x128xbf16, #tpu.memory_space<vmem>>, %arg21: memref<1x1x128xf32, #tpu.memory_space<vmem>>, %arg22: memref<1x128x32xbf16, #tpu.memory_space<vmem>>, %arg23: memref<1x1x32xf32, #tpu.memory_space<vmem>>, %arg24: memref<1x32x128xbf16, #tpu.memory_space<vmem>>, %arg25: memref<1x1x128xf32, #tpu.memory_space<vmem>>, %arg26: memref<1x128x32xbf16, #tpu.memory_space<vmem>>, %arg27: memref<1x1x32xf32, #tpu.memory_space<vmem>>, %arg28: memref<1x1x32xf32, #tpu.memory_space<vmem>>, %arg29: memref<1x1x32xf32, #tpu.memory_space<vmem>>, %arg30: memref<2x8x32xf32, #tpu.memory_space<vmem>>, %arg31: memref<16x32xf32, #tpu.memory_space<vmem>>) attributes {dimension_semantics = [#tpu.dimension_semantics<parallel>, #tpu.dimension_semantics<arbitrary>], iteration_bounds = array<i64: 1, 2>, scalar_prefetch = 0 : i64, scratch_operands = 1 : i64, tpu.core_type = #tpu.core_type<tc>, window_params = [{transform_indices = @transform_0, window_bounds = array<i64: 2, 8, 32>}, {transform_indices = @transform_1, window_bounds = array<i64: 2, 1, 8>}, {pipeline_mode = #tpu.pipeline_mode<synchronous>, transform_indices = @transform_2, window_bounds = array<i64: 1, 32>}, {pipeline_mode = #tpu.pipeline_mode<synchronous>, transform_indices = @transform_3, window_bounds = array<i64: 1, 32>}, {transform_indices = @transform_4, window_bounds = array<i64: 1, 32, 32>}, {transform_indices = @transform_5, window_bounds = array<i64: 1, 1, 32>}, {transform_indices = @transform_6, window_bounds = array<i64: 1, 32, 32>}, {transform_indices = @transform_7, window_bounds = array<i64: 1, 1, 32>}, {transform_indices = @transform_8, window_bounds = array<i64: 1, 32, 32>}, {transform_indices = @transform_9, window_bounds = array<i64: 1, 1, 32>}, {transform_indices = @transform_10, window_bounds = array<i64: 1, 32, 32>}, {transform_indices = @transform_11, window_bounds = array<i64: 1, 1, 32>}, {transform_indices = @transform_12, window_bounds = array<i64: 1, 32, 128>}, {transform_indices = @transform_13, window_bounds = array<i64: 1, 1, 128>}, {transform_indices = @transform_14, window_bounds = array<i64: 1, 128, 32>}, {transform_indices = @transform_15, window_bounds = array<i64: 1, 1, 32>}, {transform_indices = @transform_16, window_bounds = array<i64: 1, 1, 32>}, {transform_indices = @transform_17, window_bounds = array<i64: 1, 1, 32>}, {transform_indices = @transform_18, window_bounds = array<i64: 1, 32, 128>}, {transform_indices = @transform_19, window_bounds = array<i64: 1, 1, 128>}, {transform_indices = @transform_20, window_bounds = array<i64: 1, 128, 32>}, {transform_indices = @transform_21, window_bounds = array<i64: 1, 1, 32>}, {transform_indices = @transform_22, window_bounds = array<i64: 1, 32, 128>}, {transform_indices = @transform_23, window_bounds = array<i64: 1, 1, 128>}, {transform_indices = @transform_24, window_bounds = array<i64: 1, 128, 32>}, {transform_indices = @transform_25, window_bounds = array<i64: 1, 1, 32>}, {transform_indices = @transform_26, window_bounds = array<i64: 1, 1, 32>}, {transform_indices = @transform_27, window_bounds = array<i64: 1, 1, 32>}, {transform_indices = @transform_28, window_bounds = array<i64: 2, 8, 32>}]} {
    %c0_i32 = arith.constant 0 : i32
    %0 = arith.cmpi eq, %arg1, %c0_i32 : i32
    %1 = arith.extui %0 : i1 to i32
    %c0_i32_0 = arith.constant 0 : i32
    %2 = arith.cmpi ne, %1, %c0_i32_0 : i32
    scf.if %2 {
      %c0_115 = arith.constant 0 : index
      %c0_116 = arith.constant 0 : index
      %c0_117 = arith.constant 0 : index
      %226 = vector.load %arg2[%c0_115, %c0_116, %c0_117] : memref<2x8x32xf32, #tpu.memory_space<vmem>>, vector<2x8x32xf32>
      %227 = vector.shape_cast %226 : vector<2x8x32xf32> to vector<16x32xf32>
      %c0_118 = arith.constant 0 : index
      %c0_119 = arith.constant 0 : index
      %228 = vector.load %arg4[%c0_118, %c0_119] : memref<1x32xf32, #tpu.memory_space<vmem>>, vector<1x32xf32>
      %c0_120 = arith.constant 0 : index
      %c0_121 = arith.constant 0 : index
      %229 = vector.load %arg5[%c0_120, %c0_121] : memref<1x32xf32, #tpu.memory_space<vmem>>, vector<1x32xf32>
      %cst_122 = arith.constant dense<0.000000e+00> : vector<16xf32>
      %230 = vector.multi_reduction <add>, %227, %cst_122 [1] : vector<16x32xf32> to vector<16xf32>
      %231 = vector.shape_cast %230 : vector<16xf32> to vector<16x1xf32>
      %cst_123 = arith.constant 3.200000e+01 : f32
      %232 = vector.broadcast %cst_123 : f32 to vector<16x1xf32>
      %233 = arith.divf %231, %232 : vector<16x1xf32>
      %234 = vector.broadcast %233 : vector<16x1xf32> to vector<16x32xf32>
      %235 = arith.subf %227, %234 : vector<16x32xf32>
      %236 = arith.mulf %235, %235 : vector<16x32xf32>
      %cst_124 = arith.constant dense<0.000000e+00> : vector<16xf32>
      %237 = vector.multi_reduction <add>, %236, %cst_124 [1] : vector<16x32xf32> to vector<16xf32>
      %238 = vector.shape_cast %237 : vector<16xf32> to vector<16x1xf32>
      %cst_125 = arith.constant 3.200000e+01 : f32
      %239 = vector.broadcast %cst_125 : f32 to vector<16x1xf32>
      %240 = arith.divf %238, %239 : vector<16x1xf32>
      %241 = vector.broadcast %233 : vector<16x1xf32> to vector<16x32xf32>
      %242 = arith.subf %227, %241 : vector<16x32xf32>
      %cst_126 = arith.constant 9.99999996E-13 : f32
      %243 = vector.broadcast %cst_126 : f32 to vector<16x1xf32>
      %244 = arith.addf %240, %243 : vector<16x1xf32>
      %245 = math.rsqrt %244 : vector<16x1xf32>
      %246 = vector.broadcast %245 : vector<16x1xf32> to vector<16x32xf32>
      %247 = arith.mulf %242, %246 : vector<16x32xf32>
      %248 = vector.broadcast %228 : vector<1x32xf32> to vector<16x32xf32>
      %249 = arith.mulf %247, %248 : vector<16x32xf32>
      %250 = vector.broadcast %229 : vector<1x32xf32> to vector<16x32xf32>
      %251 = arith.addf %249, %250 : vector<16x32xf32>
      %c0_127 = arith.constant 0 : index
      %c0_128 = arith.constant 0 : index
      %252 = vector.load %arg31[%c0_127, %c0_128] : memref<16x32xf32, #tpu.memory_space<vmem>>, vector<16x32xf32>
      tpu.vector_store %arg31[%c0_127, %c0_128], %251 {strides = array<i32>} : memref<16x32xf32, #tpu.memory_space<vmem>>, vector<16x32xf32>,
    } else {
    }
    %c0 = arith.constant 0 : index
    %c0_1 = arith.constant 0 : index
    %3 = vector.load %arg31[%c0, %c0_1] : memref<16x32xf32, #tpu.memory_space<vmem>>, vector<16x32xf32>
    %4 = arith.truncf %3 : vector<16x32xf32> to vector<16x32xbf16>
    %c0_2 = arith.constant 0 : index
    %c0_3 = arith.constant 0 : index
    %c0_4 = arith.constant 0 : index
    %5 = vector.load %arg6[%c0_2, %c0_3, %c0_4] : memref<1x32x32xbf16, #tpu.memory_space<vmem>>, vector<1x32x32xbf16>
    %6 = vector.shape_cast %5 : vector<1x32x32xbf16> to vector<32x32xbf16>
    %cst = arith.constant dense<0.000000e+00> : vector<16x32xf32>
    %7 = tpu.matmul %4, %6, %cst {dimension_numbers = #tpu.dot_dimension_numbers<[1], [0], [0], [1], [0, 0, 1, 1], [], []>} : vector<16x32xbf16>, vector<32x32xbf16>, vector<16x32xf32> -> vector<16x32xf32>
    %c0_5 = arith.constant 0 : index
    %c0_6 = arith.constant 0 : index
    %c0_7 = arith.constant 0 : index
    %8 = vector.load %arg7[%c0_5, %c0_6, %c0_7] : memref<1x1x32xf32, #tpu.memory_space<vmem>>, vector<1x1x32xf32>
    %9 = vector.shape_cast %8 : vector<1x1x32xf32> to vector<1x32xf32>
    %10 = vector.broadcast %9 : vector<1x32xf32> to vector<16x32xf32>
    %11 = arith.addf %7, %10 : vector<16x32xf32>
    %c0_8 = arith.constant 0 : index
    %c0_9 = arith.constant 0 : index
    %c0_10 = arith.constant 0 : index
    %12 = vector.load %arg8[%c0_8, %c0_9, %c0_10] : memref<1x32x32xbf16, #tpu.memory_space<vmem>>, vector<1x32x32xbf16>
    %13 = vector.shape_cast %12 : vector<1x32x32xbf16> to vector<32x32xbf16>
    %cst_11 = arith.constant dense<0.000000e+00> : vector<16x32xf32>
    %14 = tpu.matmul %4, %13, %cst_11 {dimension_numbers = #tpu.dot_dimension_numbers<[1], [0], [0], [1], [0, 0, 1, 1], [], []>} : vector<16x32xbf16>, vector<32x32xbf16>, vector<16x32xf32> -> vector<16x32xf32>
    %c0_12 = arith.constant 0 : index
    %c0_13 = arith.constant 0 : index
    %c0_14 = arith.constant 0 : index
    %15 = vector.load %arg9[%c0_12, %c0_13, %c0_14] : memref<1x1x32xf32, #tpu.memory_space<vmem>>, vector<1x1x32xf32>
    %16 = vector.shape_cast %15 : vector<1x1x32xf32> to vector<1x32xf32>
    %17 = vector.broadcast %16 : vector<1x32xf32> to vector<16x32xf32>
    %18 = arith.addf %14, %17 : vector<16x32xf32>
    %c0_15 = arith.constant 0 : index
    %c0_16 = arith.constant 0 : index
    %c0_17 = arith.constant 0 : index
    %19 = vector.load %arg10[%c0_15, %c0_16, %c0_17] : memref<1x32x32xbf16, #tpu.memory_space<vmem>>, vector<1x32x32xbf16>
    %20 = vector.shape_cast %19 : vector<1x32x32xbf16> to vector<32x32xbf16>
    %cst_18 = arith.constant dense<0.000000e+00> : vector<16x32xf32>
    %21 = tpu.matmul %4, %20, %cst_18 {dimension_numbers = #tpu.dot_dimension_numbers<[1], [0], [0], [1], [0, 0, 1, 1], [], []>} : vector<16x32xbf16>, vector<32x32xbf16>, vector<16x32xf32> -> vector<16x32xf32>
    %c0_19 = arith.constant 0 : index
    %c0_20 = arith.constant 0 : index
    %c0_21 = arith.constant 0 : index
    %22 = vector.load %arg11[%c0_19, %c0_20, %c0_21] : memref<1x1x32xf32, #tpu.memory_space<vmem>>, vector<1x1x32xf32>
    %23 = vector.shape_cast %22 : vector<1x1x32xf32> to vector<1x32xf32>
    %24 = vector.broadcast %23 : vector<1x32xf32> to vector<16x32xf32>
    %25 = arith.addf %21, %24 : vector<16x32xf32>
    %26 = vector.extract_strided_slice %11 {offsets = [0, 0], sizes = [16, 8], strides = [1, 1]} : vector<16x32xf32> to vector<16x8xf32>
    %27 = vector.shape_cast %26 : vector<16x8xf32> to vector<2x8x8xf32>
    %28 = vector.extract_strided_slice %11 {offsets = [0, 8], sizes = [16, 8], strides = [1, 1]} : vector<16x32xf32> to vector<16x8xf32>
    %29 = vector.shape_cast %28 : vector<16x8xf32> to vector<2x8x8xf32>
    %30 = vector.extract_strided_slice %11 {offsets = [0, 16], sizes = [16, 8], strides = [1, 1]} : vector<16x32xf32> to vector<16x8xf32>
    %31 = vector.shape_cast %30 : vector<16x8xf32> to vector<2x8x8xf32>
    %32 = vector.extract_strided_slice %11 {offsets = [0, 24], sizes = [16, 8], strides = [1, 1]} : vector<16x32xf32> to vector<16x8xf32>
    %33 = vector.shape_cast %32 : vector<16x8xf32> to vector<2x8x8xf32>
    %34 = tpu.concatenate %27, %29, %31, %33 in 0 : vector<2x8x8xf32>, vector<2x8x8xf32>, vector<2x8x8xf32>, vector<2x8x8xf32> -> vector<8x8x8xf32>
    %35 = arith.truncf %34 : vector<8x8x8xf32> to vector<8x8x8xbf16>
    %36 = vector.extract_strided_slice %18 {offsets = [0, 0], sizes = [16, 8], strides = [1, 1]} : vector<16x32xf32> to vector<16x8xf32>
    %37 = vector.shape_cast %36 : vector<16x8xf32> to vector<2x8x8xf32>
    %38 = vector.extract_strided_slice %18 {offsets = [0, 8], sizes = [16, 8], strides = [1, 1]} : vector<16x32xf32> to vector<16x8xf32>
    %39 = vector.shape_cast %38 : vector<16x8xf32> to vector<2x8x8xf32>
    %40 = vector.extract_strided_slice %18 {offsets = [0, 16], sizes = [16, 8], strides = [1, 1]} : vector<16x32xf32> to vector<16x8xf32>
    %41 = vector.shape_cast %40 : vector<16x8xf32> to vector<2x8x8xf32>
    %42 = vector.extract_strided_slice %18 {offsets = [0, 24], sizes = [16, 8], strides = [1, 1]} : vector<16x32xf32> to vector<16x8xf32>
    %43 = vector.shape_cast %42 : vector<16x8xf32> to vector<2x8x8xf32>
    %44 = tpu.concatenate %37, %39, %41, %43 in 0 : vector<2x8x8xf32>, vector<2x8x8xf32>, vector<2x8x8xf32>, vector<2x8x8xf32> -> vector<8x8x8xf32>
    %45 = arith.truncf %44 : vector<8x8x8xf32> to vector<8x8x8xbf16>
    %46 = vector.extract_strided_slice %25 {offsets = [0, 0], sizes = [16, 8], strides = [1, 1]} : vector<16x32xf32> to vector<16x8xf32>
    %47 = vector.shape_cast %46 : vector<16x8xf32> to vector<2x8x8xf32>
    %48 = vector.extract_strided_slice %25 {offsets = [0, 8], sizes = [16, 8], strides = [1, 1]} : vector<16x32xf32> to vector<16x8xf32>
    %49 = vector.shape_cast %48 : vector<16x8xf32> to vector<2x8x8xf32>
    %50 = vector.extract_strided_slice %25 {offsets = [0, 16], sizes = [16, 8], strides = [1, 1]} : vector<16x32xf32> to vector<16x8xf32>
    %51 = vector.shape_cast %50 : vector<16x8xf32> to vector<2x8x8xf32>
    %52 = vector.extract_strided_slice %25 {offsets = [0, 24], sizes = [16, 8], strides = [1, 1]} : vector<16x32xf32> to vector<16x8xf32>
    %53 = vector.shape_cast %52 : vector<16x8xf32> to vector<2x8x8xf32>
    %54 = tpu.concatenate %47, %49, %51, %53 in 0 : vector<2x8x8xf32>, vector<2x8x8xf32>, vector<2x8x8xf32>, vector<2x8x8xf32> -> vector<8x8x8xf32>
    %55 = arith.truncf %54 : vector<8x8x8xf32> to vector<8x8x8xbf16>
    "tpu.trace_start"() <{level = 10 : i32, message = "bqd,bkd->bqk"}> : () -> ()
    %cst_22 = arith.constant dense<0.000000e+00> : vector<8x8x8xf32>
    %56 = tpu.matmul %35, %45, %cst_22 {dimension_numbers = #tpu.dot_dimension_numbers<[2], [2], [1], [1], [0, 0, 0, 1, 1, 1], [0], [0]>} : vector<8x8x8xbf16>, vector<8x8x8xbf16>, vector<8x8x8xf32> -> vector<8x8x8xf32>
    "tpu.trace_stop"() : () -> ()
    %c0_23 = arith.constant 0 : index
    %c0_24 = arith.constant 0 : index
    %c0_25 = arith.constant 0 : index
    %57 = vector.load %arg3[%c0_23, %c0_24, %c0_25] : memref<2x1x8xf32, #tpu.memory_space<vmem>>, vector<2x1x8xf32>
    %58 = vector.shape_cast %57 : vector<2x1x8xf32> to vector<1x2x1x8xf32>
    %59 = vector.shape_cast %58 : vector<1x2x1x8xf32> to vector<1x2x1x8xf32>
    %60 = vector.broadcast %59 : vector<1x2x1x8xf32> to vector<4x2x1x8xf32>
    %cst_26 = arith.constant 0.353553385 : f32
    %61 = vector.broadcast %cst_26 : f32 to vector<8x8x8xf32>
    %62 = arith.mulf %56, %61 : vector<8x8x8xf32>
    %63 = vector.shape_cast %60 : vector<4x2x1x8xf32> to vector<8x1x8xf32>
    %64 = vector.broadcast %63 : vector<8x1x8xf32> to vector<8x8x8xf32>
    %65 = arith.addf %62, %64 : vector<8x8x8xf32>
    %cst_27 = arith.constant dense<0xFF800000> : vector<8x8xf32>
    %66 = vector.multi_reduction <maximumf>, %65, %cst_27 [2] : vector<8x8x8xf32> to vector<8x8xf32>
    %67 = vector.shape_cast %66 : vector<8x8xf32> to vector<8x8x1xf32>
    %68 = vector.broadcast %67 : vector<8x8x1xf32> to vector<8x8x8xf32>
    %69 = arith.subf %65, %68 : vector<8x8x8xf32>
    %70 = math.exp %69 : vector<8x8x8xf32>
    %cst_28 = arith.constant dense<0.000000e+00> : vector<8x8xf32>
    %71 = vector.multi_reduction <add>, %70, %cst_28 [2] : vector<8x8x8xf32> to vector<8x8xf32>
    %72 = vector.shape_cast %71 : vector<8x8xf32> to vector<8x8x1xf32>
    %73 = tpu.reciprocal %72 {approx = true} : vector<8x8x1xf32> -> vector<8x8x1xf32>
    %74 = vector.broadcast %73 : vector<8x8x1xf32> to vector<8x8x8xf32>
    %75 = arith.mulf %70, %74 : vector<8x8x8xf32>
    %76 = arith.truncf %75 : vector<8x8x8xf32> to vector<8x8x8xbf16>
    "tpu.trace_start"() <{level = 10 : i32, message = "bqk,bkd->bqd"}> : () -> ()
    %cst_29 = arith.constant dense<0.000000e+00> : vector<8x8x8xf32>
    %77 = tpu.matmul %76, %55, %cst_29 {dimension_numbers = #tpu.dot_dimension_numbers<[2], [1], [1], [2], [0, 0, 0, 1, 1, 2], [0], [0]>} : vector<8x8x8xbf16>, vector<8x8x8xbf16>, vector<8x8x8xf32> -> vector<8x8x8xf32>
    "tpu.trace_stop"() : () -> ()
    %78 = vector.extract_strided_slice %77 {offsets = [0, 0, 0], sizes = [2, 8, 8], strides = [1, 1, 1]} : vector<8x8x8xf32> to vector<2x8x8xf32>
    %79 = vector.shape_cast %78 : vector<2x8x8xf32> to vector<16x8xf32>
    %80 = vector.extract_strided_slice %77 {offsets = [2, 0, 0], sizes = [2, 8, 8], strides = [1, 1, 1]} : vector<8x8x8xf32> to vector<2x8x8xf32>
    %81 = vector.shape_cast %80 : vector<2x8x8xf32> to vector<16x8xf32>
    %82 = vector.extract_strided_slice %77 {offsets = [4, 0, 0], sizes = [2, 8, 8], strides = [1, 1, 1]} : vector<8x8x8xf32> to vector<2x8x8xf32>
    %83 = vector.shape_cast %82 : vector<2x8x8xf32> to vector<16x8xf32>
    %84 = vector.extract_strided_slice %77 {offsets = [6, 0, 0], sizes = [2, 8, 8], strides = [1, 1, 1]} : vector<8x8x8xf32> to vector<2x8x8xf32>
    %85 = vector.shape_cast %84 : vector<2x8x8xf32> to vector<16x8xf32>
    %86 = tpu.concatenate %79, %81, %83, %85 in 1 : vector<16x8xf32>, vector<16x8xf32>, vector<16x8xf32>, vector<16x8xf32> -> vector<16x32xf32>
    %87 = arith.truncf %86 : vector<16x32xf32> to vector<16x32xbf16>
    %c0_30 = arith.constant 0 : index
    %c0_31 = arith.constant 0 : index
    %c0_32 = arith.constant 0 : index
    %88 = vector.load %arg12[%c0_30, %c0_31, %c0_32] : memref<1x32x32xbf16, #tpu.memory_space<vmem>>, vector<1x32x32xbf16>
    %89 = vector.shape_cast %88 : vector<1x32x32xbf16> to vector<32x32xbf16>
    %cst_33 = arith.constant dense<0.000000e+00> : vector<16x32xf32>
    %90 = tpu.matmul %87, %89, %cst_33 {dimension_numbers = #tpu.dot_dimension_numbers<[1], [0], [0], [1], [0, 0, 1, 1], [], []>} : vector<16x32xbf16>, vector<32x32xbf16>, vector<16x32xf32> -> vector<16x32xf32>
    %c0_34 = arith.constant 0 : index
    %c0_35 = arith.constant 0 : index
    %c0_36 = arith.constant 0 : index
    %91 = vector.load %arg13[%c0_34, %c0_35, %c0_36] : memref<1x1x32xf32, #tpu.memory_space<vmem>>, vector<1x1x32xf32>
    %92 = vector.shape_cast %91 : vector<1x1x32xf32> to vector<1x32xf32>
    %93 = vector.broadcast %92 : vector<1x32xf32> to vector<16x32xf32>
    %94 = arith.addf %90, %93 : vector<16x32xf32>
    %c0_37 = arith.constant 0 : index
    %c0_38 = arith.constant 0 : index
    %c0_39 = arith.constant 0 : index
    %95 = vector.load %arg14[%c0_37, %c0_38, %c0_39] : memref<1x32x128xbf16, #tpu.memory_space<vmem>>, vector<1x32x128xbf16>
    %96 = vector.shape_cast %95 : vector<1x32x128xbf16> to vector<32x128xbf16>
    %c0_40 = arith.constant 0 : index
    %c0_41 = arith.constant 0 : index
    %c0_42 = arith.constant 0 : index
    %97 = vector.load %arg15[%c0_40, %c0_41, %c0_42] : memref<1x1x128xf32, #tpu.memory_space<vmem>>, vector<1x1x128xf32>
    %98 = vector.shape_cast %97 : vector<1x1x128xf32> to vector<1x128xf32>
    %c0_43 = arith.constant 0 : index
    %c0_44 = arith.constant 0 : index
    %c0_45 = arith.constant 0 : index
    %99 = vector.load %arg16[%c0_43, %c0_44, %c0_45] : memref<1x128x32xbf16, #tpu.memory_space<vmem>>, vector<1x128x32xbf16>
    %100 = vector.shape_cast %99 : vector<1x128x32xbf16> to vector<128x32xbf16>
    %c0_46 = arith.constant 0 : index
    %c0_47 = arith.constant 0 : index
    %c0_48 = arith.constant 0 : index
    %101 = vector.load %arg17[%c0_46, %c0_47, %c0_48] : memref<1x1x32xf32, #tpu.memory_space<vmem>>, vector<1x1x32xf32>
    %102 = vector.shape_cast %101 : vector<1x1x32xf32> to vector<1x32xf32>
    %103 = arith.truncf %94 : vector<16x32xf32> to vector<16x32xbf16>
    %cst_49 = arith.constant dense<0.000000e+00> : vector<16x128xf32>
    %104 = tpu.matmul %103, %96, %cst_49 {dimension_numbers = #tpu.dot_dimension_numbers<[1], [0], [0], [1], [0, 0, 1, 1], [], []>} : vector<16x32xbf16>, vector<32x128xbf16>, vector<16x128xf32> -> vector<16x128xf32>
    %105 = vector.broadcast %98 : vector<1x128xf32> to vector<16x128xf32>
    %106 = arith.addf %104, %105 : vector<16x128xf32>
    %cst_50 = arith.constant 5.000000e-01 : f32
    %107 = vector.broadcast %cst_50 : f32 to vector<16x128xf32>
    %108 = arith.mulf %107, %106 : vector<16x128xf32>
    %cst_51 = arith.constant 0.707106769 : f32
    %109 = vector.broadcast %cst_51 : f32 to vector<16x128xf32>
    %110 = arith.mulf %106, %109 : vector<16x128xf32>
    %111 = math.erf %110 : vector<16x128xf32>
    %cst_52 = arith.constant 1.000000e+00 : f32
    %112 = vector.broadcast %cst_52 : f32 to vector<16x128xf32>
    %113 = arith.addf %112, %111 : vector<16x128xf32>
    %114 = arith.mulf %108, %113 : vector<16x128xf32>
    %115 = arith.truncf %114 : vector<16x128xf32> to vector<16x128xbf16>
    %cst_53 = arith.constant dense<0.000000e+00> : vector<16x32xf32>
    %116 = tpu.matmul %115, %100, %cst_53 {dimension_numbers = #tpu.dot_dimension_numbers<[1], [0], [0], [1], [0, 0, 1, 1], [], []>} : vector<16x128xbf16>, vector<128x32xbf16>, vector<16x32xf32> -> vector<16x32xf32>
    %117 = vector.broadcast %102 : vector<1x32xf32> to vector<16x32xf32>
    %118 = arith.addf %116, %117 : vector<16x32xf32>
    %119 = arith.addf %118, %94 : vector<16x32xf32>
    %120 = arith.addf %119, %3 : vector<16x32xf32>
    %c0_54 = arith.constant 0 : index
    %c0_55 = arith.constant 0 : index
    %c0_56 = arith.constant 0 : index
    %121 = vector.load %arg18[%c0_54, %c0_55, %c0_56] : memref<1x1x32xf32, #tpu.memory_space<vmem>>, vector<1x1x32xf32>
    %122 = vector.shape_cast %121 : vector<1x1x32xf32> to vector<1x32xf32>
    %c0_57 = arith.constant 0 : index
    %c0_58 = arith.constant 0 : index
    %c0_59 = arith.constant 0 : index
    %123 = vector.load %arg19[%c0_57, %c0_58, %c0_59] : memref<1x1x32xf32, #tpu.memory_space<vmem>>, vector<1x1x32xf32>
    %124 = vector.shape_cast %123 : vector<1x1x32xf32> to vector<1x32xf32>
    %cst_60 = arith.constant dense<0.000000e+00> : vector<16xf32>
    %125 = vector.multi_reduction <add>, %120, %cst_60 [1] : vector<16x32xf32> to vector<16xf32>
    %126 = vector.shape_cast %125 : vector<16xf32> to vector<16x1xf32>
    %cst_61 = arith.constant 3.200000e+01 : f32
    %127 = vector.broadcast %cst_61 : f32 to vector<16x1xf32>
    %128 = arith.divf %126, %127 : vector<16x1xf32>
    %129 = vector.broadcast %128 : vector<16x1xf32> to vector<16x32xf32>
    %130 = arith.subf %120, %129 : vector<16x32xf32>
    %131 = arith.mulf %130, %130 : vector<16x32xf32>
    %cst_62 = arith.constant dense<0.000000e+00> : vector<16xf32>
    %132 = vector.multi_reduction <add>, %131, %cst_62 [1] : vector<16x32xf32> to vector<16xf32>
    %133 = vector.shape_cast %132 : vector<16xf32> to vector<16x1xf32>
    %cst_63 = arith.constant 3.200000e+01 : f32
    %134 = vector.broadcast %cst_63 : f32 to vector<16x1xf32>
    %135 = arith.divf %133, %134 : vector<16x1xf32>
    %136 = vector.broadcast %128 : vector<16x1xf32> to vector<16x32xf32>
    %137 = arith.subf %120, %136 : vector<16x32xf32>
    %cst_64 = arith.constant 9.99999996E-13 : f32
    %138 = vector.broadcast %cst_64 : f32 to vector<16x1xf32>
    %139 = arith.addf %135, %138 : vector<16x1xf32>
    %140 = math.rsqrt %139 : vector<16x1xf32>
    %141 = vector.broadcast %140 : vector<16x1xf32> to vector<16x32xf32>
    %142 = arith.mulf %137, %141 : vector<16x32xf32>
    %143 = vector.broadcast %122 : vector<1x32xf32> to vector<16x32xf32>
    %144 = arith.mulf %142, %143 : vector<16x32xf32>
    %145 = vector.broadcast %124 : vector<1x32xf32> to vector<16x32xf32>
    %146 = arith.addf %144, %145 : vector<16x32xf32>
    %147 = arith.truncf %146 : vector<16x32xf32> to vector<16x32xbf16>
    %c0_65 = arith.constant 0 : index
    %c0_66 = arith.constant 0 : index
    %c0_67 = arith.constant 0 : index
    %148 = vector.load %arg20[%c0_65, %c0_66, %c0_67] : memref<1x32x128xbf16, #tpu.memory_space<vmem>>, vector<1x32x128xbf16>
    %149 = vector.shape_cast %148 : vector<1x32x128xbf16> to vector<32x128xbf16>
    %cst_68 = arith.constant dense<0.000000e+00> : vector<16x128xf32>
    %150 = tpu.matmul %147, %149, %cst_68 {dimension_numbers = #tpu.dot_dimension_numbers<[1], [0], [0], [1], [0, 0, 1, 1], [], []>} : vector<16x32xbf16>, vector<32x128xbf16>, vector<16x128xf32> -> vector<16x128xf32>
    %c0_69 = arith.constant 0 : index
    %c0_70 = arith.constant 0 : index
    %c0_71 = arith.constant 0 : index
    %151 = vector.load %arg21[%c0_69, %c0_70, %c0_71] : memref<1x1x128xf32, #tpu.memory_space<vmem>>, vector<1x1x128xf32>
    %152 = vector.shape_cast %151 : vector<1x1x128xf32> to vector<1x128xf32>
    %153 = vector.broadcast %152 : vector<1x128xf32> to vector<16x128xf32>
    %154 = arith.addf %150, %153 : vector<16x128xf32>
    %cst_72 = arith.constant 5.000000e-01 : f32
    %155 = vector.broadcast %cst_72 : f32 to vector<16x128xf32>
    %156 = arith.mulf %155, %154 : vector<16x128xf32>
    %cst_73 = arith.constant 0.707106769 : f32
    %157 = vector.broadcast %cst_73 : f32 to vector<16x128xf32>
    %158 = arith.mulf %154, %157 : vector<16x128xf32>
    %159 = math.erf %158 : vector<16x128xf32>
    %cst_74 = arith.constant 1.000000e+00 : f32
    %160 = vector.broadcast %cst_74 : f32 to vector<16x128xf32>
    %161 = arith.addf %160, %159 : vector<16x128xf32>
    %162 = arith.mulf %156, %161 : vector<16x128xf32>
    %163 = arith.truncf %162 : vector<16x128xf32> to vector<16x128xbf16>
    %c0_75 = arith.constant 0 : index
    %c0_76 = arith.constant 0 : index
    %c0_77 = arith.constant 0 : index
    %164 = vector.load %arg22[%c0_75, %c0_76, %c0_77] : memref<1x128x32xbf16, #tpu.memory_space<vmem>>, vector<1x128x32xbf16>
    %165 = vector.shape_cast %164 : vector<1x128x32xbf16> to vector<128x32xbf16>
    %cst_78 = arith.constant dense<0.000000e+00> : vector<16x32xf32>
    %166 = tpu.matmul %163, %165, %cst_78 {dimension_numbers = #tpu.dot_dimension_numbers<[1], [0], [0], [1], [0, 0, 1, 1], [], []>} : vector<16x128xbf16>, vector<128x32xbf16>, vector<16x32xf32> -> vector<16x32xf32>
    %c0_79 = arith.constant 0 : index
    %c0_80 = arith.constant 0 : index
    %c0_81 = arith.constant 0 : index
    %167 = vector.load %arg23[%c0_79, %c0_80, %c0_81] : memref<1x1x32xf32, #tpu.memory_space<vmem>>, vector<1x1x32xf32>
    %168 = vector.shape_cast %167 : vector<1x1x32xf32> to vector<1x32xf32>
    %169 = vector.broadcast %168 : vector<1x32xf32> to vector<16x32xf32>
    %170 = arith.addf %166, %169 : vector<16x32xf32>
    %c0_82 = arith.constant 0 : index
    %c0_83 = arith.constant 0 : index
    %c0_84 = arith.constant 0 : index
    %171 = vector.load %arg24[%c0_82, %c0_83, %c0_84] : memref<1x32x128xbf16, #tpu.memory_space<vmem>>, vector<1x32x128xbf16>
    %172 = vector.shape_cast %171 : vector<1x32x128xbf16> to vector<32x128xbf16>
    %c0_85 = arith.constant 0 : index
    %c0_86 = arith.constant 0 : index
    %c0_87 = arith.constant 0 : index
    %173 = vector.load %arg25[%c0_85, %c0_86, %c0_87] : memref<1x1x128xf32, #tpu.memory_space<vmem>>, vector<1x1x128xf32>
    %174 = vector.shape_cast %173 : vector<1x1x128xf32> to vector<1x128xf32>
    %c0_88 = arith.constant 0 : index
    %c0_89 = arith.constant 0 : index
    %c0_90 = arith.constant 0 : index
    %175 = vector.load %arg26[%c0_88, %c0_89, %c0_90] : memref<1x128x32xbf16, #tpu.memory_space<vmem>>, vector<1x128x32xbf16>
    %176 = vector.shape_cast %175 : vector<1x128x32xbf16> to vector<128x32xbf16>
    %c0_91 = arith.constant 0 : index
    %c0_92 = arith.constant 0 : index
    %c0_93 = arith.constant 0 : index
    %177 = vector.load %arg27[%c0_91, %c0_92, %c0_93] : memref<1x1x32xf32, #tpu.memory_space<vmem>>, vector<1x1x32xf32>
    %178 = vector.shape_cast %177 : vector<1x1x32xf32> to vector<1x32xf32>
    %179 = arith.truncf %170 : vector<16x32xf32> to vector<16x32xbf16>
    %cst_94 = arith.constant dense<0.000000e+00> : vector<16x128xf32>
    %180 = tpu.matmul %179, %172, %cst_94 {dimension_numbers = #tpu.dot_dimension_numbers<[1], [0], [0], [1], [0, 0, 1, 1], [], []>} : vector<16x32xbf16>, vector<32x128xbf16>, vector<16x128xf32> -> vector<16x128xf32>
    %181 = vector.broadcast %174 : vector<1x128xf32> to vector<16x128xf32>
    %182 = arith.addf %180, %181 : vector<16x128xf32>
    %cst_95 = arith.constant 5.000000e-01 : f32
    %183 = vector.broadcast %cst_95 : f32 to vector<16x128xf32>
    %184 = arith.mulf %183, %182 : vector<16x128xf32>
    %cst_96 = arith.constant 0.707106769 : f32
    %185 = vector.broadcast %cst_96 : f32 to vector<16x128xf32>
    %186 = arith.mulf %182, %185 : vector<16x128xf32>
    %187 = math.erf %186 : vector<16x128xf32>
    %cst_97 = arith.constant 1.000000e+00 : f32
    %188 = vector.broadcast %cst_97 : f32 to vector<16x128xf32>
    %189 = arith.addf %188, %187 : vector<16x128xf32>
    %190 = arith.mulf %184, %189 : vector<16x128xf32>
    %191 = arith.truncf %190 : vector<16x128xf32> to vector<16x128xbf16>
    %cst_98 = arith.constant dense<0.000000e+00> : vector<16x32xf32>
    %192 = tpu.matmul %191, %176, %cst_98 {dimension_numbers = #tpu.dot_dimension_numbers<[1], [0], [0], [1], [0, 0, 1, 1], [], []>} : vector<16x128xbf16>, vector<128x32xbf16>, vector<16x32xf32> -> vector<16x32xf32>
    %193 = vector.broadcast %178 : vector<1x32xf32> to vector<16x32xf32>
    %194 = arith.addf %192, %193 : vector<16x32xf32>
    %195 = arith.addf %194, %170 : vector<16x32xf32>
    %196 = arith.addf %146, %195 : vector<16x32xf32>
    %c0_99 = arith.constant 0 : index
    %c0_100 = arith.constant 0 : index
    %c0_101 = arith.constant 0 : index
    %197 = vector.load %arg28[%c0_99, %c0_100, %c0_101] : memref<1x1x32xf32, #tpu.memory_space<vmem>>, vector<1x1x32xf32>
    %198 = vector.shape_cast %197 : vector<1x1x32xf32> to vector<1x32xf32>
    %c0_102 = arith.constant 0 : index
    %c0_103 = arith.constant 0 : index
    %c0_104 = arith.constant 0 : index
    %199 = vector.load %arg29[%c0_102, %c0_103, %c0_104] : memref<1x1x32xf32, #tpu.memory_space<vmem>>, vector<1x1x32xf32>
    %200 = vector.shape_cast %199 : vector<1x1x32xf32> to vector<1x32xf32>
    %cst_105 = arith.constant dense<0.000000e+00> : vector<16xf32>
    %201 = vector.multi_reduction <add>, %196, %cst_105 [1] : vector<16x32xf32> to vector<16xf32>
    %202 = vector.shape_cast %201 : vector<16xf32> to vector<16x1xf32>
    %cst_106 = arith.constant 3.200000e+01 : f32
    %203 = vector.broadcast %cst_106 : f32 to vector<16x1xf32>
    %204 = arith.divf %202, %203 : vector<16x1xf32>
    %205 = vector.broadcast %204 : vector<16x1xf32> to vector<16x32xf32>
    %206 = arith.subf %196, %205 : vector<16x32xf32>
    %207 = arith.mulf %206, %206 : vector<16x32xf32>
    %cst_107 = arith.constant dense<0.000000e+00> : vector<16xf32>
    %208 = vector.multi_reduction <add>, %207, %cst_107 [1] : vector<16x32xf32> to vector<16xf32>
    %209 = vector.shape_cast %208 : vector<16xf32> to vector<16x1xf32>
    %cst_108 = arith.constant 3.200000e+01 : f32
    %210 = vector.broadcast %cst_108 : f32 to vector<16x1xf32>
    %211 = arith.divf %209, %210 : vector<16x1xf32>
    %212 = vector.broadcast %204 : vector<16x1xf32> to vector<16x32xf32>
    %213 = arith.subf %196, %212 : vector<16x32xf32>
    %cst_109 = arith.constant 9.99999996E-13 : f32
    %214 = vector.broadcast %cst_109 : f32 to vector<16x1xf32>
    %215 = arith.addf %211, %214 : vector<16x1xf32>
    %216 = math.rsqrt %215 : vector<16x1xf32>
    %217 = vector.broadcast %216 : vector<16x1xf32> to vector<16x32xf32>
    %218 = arith.mulf %213, %217 : vector<16x32xf32>
    %219 = vector.broadcast %198 : vector<1x32xf32> to vector<16x32xf32>
    %220 = arith.mulf %218, %219 : vector<16x32xf32>
    %221 = vector.broadcast %200 : vector<1x32xf32> to vector<16x32xf32>
    %222 = arith.addf %220, %221 : vector<16x32xf32>
    %c0_110 = arith.constant 0 : index
    %c0_111 = arith.constant 0 : index
    %223 = vector.load %arg31[%c0_110, %c0_111] : memref<16x32xf32, #tpu.memory_space<vmem>>, vector<16x32xf32>
    tpu.vector_store %arg31[%c0_110, %c0_111], %222 {strides = array<i32>} : memref<16x32xf32, #tpu.memory_space<vmem>>, vector<16x32xf32>,
    %224 = vector.shape_cast %222 : vector<16x32xf32> to vector<2x8x32xf32>
    %c0_112 = arith.constant 0 : index
    %c0_113 = arith.constant 0 : index
    %c0_114 = arith.constant 0 : index
    %225 = vector.load %arg30[%c0_112, %c0_113, %c0_114] : memref<2x8x32xf32, #tpu.memory_space<vmem>>, vector<2x8x32xf32>
    tpu.vector_store %arg30[%c0_112, %c0_113, %c0_114], %224 {strides = array<i32>} : memref<2x8x32xf32, #tpu.memory_space<vmem>>, vector<2x8x32xf32>,
    return
  }
  func.func @transform_0(%arg0: i32, %arg1: i32) -> (i32, i32, i32) {
    %c0_i32 = arith.constant 0 : i32
    %c0_i32_0 = arith.constant 0 : i32
    %c0_i32_1 = arith.constant 0 : i32
    return %arg0, %c0_i32, %c0_i32_0 : i32, i32, i32
  }
  func.func @transform_1(%arg0: i32, %arg1: i32) -> (i32, i32, i32) {
    %c0_i32 = arith.constant 0 : i32
    %c0_i32_0 = arith.constant 0 : i32
    %c0_i32_1 = arith.constant 0 : i32
    return %arg0, %c0_i32, %c0_i32_0 : i32, i32, i32
  }
  func.func @transform_2(%arg0: i32, %arg1: i32) -> (i32, i32) {
    %c0_i32 = arith.constant 0 : i32
    %c0_i32_0 = arith.constant 0 : i32
    %c0_i32_1 = arith.constant 0 : i32
    return %c0_i32, %c0_i32_0 : i32, i32
  }
  func.func @transform_3(%arg0: i32, %arg1: i32) -> (i32, i32) {
    %c0_i32 = arith.constant 0 : i32
    %c0_i32_0 = arith.constant 0 : i32
    %c0_i32_1 = arith.constant 0 : i32
    return %c0_i32, %c0_i32_0 : i32, i32
  }
  func.func @transform_4(%arg0: i32, %arg1: i32) -> (i32, i32, i32) {
    %c0_i32 = arith.constant 0 : i32
    %c0_i32_0 = arith.constant 0 : i32
    %c0_i32_1 = arith.constant 0 : i32
    return %arg1, %c0_i32, %c0_i32_0 : i32, i32, i32
  }
  func.func @transform_5(%arg0: i32, %arg1: i32) -> (i32, i32, i32) {
    %c0_i32 = arith.constant 0 : i32
    %c0_i32_0 = arith.constant 0 : i32
    %c0_i32_1 = arith.constant 0 : i32
    return %arg1, %c0_i32, %c0_i32_0 : i32, i32, i32
  }
  func.func @transform_6(%arg0: i32, %arg1: i32) -> (i32, i32, i32) {
    %c0_i32 = arith.constant 0 : i32
    %c0_i32_0 = arith.constant 0 : i32
    %c0_i32_1 = arith.constant 0 : i32
    return %arg1, %c0_i32, %c0_i32_0 : i32, i32, i32
  }
  func.func @transform_7(%arg0: i32, %arg1: i32) -> (i32, i32, i32) {
    %c0_i32 = arith.constant 0 : i32
    %c0_i32_0 = arith.constant 0 : i32
    %c0_i32_1 = arith.constant 0 : i32
    return %arg1, %c0_i32, %c0_i32_0 : i32, i32, i32
  }
  func.func @transform_8(%arg0: i32, %arg1: i32) -> (i32, i32, i32) {
    %c0_i32 = arith.constant 0 : i32
    %c0_i32_0 = arith.constant 0 : i32
    %c0_i32_1 = arith.constant 0 : i32
    return %arg1, %c0_i32, %c0_i32_0 : i32, i32, i32
  }
  func.func @transform_9(%arg0: i32, %arg1: i32) -> (i32, i32, i32) {
    %c0_i32 = arith.constant 0 : i32
    %c0_i32_0 = arith.constant 0 : i32
    %c0_i32_1 = arith.constant 0 : i32
    return %arg1, %c0_i32, %c0_i32_0 : i32, i32, i32
  }
  func.func @transform_10(%arg0: i32, %arg1: i32) -> (i32, i32, i32) {
    %c0_i32 = arith.constant 0 : i32
    %c0_i32_0 = arith.constant 0 : i32
    %c0_i32_1 = arith.constant 0 : i32
    return %arg1, %c0_i32, %c0_i32_0 : i32, i32, i32
  }
  func.func @transform_11(%arg0: i32, %arg1: i32) -> (i32, i32, i32) {
    %c0_i32 = arith.constant 0 : i32
    %c0_i32_0 = arith.constant 0 : i32
    %c0_i32_1 = arith.constant 0 : i32
    return %arg1, %c0_i32, %c0_i32_0 : i32, i32, i32
  }
  func.func @transform_12(%arg0: i32, %arg1: i32) -> (i32, i32, i32) {
    %c0_i32 = arith.constant 0 : i32
    %c0_i32_0 = arith.constant 0 : i32
    %c0_i32_1 = arith.constant 0 : i32
    return %arg1, %c0_i32, %c0_i32_0 : i32, i32, i32
  }
  func.func @transform_13(%arg0: i32, %arg1: i32) -> (i32, i32, i32) {
    %c0_i32 = arith.constant 0 : i32
    %c0_i32_0 = arith.constant 0 : i32
    %c0_i32_1 = arith.constant 0 : i32
    return %arg1, %c0_i32, %c0_i32_0 : i32, i32, i32
  }
  func.func @transform_14(%arg0: i32, %arg1: i32) -> (i32, i32, i32) {
    %c0_i32 = arith.constant 0 : i32
    %c0_i32_0 = arith.constant 0 : i32
    %c0_i32_1 = arith.constant 0 : i32
    return %arg1, %c0_i32, %c0_i32_0 : i32, i32, i32
  }
  func.func @transform_15(%arg0: i32, %arg1: i32) -> (i32, i32, i32) {
    %c0_i32 = arith.constant 0 : i32
    %c0_i32_0 = arith.constant 0 : i32
    %c0_i32_1 = arith.constant 0 : i32
    return %arg1, %c0_i32, %c0_i32_0 : i32, i32, i32
  }
  func.func @transform_16(%arg0: i32, %arg1: i32) -> (i32, i32, i32) {
    %c0_i32 = arith.constant 0 : i32
    %c0_i32_0 = arith.constant 0 : i32
    %c0_i32_1 = arith.constant 0 : i32
    return %arg1, %c0_i32, %c0_i32_0 : i32, i32, i32
  }
  func.func @transform_17(%arg0: i32, %arg1: i32) -> (i32, i32, i32) {
    %c0_i32 = arith.constant 0 : i32
    %c0_i32_0 = arith.constant 0 : i32
    %c0_i32_1 = arith.constant 0 : i32
    return %arg1, %c0_i32, %c0_i32_0 : i32, i32, i32
  }
  func.func @transform_18(%arg0: i32, %arg1: i32) -> (i32, i32, i32) {
    %c0_i32 = arith.constant 0 : i32
    %c0_i32_0 = arith.constant 0 : i32
    %c0_i32_1 = arith.constant 0 : i32
    return %arg1, %c0_i32, %c0_i32_0 : i32, i32, i32
  }
  func.func @transform_19(%arg0: i32, %arg1: i32) -> (i32, i32, i32) {
    %c0_i32 = arith.constant 0 : i32
    %c0_i32_0 = arith.constant 0 : i32
    %c0_i32_1 = arith.constant 0 : i32
    return %arg1, %c0_i32, %c0_i32_0 : i32, i32, i32
  }
  func.func @transform_20(%arg0: i32, %arg1: i32) -> (i32, i32, i32) {
    %c0_i32 = arith.constant 0 : i32
    %c0_i32_0 = arith.constant 0 : i32
    %c0_i32_1 = arith.constant 0 : i32
    return %arg1, %c0_i32, %c0_i32_0 : i32, i32, i32
  }
  func.func @transform_21(%arg0: i32, %arg1: i32) -> (i32, i32, i32) {
    %c0_i32 = arith.constant 0 : i32
    %c0_i32_0 = arith.constant 0 : i32
    %c0_i32_1 = arith.constant 0 : i32
    return %arg1, %c0_i32, %c0_i32_0 : i32, i32, i32
  }
  func.func @transform_22(%arg0: i32, %arg1: i32) -> (i32, i32, i32) {
    %c0_i32 = arith.constant 0 : i32
    %c0_i32_0 = arith.constant 0 : i32
    %c0_i32_1 = arith.constant 0 : i32
    return %arg1, %c0_i32, %c0_i32_0 : i32, i32, i32
  }
  func.func @transform_23(%arg0: i32, %arg1: i32) -> (i32, i32, i32) {
    %c0_i32 = arith.constant 0 : i32
    %c0_i32_0 = arith.constant 0 : i32
    %c0_i32_1 = arith.constant 0 : i32
    return %arg1, %c0_i32, %c0_i32_0 : i32, i32, i32
  }
  func.func @transform_24(%arg0: i32, %arg1: i32) -> (i32, i32, i32) {
    %c0_i32 = arith.constant 0 : i32
    %c0_i32_0 = arith.constant 0 : i32
    %c0_i32_1 = arith.constant 0 : i32
    return %arg1, %c0_i32, %c0_i32_0 : i32, i32, i32
  }
  func.func @transform_25(%arg0: i32, %arg1: i32) -> (i32, i32, i32) {
    %c0_i32 = arith.constant 0 : i32
    %c0_i32_0 = arith.constant 0 : i32
    %c0_i32_1 = arith.constant 0 : i32
    return %arg1, %c0_i32, %c0_i32_0 : i32, i32, i32
  }
  func.func @transform_26(%arg0: i32, %arg1: i32) -> (i32, i32, i32) {
    %c0_i32 = arith.constant 0 : i32
    %c0_i32_0 = arith.constant 0 : i32
    %c0_i32_1 = arith.constant 0 : i32
    return %arg1, %c0_i32, %c0_i32_0 : i32, i32, i32
  }
  func.func @transform_27(%arg0: i32, %arg1: i32) -> (i32, i32, i32) {
    %c0_i32 = arith.constant 0 : i32
    %c0_i32_0 = arith.constant 0 : i32
    %c0_i32_1 = arith.constant 0 : i32
    return %arg1, %c0_i32, %c0_i32_0 : i32, i32, i32
  }
  func.func @transform_28(%arg0: i32, %arg1: i32) -> (i32, i32, i32) {
    %c0_i32 = arith.constant 0 : i32
    %c0_i32_0 = arith.constant 0 : i32
    %c0_i32_1 = arith.constant 0 : i32
    return %arg0, %c0_i32, %c0_i32_0 : i32, i32, i32
  }
}

</mosaic_0001>

<llo_original>
// kernel: tpu_custom_call.1
$region0: #{tpu_custom_call.1}
  #allocation0 [shape = 'u32[]', space=smem, size = 0x4, offset = 0x4, fixed_abs, tag = 'smem constant byte address 0x4 - core index']
  #allocation1 [shape = 'u32[72,128]{1,0:T(1,128)}', space=vmem, size = 0x9000, scoped, tag = 'internal scratch']
  #allocation2 [shape = 'f32[16,32]{1,0:T(8,128)}', space=vmem, size = 0x2000, scoped, tag = 'scratch operand']
  %s0 = inlined_call_operand.vmem [shape: f32[2,8,32], index: 0, kind: input, shape index: {}]
  %s1 = inlined_call_operand.vmem [shape: f32[2,1,8], index: 1, kind: input, shape index: {}]
  %s2 = inlined_call_operand.vmem [shape: f32[1,32], index: 2, kind: input, shape index: {}]
  %s3 = inlined_call_operand.vmem [shape: f32[1,32], index: 3, kind: input, shape index: {}]
  %s4 = inlined_call_operand.vmem [shape: bf16[2,32,32], index: 4, kind: input, shape index: {}]
  %s5 = inlined_call_operand.vmem [shape: f32[2,1,32], index: 5, kind: input, shape index: {}]
  %s6 = inlined_call_operand.vmem [shape: bf16[2,32,32], index: 6, kind: input, shape index: {}]
  %s7 = inlined_call_operand.vmem [shape: f32[2,1,32], index: 7, kind: input, shape index: {}]
  %s8 = inlined_call_operand.vmem [shape: bf16[2,32,32], index: 8, kind: input, shape index: {}]
  %s9 = inlined_call_operand.vmem [shape: f32[2,1,32], index: 9, kind: input, shape index: {}]
  %s10 = inlined_call_operand.vmem [shape: bf16[2,32,32], index: 10, kind: input, shape index: {}]
  %s11 = inlined_call_operand.vmem [shape: f32[2,1,32], index: 11, kind: input, shape index: {}]
  %s12 = inlined_call_operand.vmem [shape: bf16[2,32,128], index: 12, kind: input, shape index: {}]
  %s13 = inlined_call_operand.vmem [shape: f32[2,1,128], index: 13, kind: input, shape index: {}]
  %s14 = inlined_call_operand.vmem [shape: bf16[2,128,32], index: 14, kind: input, shape index: {}]
  %s15 = inlined_call_operand.vmem [shape: f32[2,1,32], index: 15, kind: input, shape index: {}]
  %s16 = inlined_call_operand.vmem [shape: f32[2,1,32], index: 16, kind: input, shape index: {}]
  %s17 = inlined_call_operand.vmem [shape: f32[2,1,32], index: 17, kind: input, shape index: {}]
  %s18 = inlined_call_operand.vmem [shape: bf16[2,32,128], index: 18, kind: input, shape index: {}]
  %s19 = inlined_call_operand.vmem [shape: f32[2,1,128], index: 19, kind: input, shape index: {}]
  %s20 = inlined_call_operand.vmem [shape: bf16[2,128,32], index: 20, kind: input, shape index: {}]
  %s21 = inlined_call_operand.vmem [shape: f32[2,1,32], index: 21, kind: input, shape index: {}]
  %s22 = inlined_call_operand.vmem [shape: bf16[2,32,128], index: 22, kind: input, shape index: {}]
  %s23 = inlined_call_operand.vmem [shape: f32[2,1,128], index: 23, kind: input, shape index: {}]
  %s24 = inlined_call_operand.vmem [shape: bf16[2,128,32], index: 24, kind: input, shape index: {}]
  %s25 = inlined_call_operand.vmem [shape: f32[2,1,32], index: 25, kind: input, shape index: {}]
  %s26 = inlined_call_operand.vmem [shape: f32[2,1,32], index: 26, kind: input, shape index: {}]
  %s27 = inlined_call_operand.vmem [shape: f32[2,1,32], index: 27, kind: input, shape index: {}]
  %s28 = inlined_call_operand.hbm [shape: f32[2,8,32], index: 28, kind: output, shape index: {}]
  %s29 = sld [smem:[#allocation0]]
  $region149: #{tpu_custom_call.1} parent=0
    _
  %s31 = ssub.s32 1, %s29
  %s32 = scalar_select 0, %s31, %s29
  $region1: #{tpu_custom_call.1} parent=0
    #allocation3 [shape = 'u8[8192]{0}', space=vmem, size = 0x2000, scoped, tag = 'output window, operand 0, single buffered']
    #allocation4 [shape = 's32[2]{0}', space=sflag, size = 0x8, scoped, tag = 'scoped memory for tpu_custom_call.1']
    %33 = vsyncpa [#allocation4], 0
    loop: start=0, step=1, limit=4
    $region2: #{tpu_custom_call.1} parent=1 // loop_pre_header
      _
    $region3: #{tpu_custom_call.1} parent=1 // loop_header
      %s35 = sphi 0, %s39
      %p36 = scmp.ge.s32.totalorder %s35, 4
      %s42 = sphi 0, %s54
      %s43 = sphi 0, %s50
      %s44 = sphi 0, %s42
      %s45 = sphi 0, %s43
      %s46 = sphi 0, %s44
      %s47 = sphi 0, %s45
      %s57 = sphi 0, %s59
      %s60 = sphi 0, %s57
      %s61 = sphi 0, %s60
      %s77 = sphi 0, %s61
      %s83 = sphi 0, %s85
      %s86 = sphi 0, %s83
      %s87 = sphi 0, %s86
      %s103 = sphi 0, %s87
      %s107 = sphi 0, %s107
      %s109 = sphi 0, %s107
      %s110 = sphi 0, %s109
      %s124 = sphi 0, %s110
      %s128 = sphi 0, %s128
      %s130 = sphi 0, %s128
      %s131 = sphi 0, %s130
      %s145 = sphi 0, %s131
      %s151 = sphi 0, %s153
      %s154 = sphi 0, %s151
      %s155 = sphi 0, %s154
      %s171 = sphi 0, %s155
      %s177 = sphi 0, %s179
      %s180 = sphi 0, %s177
      %s181 = sphi 0, %s180
      %s197 = sphi 0, %s181
      %s203 = sphi 0, %s205
      %s206 = sphi 0, %s203
      %s207 = sphi 0, %s206
      %s223 = sphi 0, %s207
      %s229 = sphi 0, %s231
      %s232 = sphi 0, %s229
      %s233 = sphi 0, %s232
      %s249 = sphi 0, %s233
      %s255 = sphi 0, %s257
      %s258 = sphi 0, %s255
      %s259 = sphi 0, %s258
      %s275 = sphi 0, %s259
      %s281 = sphi 0, %s283
      %s284 = sphi 0, %s281
      %s285 = sphi 0, %s284
      %s301 = sphi 0, %s285
      %s307 = sphi 0, %s309
      %s310 = sphi 0, %s307
      %s311 = sphi 0, %s310
      %s327 = sphi 0, %s311
      %s333 = sphi 0, %s335
      %s336 = sphi 0, %s333
      %s337 = sphi 0, %s336
      %s353 = sphi 0, %s337
      %s359 = sphi 0, %s361
      %s362 = sphi 0, %s359
      %s363 = sphi 0, %s362
      %s379 = sphi 0, %s363
      %s385 = sphi 0, %s387
      %s388 = sphi 0, %s385
      %s389 = sphi 0, %s388
      %s405 = sphi 0, %s389
      %s411 = sphi 0, %s413
      %s414 = sphi 0, %s411
      %s415 = sphi 0, %s414
      %s431 = sphi 0, %s415
      %s437 = sphi 0, %s439
      %s440 = sphi 0, %s437
      %s441 = sphi 0, %s440
      %s457 = sphi 0, %s441
      %s463 = sphi 0, %s465
      %s466 = sphi 0, %s463
      %s467 = sphi 0, %s466
      %s483 = sphi 0, %s467
      %s489 = sphi 0, %s491
      %s492 = sphi 0, %s489
      %s493 = sphi 0, %s492
      %s509 = sphi 0, %s493
      %s515 = sphi 0, %s517
      %s518 = sphi 0, %s515
      %s519 = sphi 0, %s518
      %s535 = sphi 0, %s519
      %s541 = sphi 0, %s543
      %s544 = sphi 0, %s541
      %s545 = sphi 0, %s544
      %s561 = sphi 0, %s545
      %s567 = sphi 0, %s569
      %s570 = sphi 0, %s567
      %s571 = sphi 0, %s570
      %s587 = sphi 0, %s571
      %s593 = sphi 0, %s595
      %s596 = sphi 0, %s593
      %s597 = sphi 0, %s596
      %s613 = sphi 0, %s597
      %s619 = sphi 0, %s621
      %s622 = sphi 0, %s619
      %s623 = sphi 0, %s622
      %s639 = sphi 0, %s623
      %s645 = sphi 0, %s647
      %s648 = sphi 0, %s645
      %s649 = sphi 0, %s648
      %s665 = sphi 0, %s649
      %s671 = sphi 0, %s673
      %s674 = sphi 0, %s671
      %s675 = sphi 0, %s674
      %s691 = sphi 0, %s675
      %s697 = sphi 0, %s699
      %s700 = sphi 0, %s697
      %s701 = sphi 0, %s700
      %s717 = sphi 0, %s701
      %s723 = sphi 0, %s725
      %s726 = sphi 0, %s723
      %s727 = sphi 0, %s726
      %s743 = sphi 0, %s727
      %s749 = sphi 0, %s751
      %s752 = sphi 0, %s749
      %s753 = sphi 0, %s752
      %s769 = sphi 0, %s753
      %s775 = sphi 0, %s777
      %s778 = sphi 0, %s775
      %s779 = sphi 0, %s778
      %s795 = sphi 0, %s779
    $region4: #{tpu_custom_call.1} parent=1 // loop_header_branch
      %38 = sbr.rel (%p36) target = $region8
    $region5: #{tpu_custom_call.1} parent=1 // loop_body
      %s40 = ssub.s32 %s35, 1
      %s41 = ssub.s32 %s35, 2
      %s48 = sadd.s32 1, %s43
      %p49 = scmp.ge.s32.totalorder %s48, 2
      %s50 = scalar_select %p49, 0, %s48
      %s51 = sadd.s32 1, %s42
      %s52 = scalar_select %p49, %s51, %s42
      %p53 = scmp.ge.s32.totalorder %s52, 1
      %s54 = scalar_select %p53, 0, %s52
      %s55 = ssub.s32 %s42, %s54
      %p56 = scmp.eq.s32.totalorder %s55, 0
      %s58 = sadd.s32 %s57, 1
      %s59 = scalar_select %p56, %s57, %s58
      %p62 = pneg %p56
      %p63 = scmp.eq.s32.totalorder %s35, 1
      %p64 = por %p62, %p63
      %p65 = scmp.ne.s32.totalorder %s57, %s60
      %p66 = scmp.eq.s32.totalorder %s35, 0
      %p67 = por %p65, %p66
      %p68 = scmp.ne.s32.totalorder %s57, %s60
      %p69 = scmp.eq.s32.totalorder %s40, 1
      %p70 = por %p68, %p69
      %p71 = scmp.ne.s32.totalorder %s60, %s61
      %p72 = scmp.eq.s32.totalorder %s40, 0
      %p73 = por %p71, %p72
      %p74 = scmp.ne.s32.totalorder %s60, %s61
      %p75 = scmp.eq.s32.totalorder %s41, 1
      %p76 = por %p74, %p75
      %p78 = scmp.ne.s32.totalorder %s61, %s77
      %p79 = scmp.eq.s32.totalorder %s41, 0
      %p80 = por %p78, %p79
      %s81 = ssub.s32 %s42, %s54
      %p82 = scmp.eq.s32.totalorder %s81, 0
      %s84 = sadd.s32 %s83, 1
      %s85 = scalar_select %p82, %s83, %s84
      %p88 = pneg %p82
      %p89 = scmp.eq.s32.totalorder %s35, 1
      %p90 = por %p88, %p89
      %p91 = scmp.ne.s32.totalorder %s83, %s86
      %p92 = scmp.eq.s32.totalorder %s35, 0
      %p93 = por %p91, %p92
      %p94 = scmp.ne.s32.totalorder %s83, %s86
      %p95 = scmp.eq.s32.totalorder %s40, 1
      %p96 = por %p94, %p95
      %p97 = scmp.ne.s32.totalorder %s86, %s87
      %p98 = scmp.eq.s32.totalorder %s40, 0
      %p99 = por %p97, %p98
      %p100 = scmp.ne.s32.totalorder %s86, %s87
      %p101 = scmp.eq.s32.totalorder %s41, 1
      %p102 = por %p100, %p101
      %p104 = scmp.ne.s32.totalorder %s87, %s103
      %p105 = scmp.eq.s32.totalorder %s41, 0
      %p106 = por %p104, %p105
      %s108 = sadd.s32 %s107, 1
      %p111 = scmp.eq.s32.totalorder %s35, 1
      %p112 = scmp.ne.s32.totalorder %s107, %s109
      %p113 = scmp.eq.s32.totalorder %s35, 0
      %p114 = por %p112, %p113
      %p115 = scmp.ne.s32.totalorder %s107, %s109
      %p116 = scmp.eq.s32.totalorder %s40, 1
      %p117 = por %p115, %p116
      %p118 = scmp.ne.s32.totalorder %s109, %s110
      %p119 = scmp.eq.s32.totalorder %s40, 0
      %p120 = por %p118, %p119
      %p121 = scmp.ne.s32.totalorder %s109, %s110
      %p122 = scmp.eq.s32.totalorder %s41, 1
      %p123 = por %p121, %p122
      %p125 = scmp.ne.s32.totalorder %s110, %s124
      %p126 = scmp.eq.s32.totalorder %s41, 0
      %p127 = por %p125, %p126
      %s129 = sadd.s32 %s128, 1
      %p132 = scmp.eq.s32.totalorder %s35, 1
      %p133 = scmp.ne.s32.totalorder %s128, %s130
      %p134 = scmp.eq.s32.totalorder %s35, 0
      %p135 = por %p133, %p134
      %p136 = scmp.ne.s32.totalorder %s128, %s130
      %p137 = scmp.eq.s32.totalorder %s40, 1
      %p138 = por %p136, %p137
      %p139 = scmp.ne.s32.totalorder %s130, %s131
      %p140 = scmp.eq.s32.totalorder %s40, 0
      %p141 = por %p139, %p140
      %p142 = scmp.ne.s32.totalorder %s130, %s131
      %p143 = scmp.eq.s32.totalorder %s41, 1
      %p144 = por %p142, %p143
      %p146 = scmp.ne.s32.totalorder %s131, %s145
      %p147 = scmp.eq.s32.totalorder %s41, 0
      %p148 = por %p146, %p147
      %s149 = ssub.s32 %s43, %s50
      %p150 = scmp.eq.s32.totalorder %s149, 0
      %s152 = sadd.s32 %s151, 1
      %s153 = scalar_select %p150, %s151, %s152
      %p156 = pneg %p150
      %p157 = scmp.eq.s32.totalorder %s35, 1
      %p158 = por %p156, %p157
      %p159 = scmp.ne.s32.totalorder %s151, %s154
      %p160 = scmp.eq.s32.totalorder %s35, 0
      %p161 = por %p159, %p160
      %p162 = scmp.ne.s32.totalorder %s151, %s154
      %p163 = scmp.eq.s32.totalorder %s40, 1
      %p164 = por %p162, %p163
      %p165 = scmp.ne.s32.totalorder %s154, %s155
      %p166 = scmp.eq.s32.totalorder %s40, 0
      %p167 = por %p165, %p166
      %p168 = scmp.ne.s32.totalorder %s154, %s155
      %p169 = scmp.eq.s32.totalorder %s41, 1
      %p170 = por %p168, %p169
      %p172 = scmp.ne.s32.totalorder %s155, %s171
      %p173 = scmp.eq.s32.totalorder %s41, 0
      %p174 = por %p172, %p173
      %s175 = ssub.s32 %s43, %s50
      %p176 = scmp.eq.s32.totalorder %s175, 0
      %s178 = sadd.s32 %s177, 1
      %s179 = scalar_select %p176, %s177, %s178
      %p182 = pneg %p176
      %p183 = scmp.eq.s32.totalorder %s35, 1
      %p184 = por %p182, %p183
      %p185 = scmp.ne.s32.totalorder %s177, %s180
      %p186 = scmp.eq.s32.totalorder %s35, 0
      %p187 = por %p185, %p186
      %p188 = scmp.ne.s32.totalorder %s177, %s180
      %p189 = scmp.eq.s32.totalorder %s40, 1
      %p190 = por %p188, %p189
      %p191 = scmp.ne.s32.totalorder %s180, %s181
      %p192 = scmp.eq.s32.totalorder %s40, 0
      %p193 = por %p191, %p192
      %p194 = scmp.ne.s32.totalorder %s180, %s181
      %p195 = scmp.eq.s32.totalorder %s41, 1
      %p196 = por %p194, %p195
      %p198 = scmp.ne.s32.totalorder %s181, %s197
      %p199 = scmp.eq.s32.totalorder %s41, 0
      %p200 = por %p198, %p199
      %s201 = ssub.s32 %s43, %s50
      %p202 = scmp.eq.s32.totalorder %s201, 0
      %s204 = sadd.s32 %s203, 1
      %s205 = scalar_select %p202, %s203, %s204
      %p208 = pneg %p202
      %p209 = scmp.eq.s32.totalorder %s35, 1
      %p210 = por %p208, %p209
      %p211 = scmp.ne.s32.totalorder %s203, %s206
      %p212 = scmp.eq.s32.totalorder %s35, 0
      %p213 = por %p211, %p212
      %p214 = scmp.ne.s32.totalorder %s203, %s206
      %p215 = scmp.eq.s32.totalorder %s40, 1
      %p216 = por %p214, %p215
      %p217 = scmp.ne.s32.totalorder %s206, %s207
      %p218 = scmp.eq.s32.totalorder %s40, 0
      %p219 = por %p217, %p218
      %p220 = scmp.ne.s32.totalorder %s206, %s207
      %p221 = scmp.eq.s32.totalorder %s41, 1
      %p222 = por %p220, %p221
      %p224 = scmp.ne.s32.totalorder %s207, %s223
      %p225 = scmp.eq.s32.totalorder %s41, 0
      %p226 = por %p224, %p225
      %s227 = ssub.s32 %s43, %s50
      %p228 = scmp.eq.s32.totalorder %s227, 0
      %s230 = sadd.s32 %s229, 1
      %s231 = scalar_select %p228, %s229, %s230
      %p234 = pneg %p228
      %p235 = scmp.eq.s32.totalorder %s35, 1
      %p236 = por %p234, %p235
      %p237 = scmp.ne.s32.totalorder %s229, %s232
      %p238 = scmp.eq.s32.totalorder %s35, 0
      %p239 = por %p237, %p238
      %p240 = scmp.ne.s32.totalorder %s229, %s232
      %p241 = scmp.eq.s32.totalorder %s40, 1
      %p242 = por %p240, %p241
      %p243 = scmp.ne.s32.totalorder %s232, %s233
      %p244 = scmp.eq.s32.totalorder %s40, 0
      %p245 = por %p243, %p244
      %p246 = scmp.ne.s32.totalorder %s232, %s233
      %p247 = scmp.eq.s32.totalorder %s41, 1
      %p248 = por %p246, %p247
      %p250 = scmp.ne.s32.totalorder %s233, %s249
      %p251 = scmp.eq.s32.totalorder %s41, 0
      %p252 = por %p250, %p251
      %s253 = ssub.s32 %s43, %s50
      %p254 = scmp.eq.s32.totalorder %s253, 0
      %s256 = sadd.s32 %s255, 1
      %s257 = scalar_select %p254, %s255, %s256
      %p260 = pneg %p254
      %p261 = scmp.eq.s32.totalorder %s35, 1
      %p262 = por %p260, %p261
      %p263 = scmp.ne.s32.totalorder %s255, %s258
      %p264 = scmp.eq.s32.totalorder %s35, 0
      %p265 = por %p263, %p264
      %p266 = scmp.ne.s32.totalorder %s255, %s258
      %p267 = scmp.eq.s32.totalorder %s40, 1
      %p268 = por %p266, %p267
      %p269 = scmp.ne.s32.totalorder %s258, %s259
      %p270 = scmp.eq.s32.totalorder %s40, 0
      %p271 = por %p269, %p270
      %p272 = scmp.ne.s32.totalorder %s258, %s259
      %p273 = scmp.eq.s32.totalorder %s41, 1
      %p274 = por %p272, %p273
      %p276 = scmp.ne.s32.totalorder %s259, %s275
      %p277 = scmp.eq.s32.totalorder %s41, 0
      %p278 = por %p276, %p277
      %s279 = ssub.s32 %s43, %s50
      %p280 = scmp.eq.s32.totalorder %s279, 0
      %s282 = sadd.s32 %s281, 1
      %s283 = scalar_select %p280, %s281, %s282
      %p286 = pneg %p280
      %p287 = scmp.eq.s32.totalorder %s35, 1
      %p288 = por %p286, %p287
      %p289 = scmp.ne.s32.totalorder %s281, %s284
      %p290 = scmp.eq.s32.totalorder %s35, 0
      %p291 = por %p289, %p290
      %p292 = scmp.ne.s32.totalorder %s281, %s284
      %p293 = scmp.eq.s32.totalorder %s40, 1
      %p294 = por %p292, %p293
      %p295 = scmp.ne.s32.totalorder %s284, %s285
      %p296 = scmp.eq.s32.totalorder %s40, 0
      %p297 = por %p295, %p296
      %p298 = scmp.ne.s32.totalorder %s284, %s285
      %p299 = scmp.eq.s32.totalorder %s41, 1
      %p300 = por %p298, %p299
      %p302 = scmp.ne.s32.totalorder %s285, %s301
      %p303 = scmp.eq.s32.totalorder %s41, 0
      %p304 = por %p302, %p303
      %s305 = ssub.s32 %s43, %s50
      %p306 = scmp.eq.s32.totalorder %s305, 0
      %s308 = sadd.s32 %s307, 1
      %s309 = scalar_select %p306, %s307, %s308
      %p312 = pneg %p306
      %p313 = scmp.eq.s32.totalorder %s35, 1
      %p314 = por %p312, %p313
      %p315 = scmp.ne.s32.totalorder %s307, %s310
      %p316 = scmp.eq.s32.totalorder %s35, 0
      %p317 = por %p315, %p316
      %p318 = scmp.ne.s32.totalorder %s307, %s310
      %p319 = scmp.eq.s32.totalorder %s40, 1
      %p320 = por %p318, %p319
      %p321 = scmp.ne.s32.totalorder %s310, %s311
      %p322 = scmp.eq.s32.totalorder %s40, 0
      %p323 = por %p321, %p322
      %p324 = scmp.ne.s32.totalorder %s310, %s311
      %p325 = scmp.eq.s32.totalorder %s41, 1
      %p326 = por %p324, %p325
      %p328 = scmp.ne.s32.totalorder %s311, %s327
      %p329 = scmp.eq.s32.totalorder %s41, 0
      %p330 = por %p328, %p329
      %s331 = ssub.s32 %s43, %s50
      %p332 = scmp.eq.s32.totalorder %s331, 0
      %s334 = sadd.s32 %s333, 1
      %s335 = scalar_select %p332, %s333, %s334
      %p338 = pneg %p332
      %p339 = scmp.eq.s32.totalorder %s35, 1
      %p340 = por %p338, %p339
      %p341 = scmp.ne.s32.totalorder %s333, %s336
      %p342 = scmp.eq.s32.totalorder %s35, 0
      %p343 = por %p341, %p342
      %p344 = scmp.ne.s32.totalorder %s333, %s336
      %p345 = scmp.eq.s32.totalorder %s40, 1
      %p346 = por %p344, %p345
      %p347 = scmp.ne.s32.totalorder %s336, %s337
      %p348 = scmp.eq.s32.totalorder %s40, 0
      %p349 = por %p347, %p348
      %p350 = scmp.ne.s32.totalorder %s336, %s337
      %p351 = scmp.eq.s32.totalorder %s41, 1
      %p352 = por %p350, %p351
      %p354 = scmp.ne.s32.totalorder %s337, %s353
      %p355 = scmp.eq.s32.totalorder %s41, 0
      %p356 = por %p354, %p355
      %s357 = ssub.s32 %s43, %s50
      %p358 = scmp.eq.s32.totalorder %s357, 0
      %s360 = sadd.s32 %s359, 1
      %s361 = scalar_select %p358, %s359, %s360
      %p364 = pneg %p358
      %p365 = scmp.eq.s32.totalorder %s35, 1
      %p366 = por %p364, %p365
      %p367 = scmp.ne.s32.totalorder %s359, %s362
      %p368 = scmp.eq.s32.totalorder %s35, 0
      %p369 = por %p367, %p368
      %p370 = scmp.ne.s32.totalorder %s359, %s362
      %p371 = scmp.eq.s32.totalorder %s40, 1
      %p372 = por %p370, %p371
      %p373 = scmp.ne.s32.totalorder %s362, %s363
      %p374 = scmp.eq.s32.totalorder %s40, 0
      %p375 = por %p373, %p374
      %p376 = scmp.ne.s32.totalorder %s362, %s363
      %p377 = scmp.eq.s32.totalorder %s41, 1
      %p378 = por %p376, %p377
      %p380 = scmp.ne.s32.totalorder %s363, %s379
      %p381 = scmp.eq.s32.totalorder %s41, 0
      %p382 = por %p380, %p381
      %s383 = ssub.s32 %s43, %s50
      %p384 = scmp.eq.s32.totalorder %s383, 0
      %s386 = sadd.s32 %s385, 1
      %s387 = scalar_select %p384, %s385, %s386
      %p390 = pneg %p384
      %p391 = scmp.eq.s32.totalorder %s35, 1
      %p392 = por %p390, %p391
      %p393 = scmp.ne.s32.totalorder %s385, %s388
      %p394 = scmp.eq.s32.totalorder %s35, 0
      %p395 = por %p393, %p394
      %p396 = scmp.ne.s32.totalorder %s385, %s388
      %p397 = scmp.eq.s32.totalorder %s40, 1
      %p398 = por %p396, %p397
      %p399 = scmp.ne.s32.totalorder %s388, %s389
      %p400 = scmp.eq.s32.totalorder %s40, 0
      %p401 = por %p399, %p400
      %p402 = scmp.ne.s32.totalorder %s388, %s389
      %p403 = scmp.eq.s32.totalorder %s41, 1
      %p404 = por %p402, %p403
      %p406 = scmp.ne.s32.totalorder %s389, %s405
      %p407 = scmp.eq.s32.totalorder %s41, 0
      %p408 = por %p406, %p407
      %s409 = ssub.s32 %s43, %s50
      %p410 = scmp.eq.s32.totalorder %s409, 0
      %s412 = sadd.s32 %s411, 1
      %s413 = scalar_select %p410, %s411, %s412
      %p416 = pneg %p410
      %p417 = scmp.eq.s32.totalorder %s35, 1
      %p418 = por %p416, %p417
      %p419 = scmp.ne.s32.totalorder %s411, %s414
      %p420 = scmp.eq.s32.totalorder %s35, 0
      %p421 = por %p419, %p420
      %p422 = scmp.ne.s32.totalorder %s411, %s414
      %p423 = scmp.eq.s32.totalorder %s40, 1
      %p424 = por %p422, %p423
      %p425 = scmp.ne.s32.totalorder %s414, %s415
      %p426 = scmp.eq.s32.totalorder %s40, 0
      %p427 = por %p425, %p426
      %p428 = scmp.ne.s32.totalorder %s414, %s415
      %p429 = scmp.eq.s32.totalorder %s41, 1
      %p430 = por %p428, %p429
      %p432 = scmp.ne.s32.totalorder %s415, %s431
      %p433 = scmp.eq.s32.totalorder %s41, 0
      %p434 = por %p432, %p433
      %s435 = ssub.s32 %s43, %s50
      %p436 = scmp.eq.s32.totalorder %s435, 0
      %s438 = sadd.s32 %s437, 1
      %s439 = scalar_select %p436, %s437, %s438
      %p442 = pneg %p436
      %p443 = scmp.eq.s32.totalorder %s35, 1
      %p444 = por %p442, %p443
      %p445 = scmp.ne.s32.totalorder %s437, %s440
      %p446 = scmp.eq.s32.totalorder %s35, 0
      %p447 = por %p445, %p446
      %p448 = scmp.ne.s32.totalorder %s437, %s440
      %p449 = scmp.eq.s32.totalorder %s40, 1
      %p450 = por %p448, %p449
      %p451 = scmp.ne.s32.totalorder %s440, %s441
      %p452 = scmp.eq.s32.totalorder %s40, 0
      %p453 = por %p451, %p452
      %p454 = scmp.ne.s32.totalorder %s440, %s441
      %p455 = scmp.eq.s32.totalorder %s41, 1
      %p456 = por %p454, %p455
      %p458 = scmp.ne.s32.totalorder %s441, %s457
      %p459 = scmp.eq.s32.totalorder %s41, 0
      %p460 = por %p458, %p459
      %s461 = ssub.s32 %s43, %s50
      %p462 = scmp.eq.s32.totalorder %s461, 0
      %s464 = sadd.s32 %s463, 1
      %s465 = scalar_select %p462, %s463, %s464
      %p468 = pneg %p462
      %p469 = scmp.eq.s32.totalorder %s35, 1
      %p470 = por %p468, %p469
      %p471 = scmp.ne.s32.totalorder %s463, %s466
      %p472 = scmp.eq.s32.totalorder %s35, 0
      %p473 = por %p471, %p472
      %p474 = scmp.ne.s32.totalorder %s463, %s466
      %p475 = scmp.eq.s32.totalorder %s40, 1
      %p476 = por %p474, %p475
      %p477 = scmp.ne.s32.totalorder %s466, %s467
      %p478 = scmp.eq.s32.totalorder %s40, 0
      %p479 = por %p477, %p478
      %p480 = scmp.ne.s32.totalorder %s466, %s467
      %p481 = scmp.eq.s32.totalorder %s41, 1
      %p482 = por %p480, %p481
      %p484 = scmp.ne.s32.totalorder %s467, %s483
      %p485 = scmp.eq.s32.totalorder %s41, 0
      %p486 = por %p484, %p485
      %s487 = ssub.s32 %s43, %s50
      %p488 = scmp.eq.s32.totalorder %s487, 0
      %s490 = sadd.s32 %s489, 1
      %s491 = scalar_select %p488, %s489, %s490
      %p494 = pneg %p488
      %p495 = scmp.eq.s32.totalorder %s35, 1
      %p496 = por %p494, %p495
      %p497 = scmp.ne.s32.totalorder %s489, %s492
      %p498 = scmp.eq.s32.totalorder %s35, 0
      %p499 = por %p497, %p498
      %p500 = scmp.ne.s32.totalorder %s489, %s492
      %p501 = scmp.eq.s32.totalorder %s40, 1
      %p502 = por %p500, %p501
      %p503 = scmp.ne.s32.totalorder %s492, %s493
      %p504 = scmp.eq.s32.totalorder %s40, 0
      %p505 = por %p503, %p504
      %p506 = scmp.ne.s32.totalorder %s492, %s493
      %p507 = scmp.eq.s32.totalorder %s41, 1
      %p508 = por %p506, %p507
      %p510 = scmp.ne.s32.totalorder %s493, %s509
      %p511 = scmp.eq.s32.totalorder %s41, 0
      %p512 = por %p510, %p511
      %s513 = ssub.s32 %s43, %s50
      %p514 = scmp.eq.s32.totalorder %s513, 0
      %s516 = sadd.s32 %s515, 1
      %s517 = scalar_select %p514, %s515, %s516
      %p520 = pneg %p514
      %p521 = scmp.eq.s32.totalorder %s35, 1
      %p522 = por %p520, %p521
      %p523 = scmp.ne.s32.totalorder %s515, %s518
      %p524 = scmp.eq.s32.totalorder %s35, 0
      %p525 = por %p523, %p524
      %p526 = scmp.ne.s32.totalorder %s515, %s518
      %p527 = scmp.eq.s32.totalorder %s40, 1
      %p528 = por %p526, %p527
      %p529 = scmp.ne.s32.totalorder %s518, %s519
      %p530 = scmp.eq.s32.totalorder %s40, 0
      %p531 = por %p529, %p530
      %p532 = scmp.ne.s32.totalorder %s518, %s519
      %p533 = scmp.eq.s32.totalorder %s41, 1
      %p534 = por %p532, %p533
      %p536 = scmp.ne.s32.totalorder %s519, %s535
      %p537 = scmp.eq.s32.totalorder %s41, 0
      %p538 = por %p536, %p537
      %s539 = ssub.s32 %s43, %s50
      %p540 = scmp.eq.s32.totalorder %s539, 0
      %s542 = sadd.s32 %s541, 1
      %s543 = scalar_select %p540, %s541, %s542
      %p546 = pneg %p540
      %p547 = scmp.eq.s32.totalorder %s35, 1
      %p548 = por %p546, %p547
      %p549 = scmp.ne.s32.totalorder %s541, %s544
      %p550 = scmp.eq.s32.totalorder %s35, 0
      %p551 = por %p549, %p550
      %p552 = scmp.ne.s32.totalorder %s541, %s544
      %p553 = scmp.eq.s32.totalorder %s40, 1
      %p554 = por %p552, %p553
      %p555 = scmp.ne.s32.totalorder %s544, %s545
      %p556 = scmp.eq.s32.totalorder %s40, 0
      %p557 = por %p555, %p556
      %p558 = scmp.ne.s32.totalorder %s544, %s545
      %p559 = scmp.eq.s32.totalorder %s41, 1
      %p560 = por %p558, %p559
      %p562 = scmp.ne.s32.totalorder %s545, %s561
      %p563 = scmp.eq.s32.totalorder %s41, 0
      %p564 = por %p562, %p563
      %s565 = ssub.s32 %s43, %s50
      %p566 = scmp.eq.s32.totalorder %s565, 0
      %s568 = sadd.s32 %s567, 1
      %s569 = scalar_select %p566, %s567, %s568
      %p572 = pneg %p566
      %p573 = scmp.eq.s32.totalorder %s35, 1
      %p574 = por %p572, %p573
      %p575 = scmp.ne.s32.totalorder %s567, %s570
      %p576 = scmp.eq.s32.totalorder %s35, 0
      %p577 = por %p575, %p576
      %p578 = scmp.ne.s32.totalorder %s567, %s570
      %p579 = scmp.eq.s32.totalorder %s40, 1
      %p580 = por %p578, %p579
      %p581 = scmp.ne.s32.totalorder %s570, %s571
      %p582 = scmp.eq.s32.totalorder %s40, 0
      %p583 = por %p581, %p582
      %p584 = scmp.ne.s32.totalorder %s570, %s571
      %p585 = scmp.eq.s32.totalorder %s41, 1
      %p586 = por %p584, %p585
      %p588 = scmp.ne.s32.totalorder %s571, %s587
      %p589 = scmp.eq.s32.totalorder %s41, 0
      %p590 = por %p588, %p589
      %s591 = ssub.s32 %s43, %s50
      %p592 = scmp.eq.s32.totalorder %s591, 0
      %s594 = sadd.s32 %s593, 1
      %s595 = scalar_select %p592, %s593, %s594
      %p598 = pneg %p592
      %p599 = scmp.eq.s32.totalorder %s35, 1
      %p600 = por %p598, %p599
      %p601 = scmp.ne.s32.totalorder %s593, %s596
      %p602 = scmp.eq.s32.totalorder %s35, 0
      %p603 = por %p601, %p602
      %p604 = scmp.ne.s32.totalorder %s593, %s596
      %p605 = scmp.eq.s32.totalorder %s40, 1
      %p606 = por %p604, %p605
      %p607 = scmp.ne.s32.totalorder %s596, %s597
      %p608 = scmp.eq.s32.totalorder %s40, 0
      %p609 = por %p607, %p608
      %p610 = scmp.ne.s32.totalorder %s596, %s597
      %p611 = scmp.eq.s32.totalorder %s41, 1
      %p612 = por %p610, %p611
      %p614 = scmp.ne.s32.totalorder %s597, %s613
      %p615 = scmp.eq.s32.totalorder %s41, 0
      %p616 = por %p614, %p615
      %s617 = ssub.s32 %s43, %s50
      %p618 = scmp.eq.s32.totalorder %s617, 0
      %s620 = sadd.s32 %s619, 1
      %s621 = scalar_select %p618, %s619, %s620
      %p624 = pneg %p618
      %p625 = scmp.eq.s32.totalorder %s35, 1
      %p626 = por %p624, %p625
      %p627 = scmp.ne.s32.totalorder %s619, %s622
      %p628 = scmp.eq.s32.totalorder %s35, 0
      %p629 = por %p627, %p628
      %p630 = scmp.ne.s32.totalorder %s619, %s622
      %p631 = scmp.eq.s32.totalorder %s40, 1
      %p632 = por %p630, %p631
      %p633 = scmp.ne.s32.totalorder %s622, %s623
      %p634 = scmp.eq.s32.totalorder %s40, 0
      %p635 = por %p633, %p634
      %p636 = scmp.ne.s32.totalorder %s622, %s623
      %p637 = scmp.eq.s32.totalorder %s41, 1
      %p638 = por %p636, %p637
      %p640 = scmp.ne.s32.totalorder %s623, %s639
      %p641 = scmp.eq.s32.totalorder %s41, 0
      %p642 = por %p640, %p641
      %s643 = ssub.s32 %s43, %s50
      %p644 = scmp.eq.s32.totalorder %s643, 0
      %s646 = sadd.s32 %s645, 1
      %s647 = scalar_select %p644, %s645, %s646
      %p650 = pneg %p644
      %p651 = scmp.eq.s32.totalorder %s35, 1
      %p652 = por %p650, %p651
      %p653 = scmp.ne.s32.totalorder %s645, %s648
      %p654 = scmp.eq.s32.totalorder %s35, 0
      %p655 = por %p653, %p654
      %p656 = scmp.ne.s32.totalorder %s645, %s648
      %p657 = scmp.eq.s32.totalorder %s40, 1
      %p658 = por %p656, %p657
      %p659 = scmp.ne.s32.totalorder %s648, %s649
      %p660 = scmp.eq.s32.totalorder %s40, 0
      %p661 = por %p659, %p660
      %p662 = scmp.ne.s32.totalorder %s648, %s649
      %p663 = scmp.eq.s32.totalorder %s41, 1
      %p664 = por %p662, %p663
      %p666 = scmp.ne.s32.totalorder %s649, %s665
      %p667 = scmp.eq.s32.totalorder %s41, 0
      %p668 = por %p666, %p667
      %s669 = ssub.s32 %s43, %s50
      %p670 = scmp.eq.s32.totalorder %s669, 0
      %s672 = sadd.s32 %s671, 1
      %s673 = scalar_select %p670, %s671, %s672
      %p676 = pneg %p670
      %p677 = scmp.eq.s32.totalorder %s35, 1
      %p678 = por %p676, %p677
      %p679 = scmp.ne.s32.totalorder %s671, %s674
      %p680 = scmp.eq.s32.totalorder %s35, 0
      %p681 = por %p679, %p680
      %p682 = scmp.ne.s32.totalorder %s671, %s674
      %p683 = scmp.eq.s32.totalorder %s40, 1
      %p684 = por %p682, %p683
      %p685 = scmp.ne.s32.totalorder %s674, %s675
      %p686 = scmp.eq.s32.totalorder %s40, 0
      %p687 = por %p685, %p686
      %p688 = scmp.ne.s32.totalorder %s674, %s675
      %p689 = scmp.eq.s32.totalorder %s41, 1
      %p690 = por %p688, %p689
      %p692 = scmp.ne.s32.totalorder %s675, %s691
      %p693 = scmp.eq.s32.totalorder %s41, 0
      %p694 = por %p692, %p693
      %s695 = ssub.s32 %s43, %s50
      %p696 = scmp.eq.s32.totalorder %s695, 0
      %s698 = sadd.s32 %s697, 1
      %s699 = scalar_select %p696, %s697, %s698
      %p702 = pneg %p696
      %p703 = scmp.eq.s32.totalorder %s35, 1
      %p704 = por %p702, %p703
      %p705 = scmp.ne.s32.totalorder %s697, %s700
      %p706 = scmp.eq.s32.totalorder %s35, 0
      %p707 = por %p705, %p706
      %p708 = scmp.ne.s32.totalorder %s697, %s700
      %p709 = scmp.eq.s32.totalorder %s40, 1
      %p710 = por %p708, %p709
      %p711 = scmp.ne.s32.totalorder %s700, %s701
      %p712 = scmp.eq.s32.totalorder %s40, 0
      %p713 = por %p711, %p712
      %p714 = scmp.ne.s32.totalorder %s700, %s701
      %p715 = scmp.eq.s32.totalorder %s41, 1
      %p716 = por %p714, %p715
      %p718 = scmp.ne.s32.totalorder %s701, %s717
      %p719 = scmp.eq.s32.totalorder %s41, 0
      %p720 = por %p718, %p719
      %s721 = ssub.s32 %s43, %s50
      %p722 = scmp.eq.s32.totalorder %s721, 0
      %s724 = sadd.s32 %s723, 1
      %s725 = scalar_select %p722, %s723, %s724
      %p728 = pneg %p722
      %p729 = scmp.eq.s32.totalorder %s35, 1
      %p730 = por %p728, %p729
      %p731 = scmp.ne.s32.totalorder %s723, %s726
      %p732 = scmp.eq.s32.totalorder %s35, 0
      %p733 = por %p731, %p732
      %p734 = scmp.ne.s32.totalorder %s723, %s726
      %p735 = scmp.eq.s32.totalorder %s40, 1
      %p736 = por %p734, %p735
      %p737 = scmp.ne.s32.totalorder %s726, %s727
      %p738 = scmp.eq.s32.totalorder %s40, 0
      %p739 = por %p737, %p738
      %p740 = scmp.ne.s32.totalorder %s726, %s727
      %p741 = scmp.eq.s32.totalorder %s41, 1
      %p742 = por %p740, %p741
      %p744 = scmp.ne.s32.totalorder %s727, %s743
      %p745 = scmp.eq.s32.totalorder %s41, 0
      %p746 = por %p744, %p745
      %s747 = ssub.s32 %s43, %s50
      %p748 = scmp.eq.s32.totalorder %s747, 0
      %s750 = sadd.s32 %s749, 1
      %s751 = scalar_select %p748, %s749, %s750
      %p754 = pneg %p748
      %p755 = scmp.eq.s32.totalorder %s35, 1
      %p756 = por %p754, %p755
      %p757 = scmp.ne.s32.totalorder %s749, %s752
      %p758 = scmp.eq.s32.totalorder %s35, 0
      %p759 = por %p757, %p758
      %p760 = scmp.ne.s32.totalorder %s749, %s752
      %p761 = scmp.eq.s32.totalorder %s40, 1
      %p762 = por %p760, %p761
      %p763 = scmp.ne.s32.totalorder %s752, %s753
      %p764 = scmp.eq.s32.totalorder %s40, 0
      %p765 = por %p763, %p764
      %p766 = scmp.ne.s32.totalorder %s752, %s753
      %p767 = scmp.eq.s32.totalorder %s41, 1
      %p768 = por %p766, %p767
      %p770 = scmp.ne.s32.totalorder %s753, %s769
      %p771 = scmp.eq.s32.totalorder %s41, 0
      %p772 = por %p770, %p771
      %s773 = ssub.s32 %s42, %s54
      %p774 = scmp.eq.s32.totalorder %s773, 0
      %s776 = sadd.s32 %s775, 1
      %s777 = scalar_select %p774, %s775, %s776
      %p780 = pneg %p774
      %p781 = scmp.eq.s32.totalorder %s35, 1
      %p782 = por %p780, %p781
      %p783 = scmp.ne.s32.totalorder %s775, %s778
      %p784 = scmp.eq.s32.totalorder %s35, 0
      %p785 = por %p783, %p784
      %p786 = scmp.ne.s32.totalorder %s775, %s778
      %p787 = scmp.eq.s32.totalorder %s40, 1
      %p788 = por %p786, %p787
      %p789 = scmp.ne.s32.totalorder %s778, %s779
      %p790 = scmp.eq.s32.totalorder %s40, 0
      %p791 = por %p789, %p790
      %p792 = scmp.ne.s32.totalorder %s778, %s779
      %p793 = scmp.eq.s32.totalorder %s41, 1
      %p794 = por %p792, %p793
      %p796 = scmp.ne.s32.totalorder %s779, %s795
      %p797 = scmp.eq.s32.totalorder %s41, 0
      %p798 = por %p796, %p797
      %p799 = scmp.le.s32.totalorder 1, %s35
      %p800 = scmp.lt.s32.totalorder %s35, 3
      %p801 = pnand %p799, %p800
      %p802 = pneg %p801
      // Predicated region
      $region9: #{tpu_custom_call.1} parent=5 // pred_check
        _
      $region10: #{tpu_custom_call.1} parent=5 // pred_check_branch
        %804 = sbr.rel (%p801) target = $region12
      $region11: #{tpu_custom_call.1} parent=5 // pred_region
        %s805 = ssub.s32 %s35, 1
        // Predicated region
        $region13: #{tpu_custom_call.1} parent=11 // pred_check
          %p806 = pneg %p73
        $region14: #{tpu_custom_call.1} parent=11 // pred_check_branch
          %808 = sbr.rel (%p806) target = $region16
        $region15: #{tpu_custom_call.1} parent=11 // pred_region
          %s809 = smul.u32 2, %s44
          %p810 = scmp.lt.s32.totalorder %s809, 1
          %s811 = scalar_select %p810, %s809, 1
          %s812 = smul.addr %s811, 8
          %s813 = scalar_lea.vmem %s0, %s812
          %s814 = smul.u32 2, %s44
        $region16: #{tpu_custom_call.1} parent=11 // pred_fallthru
          _
        // Predicated region
        $region17: #{tpu_custom_call.1} parent=11 // pred_check
          %p815 = pneg %p99
        $region18: #{tpu_custom_call.1} parent=11 // pred_check_branch
          %817 = sbr.rel (%p815) target = $region20
        $region19: #{tpu_custom_call.1} parent=11 // pred_region
          %s818 = smul.u32 2, %s44
          %p819 = scmp.lt.s32.totalorder %s818, 1
          %s820 = scalar_select %p819, %s818, 1
          %s821 = scalar_lea.vmem %s1, %s820
          %s822 = smul.u32 2, %s44
        $region20: #{tpu_custom_call.1} parent=11 // pred_fallthru
          _
        // Predicated region
        $region21: #{tpu_custom_call.1} parent=11 // pred_check
          %p823 = pneg %p120
        $region22: #{tpu_custom_call.1} parent=11 // pred_check_branch
          %825 = sbr.rel (%p823) target = $region24
        $region23: #{tpu_custom_call.1} parent=11 // pred_region
          _
        $region24: #{tpu_custom_call.1} parent=11 // pred_fallthru
          _
        // Predicated region
        $region25: #{tpu_custom_call.1} parent=11 // pred_check
          %p826 = pneg %p141
        $region26: #{tpu_custom_call.1} parent=11 // pred_check_branch
          %828 = sbr.rel (%p826) target = $region28
        $region27: #{tpu_custom_call.1} parent=11 // pred_region
          _
        $region28: #{tpu_custom_call.1} parent=11 // pred_fallthru
          _
      $region12: #{tpu_custom_call.1} parent=5 // pred_fallthru
        _
      %p829 = scmp.lt.s32.totalorder %s35, 2
      // Predicated region
      $region29: #{tpu_custom_call.1} parent=5 // pred_check
        %p830 = pneg %p829
      $region30: #{tpu_custom_call.1} parent=5 // pred_check_branch
        %832 = sbr.rel (%p830) target = $region32
      $region31: #{tpu_custom_call.1} parent=5 // pred_region
        // Predicated region
        $region33: #{tpu_custom_call.1} parent=31 // pred_check
          %p833 = pneg %p161
        $region34: #{tpu_custom_call.1} parent=31 // pred_check_branch
          %835 = sbr.rel (%p833) target = $region36
        $region35: #{tpu_custom_call.1} parent=31 // pred_region
          %p836 = scmp.lt.s32.totalorder %s43, 1
          %s837 = scalar_select %p836, %s43, 1
          %s838 = smul.addr %s837, 4
          %s839 = smul.addr %s838, 4
          %s840 = scalar_lea.vmem %s4, %s839
        $region36: #{tpu_custom_call.1} parent=31 // pred_fallthru
          _
        // Predicated region
        $region37: #{tpu_custom_call.1} parent=31 // pred_check
          %p841 = pneg %p187
        $region38: #{tpu_custom_call.1} parent=31 // pred_check_branch
          %843 = sbr.rel (%p841) target = $region40
        $region39: #{tpu_custom_call.1} parent=31 // pred_region
          %p844 = scmp.lt.s32.totalorder %s43, 1
          %s845 = scalar_select %p844, %s43, 1
          %s846 = scalar_lea.vmem %s5, %s845
        $region40: #{tpu_custom_call.1} parent=31 // pred_fallthru
          _
        // Predicated region
        $region41: #{tpu_custom_call.1} parent=31 // pred_check
          %p847 = pneg %p213
        $region42: #{tpu_custom_call.1} parent=31 // pred_check_branch
          %849 = sbr.rel (%p847) target = $region44
        $region43: #{tpu_custom_call.1} parent=31 // pred_region
          %p850 = scmp.lt.s32.totalorder %s43, 1
          %s851 = scalar_select %p850, %s43, 1
          %s852 = smul.addr %s851, 4
          %s853 = smul.addr %s852, 4
          %s854 = scalar_lea.vmem %s6, %s853
        $region44: #{tpu_custom_call.1} parent=31 // pred_fallthru
          _
        // Predicated region
        $region45: #{tpu_custom_call.1} parent=31 // pred_check
          %p855 = pneg %p239
        $region46: #{tpu_custom_call.1} parent=31 // pred_check_branch
          %857 = sbr.rel (%p855) target = $region48
        $region47: #{tpu_custom_call.1} parent=31 // pred_region
          %p858 = scmp.lt.s32.totalorder %s43, 1
          %s859 = scalar_select %p858, %s43, 1
          %s860 = scalar_lea.vmem %s7, %s859
        $region48: #{tpu_custom_call.1} parent=31 // pred_fallthru
          _
        // Predicated region
        $region49: #{tpu_custom_call.1} parent=31 // pred_check
          %p861 = pneg %p265
        $region50: #{tpu_custom_call.1} parent=31 // pred_check_branch
          %863 = sbr.rel (%p861) target = $region52
        $region51: #{tpu_custom_call.1} parent=31 // pred_region
          %p864 = scmp.lt.s32.totalorder %s43, 1
          %s865 = scalar_select %p864, %s43, 1
          %s866 = smul.addr %s865, 4
          %s867 = smul.addr %s866, 4
          %s868 = scalar_lea.vmem %s8, %s867
        $region52: #{tpu_custom_call.1} parent=31 // pred_fallthru
          _
        // Predicated region
        $region53: #{tpu_custom_call.1} parent=31 // pred_check
          %p869 = pneg %p291
        $region54: #{tpu_custom_call.1} parent=31 // pred_check_branch
          %871 = sbr.rel (%p869) target = $region56
        $region55: #{tpu_custom_call.1} parent=31 // pred_region
          %p872 = scmp.lt.s32.totalorder %s43, 1
          %s873 = scalar_select %p872, %s43, 1
          %s874 = scalar_lea.vmem %s9, %s873
        $region56: #{tpu_custom_call.1} parent=31 // pred_fallthru
          _
        // Predicated region
        $region57: #{tpu_custom_call.1} parent=31 // pred_check
          %p875 = pneg %p317
        $region58: #{tpu_custom_call.1} parent=31 // pred_check_branch
          %877 = sbr.rel (%p875) target = $region60
        $region59: #{tpu_custom_call.1} parent=31 // pred_region
          %p878 = scmp.lt.s32.totalorder %s43, 1
          %s879 = scalar_select %p878, %s43, 1
          %s880 = smul.addr %s879, 4
          %s881 = smul.addr %s880, 4
          %s882 = scalar_lea.vmem %s10, %s881
        $region60: #{tpu_custom_call.1} parent=31 // pred_fallthru
          _
        // Predicated region
        $region61: #{tpu_custom_call.1} parent=31 // pred_check
          %p883 = pneg %p343
        $region62: #{tpu_custom_call.1} parent=31 // pred_check_branch
          %885 = sbr.rel (%p883) target = $region64
        $region63: #{tpu_custom_call.1} parent=31 // pred_region
          %p886 = scmp.lt.s32.totalorder %s43, 1
          %s887 = scalar_select %p886, %s43, 1
          %s888 = scalar_lea.vmem %s11, %s887
        $region64: #{tpu_custom_call.1} parent=31 // pred_fallthru
          _
        // Predicated region
        $region65: #{tpu_custom_call.1} parent=31 // pred_check
          %p889 = pneg %p369
        $region66: #{tpu_custom_call.1} parent=31 // pred_check_branch
          %891 = sbr.rel (%p889) target = $region68
        $region67: #{tpu_custom_call.1} parent=31 // pred_region
          %p892 = scmp.lt.s32.totalorder %s43, 1
          %s893 = scalar_select %p892, %s43, 1
          %s894 = smul.addr %s893, 4
          %s895 = smul.addr %s894, 4
          %s896 = scalar_lea.vmem %s12, %s895
        $region68: #{tpu_custom_call.1} parent=31 // pred_fallthru
          _
        // Predicated region
        $region69: #{tpu_custom_call.1} parent=31 // pred_check
          %p897 = pneg %p395
        $region70: #{tpu_custom_call.1} parent=31 // pred_check_branch
          %899 = sbr.rel (%p897) target = $region72
        $region71: #{tpu_custom_call.1} parent=31 // pred_region
          %p900 = scmp.lt.s32.totalorder %s43, 1
          %s901 = scalar_select %p900, %s43, 1
          %s902 = scalar_lea.vmem %s13, %s901
        $region72: #{tpu_custom_call.1} parent=31 // pred_fallthru
          _
        // Predicated region
        $region73: #{tpu_custom_call.1} parent=31 // pred_check
          %p903 = pneg %p421
        $region74: #{tpu_custom_call.1} parent=31 // pred_check_branch
          %905 = sbr.rel (%p903) target = $region76
        $region75: #{tpu_custom_call.1} parent=31 // pred_region
          %p906 = scmp.lt.s32.totalorder %s43, 1
          %s907 = scalar_select %p906, %s43, 1
          %s908 = smul.addr %s907, 16
          %s909 = smul.addr %s908, 4
          %s910 = scalar_lea.vmem %s14, %s909
        $region76: #{tpu_custom_call.1} parent=31 // pred_fallthru
          _
        // Predicated region
        $region77: #{tpu_custom_call.1} parent=31 // pred_check
          %p911 = pneg %p447
        $region78: #{tpu_custom_call.1} parent=31 // pred_check_branch
          %913 = sbr.rel (%p911) target = $region80
        $region79: #{tpu_custom_call.1} parent=31 // pred_region
          %p914 = scmp.lt.s32.totalorder %s43, 1
          %s915 = scalar_select %p914, %s43, 1
          %s916 = scalar_lea.vmem %s15, %s915
        $region80: #{tpu_custom_call.1} parent=31 // pred_fallthru
          _
        // Predicated region
        $region81: #{tpu_custom_call.1} parent=31 // pred_check
          %p917 = pneg %p473
        $region82: #{tpu_custom_call.1} parent=31 // pred_check_branch
          %919 = sbr.rel (%p917) target = $region84
        $region83: #{tpu_custom_call.1} parent=31 // pred_region
          %p920 = scmp.lt.s32.totalorder %s43, 1
          %s921 = scalar_select %p920, %s43, 1
          %s922 = scalar_lea.vmem %s16, %s921
        $region84: #{tpu_custom_call.1} parent=31 // pred_fallthru
          _
        // Predicated region
        $region85: #{tpu_custom_call.1} parent=31 // pred_check
          %p923 = pneg %p499
        $region86: #{tpu_custom_call.1} parent=31 // pred_check_branch
          %925 = sbr.rel (%p923) target = $region88
        $region87: #{tpu_custom_call.1} parent=31 // pred_region
          %p926 = scmp.lt.s32.totalorder %s43, 1
          %s927 = scalar_select %p926, %s43, 1
          %s928 = scalar_lea.vmem %s17, %s927
        $region88: #{tpu_custom_call.1} parent=31 // pred_fallthru
          _
        // Predicated region
        $region89: #{tpu_custom_call.1} parent=31 // pred_check
          %p929 = pneg %p525
        $region90: #{tpu_custom_call.1} parent=31 // pred_check_branch
          %931 = sbr.rel (%p929) target = $region92
        $region91: #{tpu_custom_call.1} parent=31 // pred_region
          %p932 = scmp.lt.s32.totalorder %s43, 1
          %s933 = scalar_select %p932, %s43, 1
          %s934 = smul.addr %s933, 4
          %s935 = smul.addr %s934, 4
          %s936 = scalar_lea.vmem %s18, %s935
        $region92: #{tpu_custom_call.1} parent=31 // pred_fallthru
          _
        // Predicated region
        $region93: #{tpu_custom_call.1} parent=31 // pred_check
          %p937 = pneg %p551
        $region94: #{tpu_custom_call.1} parent=31 // pred_check_branch
          %939 = sbr.rel (%p937) target = $region96
        $region95: #{tpu_custom_call.1} parent=31 // pred_region
          %p940 = scmp.lt.s32.totalorder %s43, 1
          %s941 = scalar_select %p940, %s43, 1
          %s942 = scalar_lea.vmem %s19, %s941
        $region96: #{tpu_custom_call.1} parent=31 // pred_fallthru
          _
        // Predicated region
        $region97: #{tpu_custom_call.1} parent=31 // pred_check
          %p943 = pneg %p577
        $region98: #{tpu_custom_call.1} parent=31 // pred_check_branch
          %945 = sbr.rel (%p943) target = $region100
        $region99: #{tpu_custom_call.1} parent=31 // pred_region
          %p946 = scmp.lt.s32.totalorder %s43, 1
          %s947 = scalar_select %p946, %s43, 1
          %s948 = smul.addr %s947, 16
          %s949 = smul.addr %s948, 4
          %s950 = scalar_lea.vmem %s20, %s949
        $region100: #{tpu_custom_call.1} parent=31 // pred_fallthru
          _
        // Predicated region
        $region101: #{tpu_custom_call.1} parent=31 // pred_check
          %p951 = pneg %p603
        $region102: #{tpu_custom_call.1} parent=31 // pred_check_branch
          %953 = sbr.rel (%p951) target = $region104
        $region103: #{tpu_custom_call.1} parent=31 // pred_region
          %p954 = scmp.lt.s32.totalorder %s43, 1
          %s955 = scalar_select %p954, %s43, 1
          %s956 = scalar_lea.vmem %s21, %s955
        $region104: #{tpu_custom_call.1} parent=31 // pred_fallthru
          _
        // Predicated region
        $region105: #{tpu_custom_call.1} parent=31 // pred_check
          %p957 = pneg %p629
        $region106: #{tpu_custom_call.1} parent=31 // pred_check_branch
          %959 = sbr.rel (%p957) target = $region108
        $region107: #{tpu_custom_call.1} parent=31 // pred_region
          %p960 = scmp.lt.s32.totalorder %s43, 1
          %s961 = scalar_select %p960, %s43, 1
          %s962 = smul.addr %s961, 4
          %s963 = smul.addr %s962, 4
          %s964 = scalar_lea.vmem %s22, %s963
        $region108: #{tpu_custom_call.1} parent=31 // pred_fallthru
          _
        // Predicated region
        $region109: #{tpu_custom_call.1} parent=31 // pred_check
          %p965 = pneg %p655
        $region110: #{tpu_custom_call.1} parent=31 // pred_check_branch
          %967 = sbr.rel (%p965) target = $region112
        $region111: #{tpu_custom_call.1} parent=31 // pred_region
          %p968 = scmp.lt.s32.totalorder %s43, 1
          %s969 = scalar_select %p968, %s43, 1
          %s970 = scalar_lea.vmem %s23, %s969
        $region112: #{tpu_custom_call.1} parent=31 // pred_fallthru
          _
        // Predicated region
        $region113: #{tpu_custom_call.1} parent=31 // pred_check
          %p971 = pneg %p681
        $region114: #{tpu_custom_call.1} parent=31 // pred_check_branch
          %973 = sbr.rel (%p971) target = $region116
        $region115: #{tpu_custom_call.1} parent=31 // pred_region
          %p974 = scmp.lt.s32.totalorder %s43, 1
          %s975 = scalar_select %p974, %s43, 1
          %s976 = smul.addr %s975, 16
          %s977 = smul.addr %s976, 4
          %s978 = scalar_lea.vmem %s24, %s977
        $region116: #{tpu_custom_call.1} parent=31 // pred_fallthru
          _
        // Predicated region
        $region117: #{tpu_custom_call.1} parent=31 // pred_check
          %p979 = pneg %p707
        $region118: #{tpu_custom_call.1} parent=31 // pred_check_branch
          %981 = sbr.rel (%p979) target = $region120
        $region119: #{tpu_custom_call.1} parent=31 // pred_region
          %p982 = scmp.lt.s32.totalorder %s43, 1
          %s983 = scalar_select %p982, %s43, 1
          %s984 = scalar_lea.vmem %s25, %s983
        $region120: #{tpu_custom_call.1} parent=31 // pred_fallthru
          _
        // Predicated region
        $region121: #{tpu_custom_call.1} parent=31 // pred_check
          %p985 = pneg %p733
        $region122: #{tpu_custom_call.1} parent=31 // pred_check_branch
          %987 = sbr.rel (%p985) target = $region124
        $region123: #{tpu_custom_call.1} parent=31 // pred_region
          %p988 = scmp.lt.s32.totalorder %s43, 1
          %s989 = scalar_select %p988, %s43, 1
          %s990 = scalar_lea.vmem %s26, %s989
        $region124: #{tpu_custom_call.1} parent=31 // pred_fallthru
          _
        // Predicated region
        $region125: #{tpu_custom_call.1} parent=31 // pred_check
          %p991 = pneg %p759
        $region126: #{tpu_custom_call.1} parent=31 // pred_check_branch
          %993 = sbr.rel (%p991) target = $region128
        $region127: #{tpu_custom_call.1} parent=31 // pred_region
          %p994 = scmp.lt.s32.totalorder %s43, 1
          %s995 = scalar_select %p994, %s43, 1
          %s996 = scalar_lea.vmem %s27, %s995
        $region128: #{tpu_custom_call.1} parent=31 // pred_fallthru
          _
      $region32: #{tpu_custom_call.1} parent=5 // pred_fallthru
        _
      %p997 = scmp.le.s32.totalorder 1, %s35
      %p998 = scmp.lt.s32.totalorder %s35, 3
      %p999 = pnand %p997, %p998
      %p1000 = pneg %p999
      // Predicated region
      $region129: #{tpu_custom_call.1} parent=5 // pred_check
        _
      $region130: #{tpu_custom_call.1} parent=5 // pred_check_branch
        %1002 = sbr.rel (%p999) target = $region132
      $region131: #{tpu_custom_call.1} parent=5 // pred_region
        %s1003 = ssub.s32 %s35, 1
        %s1004 = smul.u32 2, %s44
        %p1005 = scmp.lt.s32.totalorder %s1004, 1
        %s1006 = scalar_select %p1005, %s1004, 1
        %s1007 = smul.addr %s1006, 8
        %s1008 = scalar_lea.vmem %s0, %s1007
        %p1009 = pneg %p73
        %p1010 = pneg %p70
        %s1011 = smul.u32 2, %s44
        %p1012 = scmp.lt.s32.totalorder %s1011, 1
        %s1013 = scalar_select %p1012, %s1011, 1
        %s1014 = scalar_lea.vmem %s1, %s1013
        %p1015 = pneg %p99
        %p1016 = pneg %p96
        %p1017 = pneg %p120
        %p1018 = pneg %p117
        %p1019 = pneg %p141
        %p1020 = pneg %p138
        %p1021 = scmp.lt.s32.totalorder %s45, 1
        %s1022 = scalar_select %p1021, %s45, 1
        %s1023 = smul.addr %s1022, 4
        %s1024 = smul.addr %s1023, 4
        %s1025 = scalar_lea.vmem %s4, %s1024
        %p1026 = pneg %p167
        %p1027 = pneg %p164
        %p1028 = scmp.lt.s32.totalorder %s45, 1
        %s1029 = scalar_select %p1028, %s45, 1
        %s1030 = scalar_lea.vmem %s5, %s1029
        %p1031 = pneg %p193
        %p1032 = pneg %p190
        %p1033 = scmp.lt.s32.totalorder %s45, 1
        %s1034 = scalar_select %p1033, %s45, 1
        %s1035 = smul.addr %s1034, 4
        %s1036 = smul.addr %s1035, 4
        %s1037 = scalar_lea.vmem %s6, %s1036
        %p1038 = pneg %p219
        %p1039 = pneg %p216
        %p1040 = scmp.lt.s32.totalorder %s45, 1
        %s1041 = scalar_select %p1040, %s45, 1
        %s1042 = scalar_lea.vmem %s7, %s1041
        %p1043 = pneg %p245
        %p1044 = pneg %p242
        %p1045 = scmp.lt.s32.totalorder %s45, 1
        %s1046 = scalar_select %p1045, %s45, 1
        %s1047 = smul.addr %s1046, 4
        %s1048 = smul.addr %s1047, 4
        %s1049 = scalar_lea.vmem %s8, %s1048
        %p1050 = pneg %p271
        %p1051 = pneg %p268
        %p1052 = scmp.lt.s32.totalorder %s45, 1
        %s1053 = scalar_select %p1052, %s45, 1
        %s1054 = scalar_lea.vmem %s9, %s1053
        %p1055 = pneg %p297
        %p1056 = pneg %p294
        %p1057 = scmp.lt.s32.totalorder %s45, 1
        %s1058 = scalar_select %p1057, %s45, 1
        %s1059 = smul.addr %s1058, 4
        %s1060 = smul.addr %s1059, 4
        %s1061 = scalar_lea.vmem %s10, %s1060
        %p1062 = pneg %p323
        %p1063 = pneg %p320
        %p1064 = scmp.lt.s32.totalorder %s45, 1
        %s1065 = scalar_select %p1064, %s45, 1
        %s1066 = scalar_lea.vmem %s11, %s1065
        %p1067 = pneg %p349
        %p1068 = pneg %p346
        %p1069 = scmp.lt.s32.totalorder %s45, 1
        %s1070 = scalar_select %p1069, %s45, 1
        %s1071 = smul.addr %s1070, 4
        %s1072 = smul.addr %s1071, 4
        %s1073 = scalar_lea.vmem %s12, %s1072
        %p1074 = pneg %p375
        %p1075 = pneg %p372
        %p1076 = scmp.lt.s32.totalorder %s45, 1
        %s1077 = scalar_select %p1076, %s45, 1
        %s1078 = scalar_lea.vmem %s13, %s1077
        %p1079 = pneg %p401
        %p1080 = pneg %p398
        %p1081 = scmp.lt.s32.totalorder %s45, 1
        %s1082 = scalar_select %p1081, %s45, 1
        %s1083 = smul.addr %s1082, 16
        %s1084 = smul.addr %s1083, 4
        %s1085 = scalar_lea.vmem %s14, %s1084
        %p1086 = pneg %p427
        %p1087 = pneg %p424
        %p1088 = scmp.lt.s32.totalorder %s45, 1
        %s1089 = scalar_select %p1088, %s45, 1
        %s1090 = scalar_lea.vmem %s15, %s1089
        %p1091 = pneg %p453
        %p1092 = pneg %p450
        %p1093 = scmp.lt.s32.totalorder %s45, 1
        %s1094 = scalar_select %p1093, %s45, 1
        %s1095 = scalar_lea.vmem %s16, %s1094
        %p1096 = pneg %p479
        %p1097 = pneg %p476
        %p1098 = scmp.lt.s32.totalorder %s45, 1
        %s1099 = scalar_select %p1098, %s45, 1
        %s1100 = scalar_lea.vmem %s17, %s1099
        %p1101 = pneg %p505
        %p1102 = pneg %p502
        %p1103 = scmp.lt.s32.totalorder %s45, 1
        %s1104 = scalar_select %p1103, %s45, 1
        %s1105 = smul.addr %s1104, 4
        %s1106 = smul.addr %s1105, 4
        %s1107 = scalar_lea.vmem %s18, %s1106
        %p1108 = pneg %p531
        %p1109 = pneg %p528
        %p1110 = scmp.lt.s32.totalorder %s45, 1
        %s1111 = scalar_select %p1110, %s45, 1
        %s1112 = scalar_lea.vmem %s19, %s1111
        %p1113 = pneg %p557
        %p1114 = pneg %p554
        %p1115 = scmp.lt.s32.totalorder %s45, 1
        %s1116 = scalar_select %p1115, %s45, 1
        %s1117 = smul.addr %s1116, 16
        %s1118 = smul.addr %s1117, 4
        %s1119 = scalar_lea.vmem %s20, %s1118
        %p1120 = pneg %p583
        %p1121 = pneg %p580
        %p1122 = scmp.lt.s32.totalorder %s45, 1
        %s1123 = scalar_select %p1122, %s45, 1
        %s1124 = scalar_lea.vmem %s21, %s1123
        %p1125 = pneg %p609
        %p1126 = pneg %p606
        %p1127 = scmp.lt.s32.totalorder %s45, 1
        %s1128 = scalar_select %p1127, %s45, 1
        %s1129 = smul.addr %s1128, 4
        %s1130 = smul.addr %s1129, 4
        %s1131 = scalar_lea.vmem %s22, %s1130
        %p1132 = pneg %p635
        %p1133 = pneg %p632
        %p1134 = scmp.lt.s32.totalorder %s45, 1
        %s1135 = scalar_select %p1134, %s45, 1
        %s1136 = scalar_lea.vmem %s23, %s1135
        %p1137 = pneg %p661
        %p1138 = pneg %p658
        %p1139 = scmp.lt.s32.totalorder %s45, 1
        %s1140 = scalar_select %p1139, %s45, 1
        %s1141 = smul.addr %s1140, 16
        %s1142 = smul.addr %s1141, 4
        %s1143 = scalar_lea.vmem %s24, %s1142
        %p1144 = pneg %p687
        %p1145 = pneg %p684
        %p1146 = scmp.lt.s32.totalorder %s45, 1
        %s1147 = scalar_select %p1146, %s45, 1
        %s1148 = scalar_lea.vmem %s25, %s1147
        %p1149 = pneg %p713
        %p1150 = pneg %p710
        %p1151 = scmp.lt.s32.totalorder %s45, 1
        %s1152 = scalar_select %p1151, %s45, 1
        %s1153 = scalar_lea.vmem %s26, %s1152
        %p1154 = pneg %p739
        %p1155 = pneg %p736
        %p1156 = scmp.lt.s32.totalorder %s45, 1
        %s1157 = scalar_select %p1156, %s45, 1
        %s1158 = scalar_lea.vmem %s27, %s1157
        %p1159 = pneg %p765
        %p1160 = pneg %p762
        %p1161 = pneg %p791
        %p1162 = pneg %p788
        %s1163 = smul.u32 2, %s44
        %p1164 = scmp.lt.s32.totalorder %s1163, 1
        %s1165 = scalar_select %p1164, %s1163, 1
        %s1166 = smul.addr %s1165, 8
        %s1167 = scalar_lea.vmem %s0, %s1166
        %s1168 = smul.u32 2, %s44
        %s1169 = smul.u32 2, %s44
        %p1170 = scmp.lt.s32.totalorder %s1169, 1
        %s1171 = scalar_select %p1170, %s1169, 1
        %s1172 = scalar_lea.vmem %s1, %s1171
        %s1173 = smul.u32 2, %s44
        %p1174 = scmp.lt.s32.totalorder %s45, 1
        %s1175 = scalar_select %p1174, %s45, 1
        %s1176 = smul.addr %s1175, 4
        %s1177 = smul.addr %s1176, 4
        %s1178 = scalar_lea.vmem %s4, %s1177
        %p1179 = scmp.lt.s32.totalorder %s45, 1
        %s1180 = scalar_select %p1179, %s45, 1
        %s1181 = scalar_lea.vmem %s5, %s1180
        %p1182 = scmp.lt.s32.totalorder %s45, 1
        %s1183 = scalar_select %p1182, %s45, 1
        %s1184 = smul.addr %s1183, 4
        %s1185 = smul.addr %s1184, 4
        %s1186 = scalar_lea.vmem %s6, %s1185
        %p1187 = scmp.lt.s32.totalorder %s45, 1
        %s1188 = scalar_select %p1187, %s45, 1
        %s1189 = scalar_lea.vmem %s7, %s1188
        %p1190 = scmp.lt.s32.totalorder %s45, 1
        %s1191 = scalar_select %p1190, %s45, 1
        %s1192 = smul.addr %s1191, 4
        %s1193 = smul.addr %s1192, 4
        %s1194 = scalar_lea.vmem %s8, %s1193
        %p1195 = scmp.lt.s32.totalorder %s45, 1
        %s1196 = scalar_select %p1195, %s45, 1
        %s1197 = scalar_lea.vmem %s9, %s1196
        %p1198 = scmp.lt.s32.totalorder %s45, 1
        %s1199 = scalar_select %p1198, %s45, 1
        %s1200 = smul.addr %s1199, 4
        %s1201 = smul.addr %s1200, 4
        %s1202 = scalar_lea.vmem %s10, %s1201
        %p1203 = scmp.lt.s32.totalorder %s45, 1
        %s1204 = scalar_select %p1203, %s45, 1
        %s1205 = scalar_lea.vmem %s11, %s1204
        %p1206 = scmp.lt.s32.totalorder %s45, 1
        %s1207 = scalar_select %p1206, %s45, 1
        %s1208 = smul.addr %s1207, 4
        %s1209 = smul.addr %s1208, 4
        %s1210 = scalar_lea.vmem %s12, %s1209
        %p1211 = scmp.lt.s32.totalorder %s45, 1
        %s1212 = scalar_select %p1211, %s45, 1
        %s1213 = scalar_lea.vmem %s13, %s1212
        %p1214 = scmp.lt.s32.totalorder %s45, 1
        %s1215 = scalar_select %p1214, %s45, 1
        %s1216 = smul.addr %s1215, 16
        %s1217 = smul.addr %s1216, 4
        %s1218 = scalar_lea.vmem %s14, %s1217
        %p1219 = scmp.lt.s32.totalorder %s45, 1
        %s1220 = scalar_select %p1219, %s45, 1
        %s1221 = scalar_lea.vmem %s15, %s1220
        %p1222 = scmp.lt.s32.totalorder %s45, 1
        %s1223 = scalar_select %p1222, %s45, 1
        %s1224 = scalar_lea.vmem %s16, %s1223
        %p1225 = scmp.lt.s32.totalorder %s45, 1
        %s1226 = scalar_select %p1225, %s45, 1
        %s1227 = scalar_lea.vmem %s17, %s1226
        %p1228 = scmp.lt.s32.totalorder %s45, 1
        %s1229 = scalar_select %p1228, %s45, 1
        %s1230 = smul.addr %s1229, 4
        %s1231 = smul.addr %s1230, 4
        %s1232 = scalar_lea.vmem %s18, %s1231
        %p1233 = scmp.lt.s32.totalorder %s45, 1
        %s1234 = scalar_select %p1233, %s45, 1
        %s1235 = scalar_lea.vmem %s19, %s1234
        %p1236 = scmp.lt.s32.totalorder %s45, 1
        %s1237 = scalar_select %p1236, %s45, 1
        %s1238 = smul.addr %s1237, 16
        %s1239 = smul.addr %s1238, 4
        %s1240 = scalar_lea.vmem %s20, %s1239
        %p1241 = scmp.lt.s32.totalorder %s45, 1
        %s1242 = scalar_select %p1241, %s45, 1
        %s1243 = scalar_lea.vmem %s21, %s1242
        %p1244 = scmp.lt.s32.totalorder %s45, 1
        %s1245 = scalar_select %p1244, %s45, 1
        %s1246 = smul.addr %s1245, 4
        %s1247 = smul.addr %s1246, 4
        %s1248 = scalar_lea.vmem %s22, %s1247
        %p1249 = scmp.lt.s32.totalorder %s45, 1
        %s1250 = scalar_select %p1249, %s45, 1
        %s1251 = scalar_lea.vmem %s23, %s1250
        %p1252 = scmp.lt.s32.totalorder %s45, 1
        %s1253 = scalar_select %p1252, %s45, 1
        %s1254 = smul.addr %s1253, 16
        %s1255 = smul.addr %s1254, 4
        %s1256 = scalar_lea.vmem %s24, %s1255
        %p1257 = scmp.lt.s32.totalorder %s45, 1
        %s1258 = scalar_select %p1257, %s45, 1
        %s1259 = scalar_lea.vmem %s25, %s1258
        %p1260 = scmp.lt.s32.totalorder %s45, 1
        %s1261 = scalar_select %p1260, %s45, 1
        %s1262 = scalar_lea.vmem %s26, %s1261
        %p1263 = scmp.lt.s32.totalorder %s45, 1
        %s1264 = scalar_select %p1263, %s45, 1
        %s1265 = scalar_lea.vmem %s27, %s1264
        %s1266 = smul.u32 2, %s44
        %p1268 = scmp.eq.s32.totalorder %s45, 0
        // Predicated region
        $region133: #{tpu_custom_call.1} parent=131 // pred_check
          %p1269 = pneg %p1268
        $region134: #{tpu_custom_call.1} parent=131 // pred_check_branch
          %1271 = sbr.rel (%p1269) target = $region136
        $region135: #{tpu_custom_call.1} parent=131 // pred_region
          %v1272 = vld [vmem:[%s1167] sm:$0xff]
          %v1273 = vld [vmem:[%s1167 + $0x8] sm:$0xff]
          %v1274 = vld [vmem:[%s2] sm:$0x1]
          %v1275 = vld [vmem:[%s3] sm:$0x1]
          %vm1276 = vcmask 261120
          %v1277 = vsel %vm1276, %v1272, 0.0
          %1278 = vadd.xlane.f32.xlu0 %v1277
          %v1279 = vpop.xlane.xlu0 %1278
          %v1280 = vsel %vm1276, %v1273, 0.0
          %1281 = vadd.xlane.f32.xlu0 %v1280
          %v1282 = vpop.xlane.xlu0 %1281
          %v1283 = vrcp.pop 32.0
          %v1284 = vmul.f32 32.0, %v1283
          %v1285 = vsub.f32 1.0, %v1284
          %v1286 = vmul.f32 %v1283, %v1285
          %v1287 = vadd.f32 %v1283, %v1286
          %vm1288 = vweird.f32 %v1283
          %v1289 = vsel %vm1288, %v1283, %v1287
          %v1290 = vmul.f32 %v1279, %v1289
          %v1291 = vmul.f32 %v1282, %v1289
          %v1292 = vsub.f32 %v1272, %v1290
          %v1293 = vsub.f32 %v1273, %v1291
          %v1294 = vmul.f32 %v1292, %v1292
          %v1295 = vmul.f32 %v1293, %v1293
          %v1296 = vsel %vm1276, %v1294, 0.0
          %1297 = vadd.xlane.f32.xlu0 %v1296
          %v1298 = vpop.xlane.xlu0 %1297
          %v1299 = vsel %vm1276, %v1295, 0.0
          %1300 = vadd.xlane.f32.xlu0 %v1299
          %v1301 = vpop.xlane.xlu0 %1300
          %v1302 = vmul.f32 %v1298, %v1289
          %v1303 = vmul.f32 %v1301, %v1289
          %v1304 = vadd.f32 %v1302, 1e-12
          %v1305 = vadd.f32 %v1303, 1e-12
          %v1306 = vrsqrt.pop %v1304
          %v1307 = vmul.f32 %v1306, %v1304
          %v1308 = vmul.f32 %v1307, %v1306
          %v1309 = vmul.f32 0.5, %v1308
          %v1310 = vsub.f32 1.5, %v1309
          %v1311 = vmul.f32 %v1306, %v1310
          %vm1312 = vweird.f32 %v1304
          %vm1313 = vweird.f32 %v1306
          %vm1314 = vmor %vm1312, %vm1313
          %v1315 = vsel %vm1314, %v1306, %v1311
          %v1316 = vrsqrt.pop %v1305
          %v1317 = vmul.f32 %v1316, %v1305
          %v1318 = vmul.f32 %v1317, %v1316
          %v1319 = vmul.f32 0.5, %v1318
          %v1320 = vsub.f32 1.5, %v1319
          %v1321 = vmul.f32 %v1316, %v1320
          %vm1322 = vweird.f32 %v1305
          %vm1323 = vweird.f32 %v1316
          %vm1324 = vmor %vm1322, %vm1323
          %v1325 = vsel %vm1324, %v1316, %v1321
          %v1326 = vmul.f32 %v1292, %v1315
          %v1327 = vmul.f32 %v1293, %v1325
          %v1329 = vperm.slane %v1274, 0
          %v1331 = vmul.f32 %v1326, %v1329
          %v1332 = vmul.f32 %v1327, %v1329
          %v1334 = vperm.slane %v1275, 0
          %v1336 = vadd.f32 %v1331, %v1334
          %v1337 = vadd.f32 %v1332, %v1334
          %1338 = vst.msk [vmem:[#allocation2] sm:$0xff] %vm1276, %v1336
          %1339 = vst.msk [vmem:[#allocation2 + $0x8] sm:$0xff] %vm1276, %v1337
        $region136: #{tpu_custom_call.1} parent=131 // pred_fallthru
          _
        %v1340 = vld [vmem:[#allocation2] sm:$0xff]
        %v1341 = vld [vmem:[#allocation2 + $0x8] sm:$0xff]
        %v1342 = vpack.c.bf16 %v1341, %v1340
        %v1343 = vld [vmem:[%s1178] sm:$0xf]
        %v1344 = vld [vmem:[%s1178 + $0x4] sm:$0xf]
        %v1345 = vld [vmem:[%s1178 + $0x8] sm:$0xf]
        %v1346 = vld [vmem:[%s1178 + $0xc] sm:$0xf]
        %v1347 = vld [vmem:[%s1181] sm:$0x1]
        %v1349 = vperm.slane %v1347, 0
        %v1355 = vunpack.c.l.b16 %v1343
        %v1356 = vunpack.c.l.b16 %v1344
        %v1357 = vunpack.c.l.b16 %v1345
        %v1358 = vunpack.c.l.b16 %v1346
        %v1359 = vpack.c.b16 %v1356, %v1355
        %v1360 = vpack.c.b16 %v1358, %v1357
        %vm1363 = vcmask 261120
        %v1365 = vsel %vm1363, %v1342, 0
        %1367 = vmatpush.bf16.msra.mxu0 0
        %1368 = vmatpush.bf16.msra.mxu0 0
        %1369 = vmatpush.bf16.msra.mxu0 0
        %1370 = vmatpush.bf16.msra.mxu0 0
        %1371 = vmatpush.bf16.msra.mxu0 0
        %1372 = vmatpush.bf16.msra.mxu0 0
        %1373 = vmatpush.bf16.msra.mxu0 %v1360
        %1374 = vmatpush.bf16.msra.mxu0 %v1359
        %1375 = vmatmul.bf16.gmra.mxu0 %v1365
        %v1376 = vpop.f32.mrf.mxu0
        %v1377 = vadd.f32 %v1349, %v1376
        %v1378 = vpop.f32.mrf.mxu0
        %v1379 = vadd.f32 %v1349, %v1378
        %1380 = vdwg.mxu0
        %v1381 = vld [vmem:[%s1186] sm:$0xf]
        %v1382 = vld [vmem:[%s1186 + $0x4] sm:$0xf]
        %v1383 = vld [vmem:[%s1186 + $0x8] sm:$0xf]
        %v1384 = vld [vmem:[%s1186 + $0xc] sm:$0xf]
        %v1385 = vld [vmem:[%s1189] sm:$0x1]
        %v1387 = vperm.slane %v1385, 0
        %v1393 = vunpack.c.l.b16 %v1381
        %v1394 = vunpack.c.l.b16 %v1382
        %v1395 = vunpack.c.l.b16 %v1383
        %v1396 = vunpack.c.l.b16 %v1384
        %v1397 = vpack.c.b16 %v1394, %v1393
        %v1398 = vpack.c.b16 %v1396, %v1395
        %1401 = vmatpush.bf16.msra.mxu0 0
        %1402 = vmatpush.bf16.msra.mxu0 0
        %1403 = vmatpush.bf16.msra.mxu0 0
        %1404 = vmatpush.bf16.msra.mxu0 0
        %1405 = vmatpush.bf16.msra.mxu0 0
        %1406 = vmatpush.bf16.msra.mxu0 0
        %1407 = vmatpush.bf16.msra.mxu0 %v1398
        %1408 = vmatpush.bf16.msra.mxu0 %v1397
        %1409 = vmatmul.bf16.gmra.mxu0 %v1365
        %v1410 = vpop.f32.mrf.mxu0
        %v1411 = vadd.f32 %v1387, %v1410
        %v1412 = vpop.f32.mrf.mxu0
        %v1413 = vadd.f32 %v1387, %v1412
        %1414 = vdwg.mxu0
        %v1415 = vld [vmem:[%s1194] sm:$0xf]
        %v1416 = vld [vmem:[%s1194 + $0x4] sm:$0xf]
        %v1417 = vld [vmem:[%s1194 + $0x8] sm:$0xf]
        %v1418 = vld [vmem:[%s1194 + $0xc] sm:$0xf]
        %v1419 = vld [vmem:[%s1197] sm:$0x1]
        %v1421 = vperm.slane %v1419, 0
        %v1427 = vunpack.c.l.b16 %v1415
        %v1428 = vunpack.c.l.b16 %v1416
        %v1429 = vunpack.c.l.b16 %v1417
        %v1430 = vunpack.c.l.b16 %v1418
        %v1431 = vpack.c.b16 %v1428, %v1427
        %v1432 = vpack.c.b16 %v1430, %v1429
        %1435 = vmatpush.bf16.msra.mxu0 0
        %1436 = vmatpush.bf16.msra.mxu0 0
        %1437 = vmatpush.bf16.msra.mxu0 0
        %1438 = vmatpush.bf16.msra.mxu0 0
        %1439 = vmatpush.bf16.msra.mxu0 0
        %1440 = vmatpush.bf16.msra.mxu0 0
        %1441 = vmatpush.bf16.msra.mxu0 %v1432
        %1442 = vmatpush.bf16.msra.mxu0 %v1431
        %1443 = vmatmul.bf16.gmra.mxu0 %v1365
        %v1444 = vpop.f32.mrf.mxu0
        %v1445 = vadd.f32 %v1421, %v1444
        %v1446 = vpop.f32.mrf.mxu0
        %v1447 = vadd.f32 %v1421, %v1446
        %1448 = vdwg.mxu0
        %1451 = vrot.lane.b32.xlu0 %v1377, 120
        %v1452 = vpop.permute.xlu0 %1451
        %1453 = vrot.lane.b32.xlu0 %v1379, 120
        %v1454 = vpop.permute.xlu0 %1453
        %1457 = vrot.lane.b32.xlu0 %v1377, 112
        %v1458 = vpop.permute.xlu0 %1457
        %1459 = vrot.lane.b32.xlu0 %v1379, 112
        %v1460 = vpop.permute.xlu0 %1459
        %1463 = vrot.lane.b32.xlu0 %v1377, 104
        %v1464 = vpop.permute.xlu0 %1463
        %1465 = vrot.lane.b32.xlu0 %v1379, 104
        %v1466 = vpop.permute.xlu0 %1465
        %v1469 = vpack.c.bf16 %v1377, %v1377
        %v1470 = vpack.c.bf16 %v1379, %v1379
        %v1471 = vpack.c.bf16 %v1452, %v1452
        %v1472 = vpack.c.bf16 %v1454, %v1454
        %v1473 = vpack.c.bf16 %v1458, %v1458
        %v1474 = vpack.c.bf16 %v1460, %v1460
        %v1475 = vpack.c.bf16 %v1464, %v1464
        %v1476 = vpack.c.bf16 %v1466, %v1466
        %1479 = vrot.lane.b32.xlu0 %v1411, 120
        %v1480 = vpop.permute.xlu0 %1479
        %1481 = vrot.lane.b32.xlu0 %v1413, 120
        %v1482 = vpop.permute.xlu0 %1481
        %1485 = vrot.lane.b32.xlu0 %v1411, 112
        %v1486 = vpop.permute.xlu0 %1485
        %1487 = vrot.lane.b32.xlu0 %v1413, 112
        %v1488 = vpop.permute.xlu0 %1487
        %1491 = vrot.lane.b32.xlu0 %v1411, 104
        %v1492 = vpop.permute.xlu0 %1491
        %1493 = vrot.lane.b32.xlu0 %v1413, 104
        %v1494 = vpop.permute.xlu0 %1493
        %v1497 = vpack.c.bf16 %v1411, %v1411
        %v1498 = vpack.c.bf16 %v1413, %v1413
        %v1499 = vpack.c.bf16 %v1480, %v1480
        %v1500 = vpack.c.bf16 %v1482, %v1482
        %v1501 = vpack.c.bf16 %v1486, %v1486
        %v1502 = vpack.c.bf16 %v1488, %v1488
        %v1503 = vpack.c.bf16 %v1492, %v1492
        %v1504 = vpack.c.bf16 %v1494, %v1494
        %1507 = vrot.lane.b32.xlu0 %v1445, 120
        %v1508 = vpop.permute.xlu0 %1507
        %1509 = vrot.lane.b32.xlu0 %v1447, 120
        %v1510 = vpop.permute.xlu0 %1509
        %1513 = vrot.lane.b32.xlu0 %v1445, 112
        %v1514 = vpop.permute.xlu0 %1513
        %1515 = vrot.lane.b32.xlu0 %v1447, 112
        %v1516 = vpop.permute.xlu0 %1515
        %1519 = vrot.lane.b32.xlu0 %v1445, 104
        %v1520 = vpop.permute.xlu0 %1519
        %1521 = vrot.lane.b32.xlu0 %v1447, 104
        %v1522 = vpop.permute.xlu0 %1521
        %v1525 = vpack.c.bf16 %v1445, %v1445
        %v1526 = vpack.c.bf16 %v1447, %v1447
        %v1527 = vpack.c.bf16 %v1508, %v1508
        %v1528 = vpack.c.bf16 %v1510, %v1510
        %v1529 = vpack.c.bf16 %v1514, %v1514
        %v1530 = vpack.c.bf16 %v1516, %v1516
        %v1531 = vpack.c.bf16 %v1520, %v1520
        %v1532 = vpack.c.bf16 %v1522, %v1522
        %vm1533 = vcmask 64512
        %v1535 = vsel %vm1533, %v1469, 0
        %v1538 = vsel %vm1533, %v1497, 0
        %1540 = vmatpush.bf16.xpose.msra.mxu0 0
        %1541 = vmatpush.bf16.xpose.msra.mxu0 0
        %1542 = vmatpush.bf16.xpose.msra.mxu0 0
        %1543 = vmatpush.bf16.xpose.msra.mxu0 0
        %1544 = vmatpush.bf16.xpose.msra.mxu0 0
        %1545 = vmatpush.bf16.xpose.msra.mxu0 0
        %1546 = vmatpush.bf16.xpose.msra.mxu0 0
        %1547 = vmatpush.bf16.xpose.msra.mxu0 %v1538
        %1548 = vmatmul.bf16.gmra.mxu0 %v1535
        %v1549 = vpop.f32.mrf.mxu0
        %v1550 = vadd.f32 0.0, %v1549
        %v1551 = vpop.f32.mrf.mxu0
        %1552 = vdwg.mxu0
        %v1554 = vsel %vm1533, %v1470, 0
        %v1557 = vsel %vm1533, %v1498, 0
        %1559 = vmatpush.bf16.xpose.msra.mxu0 0
        %1560 = vmatpush.bf16.xpose.msra.mxu0 0
        %1561 = vmatpush.bf16.xpose.msra.mxu0 0
        %1562 = vmatpush.bf16.xpose.msra.mxu0 0
        %1563 = vmatpush.bf16.xpose.msra.mxu0 0
        %1564 = vmatpush.bf16.xpose.msra.mxu0 0
        %1565 = vmatpush.bf16.xpose.msra.mxu0 0
        %1566 = vmatpush.bf16.xpose.msra.mxu0 %v1557
        %1567 = vmatmul.bf16.gmra.mxu0 %v1554
        %v1568 = vpop.f32.mrf.mxu0
        %v1569 = vadd.f32 0.0, %v1568
        %v1570 = vpop.f32.mrf.mxu0
        %1571 = vdwg.mxu0
        %v1573 = vsel %vm1533, %v1471, 0
        %v1576 = vsel %vm1533, %v1499, 0
        %1578 = vmatpush.bf16.xpose.msra.mxu0 0
        %1579 = vmatpush.bf16.xpose.msra.mxu0 0
        %1580 = vmatpush.bf16.xpose.msra.mxu0 0
        %1581 = vmatpush.bf16.xpose.msra.mxu0 0
        %1582 = vmatpush.bf16.xpose.msra.mxu0 0
        %1583 = vmatpush.bf16.xpose.msra.mxu0 0
        %1584 = vmatpush.bf16.xpose.msra.mxu0 0
        %1585 = vmatpush.bf16.xpose.msra.mxu0 %v1576
        %1586 = vmatmul.bf16.gmra.mxu0 %v1573
        %v1587 = vpop.f32.mrf.mxu0
        %v1588 = vadd.f32 0.0, %v1587
        %v1589 = vpop.f32.mrf.mxu0
        %1590 = vdwg.mxu0
        %v1592 = vsel %vm1533, %v1472, 0
        %v1595 = vsel %vm1533, %v1500, 0
        %1597 = vmatpush.bf16.xpose.msra.mxu0 0
        %1598 = vmatpush.bf16.xpose.msra.mxu0 0
        %1599 = vmatpush.bf16.xpose.msra.mxu0 0
        %1600 = vmatpush.bf16.xpose.msra.mxu0 0
        %1601 = vmatpush.bf16.xpose.msra.mxu0 0
        %1602 = vmatpush.bf16.xpose.msra.mxu0 0
        %1603 = vmatpush.bf16.xpose.msra.mxu0 0
        %1604 = vmatpush.bf16.xpose.msra.mxu0 %v1595
        %1605 = vmatmul.bf16.gmra.mxu0 %v1592
        %v1606 = vpop.f32.mrf.mxu0
        %v1607 = vadd.f32 0.0, %v1606
        %v1608 = vpop.f32.mrf.mxu0
        %1609 = vdwg.mxu0
        %v1611 = vsel %vm1533, %v1473, 0
        %v1614 = vsel %vm1533, %v1501, 0
        %1616 = vmatpush.bf16.xpose.msra.mxu0 0
        %1617 = vmatpush.bf16.xpose.msra.mxu0 0
        %1618 = vmatpush.bf16.xpose.msra.mxu0 0
        %1619 = vmatpush.bf16.xpose.msra.mxu0 0
        %1620 = vmatpush.bf16.xpose.msra.mxu0 0
        %1621 = vmatpush.bf16.xpose.msra.mxu0 0
        %1622 = vmatpush.bf16.xpose.msra.mxu0 0
        %1623 = vmatpush.bf16.xpose.msra.mxu0 %v1614
        %1624 = vmatmul.bf16.gmra.mxu0 %v1611
        %v1625 = vpop.f32.mrf.mxu0
        %v1626 = vadd.f32 0.0, %v1625
        %v1627 = vpop.f32.mrf.mxu0
        %1628 = vdwg.mxu0
        %v1630 = vsel %vm1533, %v1474, 0
        %v1633 = vsel %vm1533, %v1502, 0
        %1635 = vmatpush.bf16.xpose.msra.mxu0 0
        %1636 = vmatpush.bf16.xpose.msra.mxu0 0
        %1637 = vmatpush.bf16.xpose.msra.mxu0 0
        %1638 = vmatpush.bf16.xpose.msra.mxu0 0
        %1639 = vmatpush.bf16.xpose.msra.mxu0 0
        %1640 = vmatpush.bf16.xpose.msra.mxu0 0
        %1641 = vmatpush.bf16.xpose.msra.mxu0 0
        %1642 = vmatpush.bf16.xpose.msra.mxu0 %v1633
        %1643 = vmatmul.bf16.gmra.mxu0 %v1630
        %v1644 = vpop.f32.mrf.mxu0
        %v1645 = vadd.f32 0.0, %v1644
        %v1646 = vpop.f32.mrf.mxu0
        %1647 = vdwg.mxu0
        %v1649 = vsel %vm1533, %v1475, 0
        %v1652 = vsel %vm1533, %v1503, 0
        %1654 = vmatpush.bf16.xpose.msra.mxu0 0
        %1655 = vmatpush.bf16.xpose.msra.mxu0 0
        %1656 = vmatpush.bf16.xpose.msra.mxu0 0
        %1657 = vmatpush.bf16.xpose.msra.mxu0 0
        %1658 = vmatpush.bf16.xpose.msra.mxu0 0
        %1659 = vmatpush.bf16.xpose.msra.mxu0 0
        %1660 = vmatpush.bf16.xpose.msra.mxu0 0
        %1661 = vmatpush.bf16.xpose.msra.mxu0 %v1652
        %1662 = vmatmul.bf16.gmra.mxu0 %v1649
        %v1663 = vpop.f32.mrf.mxu0
        %v1664 = vadd.f32 0.0, %v1663
        %v1665 = vpop.f32.mrf.mxu0
        %1666 = vdwg.mxu0
        %v1668 = vsel %vm1533, %v1476, 0
        %v1671 = vsel %vm1533, %v1504, 0
        %1673 = vmatpush.bf16.xpose.msra.mxu0 0
        %1674 = vmatpush.bf16.xpose.msra.mxu0 0
        %1675 = vmatpush.bf16.xpose.msra.mxu0 0
        %1676 = vmatpush.bf16.xpose.msra.mxu0 0
        %1677 = vmatpush.bf16.xpose.msra.mxu0 0
        %1678 = vmatpush.bf16.xpose.msra.mxu0 0
        %1679 = vmatpush.bf16.xpose.msra.mxu0 0
        %1680 = vmatpush.bf16.xpose.msra.mxu0 %v1671
        %1681 = vmatmul.bf16.gmra.mxu0 %v1668
        %v1682 = vpop.f32.mrf.mxu0
        %v1683 = vadd.f32 0.0, %v1682
        %v1684 = vpop.f32.mrf.mxu0
        %1685 = vdwg.mxu0
        %v1686 = vld [vmem:[%s1172] sm:$0x1]
        %v1687 = vld [vmem:[%s1172 + $0x1] sm:$0x1]
        %v1688 = vmul.f32 %v1550, 0.35355338
        %v1689 = vmul.f32 %v1569, 0.35355338
        %v1690 = vmul.f32 %v1588, 0.35355338
        %v1691 = vmul.f32 %v1607, 0.35355338
        %v1692 = vmul.f32 %v1626, 0.35355338
        %v1693 = vmul.f32 %v1645, 0.35355338
        %v1694 = vmul.f32 %v1664, 0.35355338
        %v1695 = vmul.f32 %v1683, 0.35355338
        %v1698 = vperm.slane %v1686, 0
        %v1699 = vperm.slane %v1687, 0
        %v1702 = vadd.f32 %v1688, %v1698
        %v1703 = vadd.f32 %v1689, %v1699
        %v1704 = vadd.f32 %v1690, %v1698
        %v1705 = vadd.f32 %v1691, %v1699
        %v1706 = vadd.f32 %v1692, %v1698
        %v1707 = vadd.f32 %v1693, %v1699
        %v1708 = vadd.f32 %v1694, %v1698
        %v1709 = vadd.f32 %v1695, %v1699
        %v1710 = vsel %vm1533, %v1702, -inf
        %1711 = vmax.xlane.f32.xlu0 %v1710
        %v1712 = vpop.xlane.xlu0 %1711
        %v1713 = vsel %vm1533, %v1703, -inf
        %1714 = vmax.xlane.f32.xlu0 %v1713
        %v1715 = vpop.xlane.xlu0 %1714
        %v1716 = vsel %vm1533, %v1704, -inf
        %1717 = vmax.xlane.f32.xlu0 %v1716
        %v1718 = vpop.xlane.xlu0 %1717
        %v1719 = vsel %vm1533, %v1705, -inf
        %1720 = vmax.xlane.f32.xlu0 %v1719
        %v1721 = vpop.xlane.xlu0 %1720
        %v1722 = vsel %vm1533, %v1706, -inf
        %1723 = vmax.xlane.f32.xlu0 %v1722
        %v1724 = vpop.xlane.xlu0 %1723
        %v1725 = vsel %vm1533, %v1707, -inf
        %1726 = vmax.xlane.f32.xlu0 %v1725
        %v1727 = vpop.xlane.xlu0 %1726
        %v1728 = vsel %vm1533, %v1708, -inf
        %1729 = vmax.xlane.f32.xlu0 %v1728
        %v1730 = vpop.xlane.xlu0 %1729
        %v1731 = vsel %vm1533, %v1709, -inf
        %1732 = vmax.xlane.f32.xlu0 %v1731
        %v1733 = vpop.xlane.xlu0 %1732
        %v1734 = vsub.f32 %v1702, %v1712
        %v1735 = vsub.f32 %v1703, %v1715
        %v1736 = vsub.f32 %v1704, %v1718
        %v1737 = vsub.f32 %v1705, %v1721
        %v1738 = vsub.f32 %v1706, %v1724
        %v1739 = vsub.f32 %v1707, %v1727
        %v1740 = vsub.f32 %v1708, %v1730
        %v1741 = vsub.f32 %v1709, %v1733
        %v1742 = vmul.f32 %v1734, 1.442695
        %v1743 = vpow.pop %v1742
        %v1744 = vmul.f32 %v1735, 1.442695
        %v1745 = vpow.pop %v1744
        %v1746 = vmul.f32 %v1736, 1.442695
        %v1747 = vpow.pop %v1746
        %v1748 = vmul.f32 %v1737, 1.442695
        %v1749 = vpow.pop %v1748
        %v1750 = vmul.f32 %v1738, 1.442695
        %v1751 = vpow.pop %v1750
        %v1752 = vmul.f32 %v1739, 1.442695
        %v1753 = vpow.pop %v1752
        %v1754 = vmul.f32 %v1740, 1.442695
        %v1755 = vpow.pop %v1754
        %v1756 = vmul.f32 %v1741, 1.442695
        %v1757 = vpow.pop %v1756
        %v1758 = vsel %vm1533, %v1743, 0.0
        %1759 = vadd.xlane.f32.xlu0 %v1758
        %v1760 = vpop.xlane.xlu0 %1759
        %v1761 = vsel %vm1533, %v1745, 0.0
        %1762 = vadd.xlane.f32.xlu0 %v1761
        %v1763 = vpop.xlane.xlu0 %1762
        %v1764 = vsel %vm1533, %v1747, 0.0
        %1765 = vadd.xlane.f32.xlu0 %v1764
        %v1766 = vpop.xlane.xlu0 %1765
        %v1767 = vsel %vm1533, %v1749, 0.0
        %1768 = vadd.xlane.f32.xlu0 %v1767
        %v1769 = vpop.xlane.xlu0 %1768
        %v1770 = vsel %vm1533, %v1751, 0.0
        %1771 = vadd.xlane.f32.xlu0 %v1770
        %v1772 = vpop.xlane.xlu0 %1771
        %v1773 = vsel %vm1533, %v1753, 0.0
        %1774 = vadd.xlane.f32.xlu0 %v1773
        %v1775 = vpop.xlane.xlu0 %1774
        %v1776 = vsel %vm1533, %v1755, 0.0
        %1777 = vadd.xlane.f32.xlu0 %v1776
        %v1778 = vpop.xlane.xlu0 %1777
        %v1779 = vsel %vm1533, %v1757, 0.0
        %1780 = vadd.xlane.f32.xlu0 %v1779
        %v1781 = vpop.xlane.xlu0 %1780
        %v1782 = vrcp.pop %v1760
        %v1783 = vrcp.pop %v1763
        %v1784 = vrcp.pop %v1766
        %v1785 = vrcp.pop %v1769
        %v1786 = vrcp.pop %v1772
        %v1787 = vrcp.pop %v1775
        %v1788 = vrcp.pop %v1778
        %v1789 = vrcp.pop %v1781
        %v1790 = vmul.f32 %v1743, %v1782
        %v1791 = vmul.f32 %v1745, %v1783
        %v1792 = vmul.f32 %v1747, %v1784
        %v1793 = vmul.f32 %v1749, %v1785
        %v1794 = vmul.f32 %v1751, %v1786
        %v1795 = vmul.f32 %v1753, %v1787
        %v1796 = vmul.f32 %v1755, %v1788
        %v1797 = vmul.f32 %v1757, %v1789
        %v1798 = vpack.c.bf16 %v1790, %v1790
        %v1799 = vpack.c.bf16 %v1791, %v1791
        %v1800 = vpack.c.bf16 %v1792, %v1792
        %v1801 = vpack.c.bf16 %v1793, %v1793
        %v1802 = vpack.c.bf16 %v1794, %v1794
        %v1803 = vpack.c.bf16 %v1795, %v1795
        %v1804 = vpack.c.bf16 %v1796, %v1796
        %v1805 = vpack.c.bf16 %v1797, %v1797
        %v1807 = vsel %vm1533, %v1798, 0
        %vm1809 = vcmask 1043456
        %v1811 = vsel %vm1809, %v1525, 0
        %1813 = vmatpush.bf16.msra.mxu0 0
        %1814 = vmatpush.bf16.msra.mxu0 0
        %1815 = vmatpush.bf16.msra.mxu0 0
        %1816 = vmatpush.bf16.msra.mxu0 0
        %1817 = vmatpush.bf16.msra.mxu0 0
        %1818 = vmatpush.bf16.msra.mxu0 0
        %1819 = vmatpush.bf16.msra.mxu0 0
        %1820 = vmatpush.bf16.msra.mxu0 %v1811
        %1821 = vmatmul.bf16.gmra.mxu0 %v1807
        %v1822 = vpop.f32.mrf.mxu0
        %v1823 = vadd.f32 0.0, %v1822
        %v1824 = vpop.f32.mrf.mxu0
        %1825 = vdwg.mxu0
        %v1827 = vsel %vm1533, %v1799, 0
        %v1830 = vsel %vm1809, %v1526, 0
        %1832 = vmatpush.bf16.msra.mxu0 0
        %1833 = vmatpush.bf16.msra.mxu0 0
        %1834 = vmatpush.bf16.msra.mxu0 0
        %1835 = vmatpush.bf16.msra.mxu0 0
        %1836 = vmatpush.bf16.msra.mxu0 0
        %1837 = vmatpush.bf16.msra.mxu0 0
        %1838 = vmatpush.bf16.msra.mxu0 0
        %1839 = vmatpush.bf16.msra.mxu0 %v1830
        %1840 = vmatmul.bf16.gmra.mxu0 %v1827
        %v1841 = vpop.f32.mrf.mxu0
        %v1842 = vadd.f32 0.0, %v1841
        %v1843 = vpop.f32.mrf.mxu0
        %1844 = vdwg.mxu0
        %v1846 = vsel %vm1533, %v1800, 0
        %v1849 = vsel %vm1809, %v1527, 0
        %1851 = vmatpush.bf16.msra.mxu0 0
        %1852 = vmatpush.bf16.msra.mxu0 0
        %1853 = vmatpush.bf16.msra.mxu0 0
        %1854 = vmatpush.bf16.msra.mxu0 0
        %1855 = vmatpush.bf16.msra.mxu0 0
        %1856 = vmatpush.bf16.msra.mxu0 0
        %1857 = vmatpush.bf16.msra.mxu0 0
        %1858 = vmatpush.bf16.msra.mxu0 %v1849
        %1859 = vmatmul.bf16.gmra.mxu0 %v1846
        %v1860 = vpop.f32.mrf.mxu0
        %v1861 = vadd.f32 0.0, %v1860
        %v1862 = vpop.f32.mrf.mxu0
        %1863 = vdwg.mxu0
        %v1865 = vsel %vm1533, %v1801, 0
        %v1868 = vsel %vm1809, %v1528, 0
        %1870 = vmatpush.bf16.msra.mxu0 0
        %1871 = vmatpush.bf16.msra.mxu0 0
        %1872 = vmatpush.bf16.msra.mxu0 0
        %1873 = vmatpush.bf16.msra.mxu0 0
        %1874 = vmatpush.bf16.msra.mxu0 0
        %1875 = vmatpush.bf16.msra.mxu0 0
        %1876 = vmatpush.bf16.msra.mxu0 0
        %1877 = vmatpush.bf16.msra.mxu0 %v1868
        %1878 = vmatmul.bf16.gmra.mxu0 %v1865
        %v1879 = vpop.f32.mrf.mxu0
        %v1880 = vadd.f32 0.0, %v1879
        %v1881 = vpop.f32.mrf.mxu0
        %1882 = vdwg.mxu0
        %v1884 = vsel %vm1533, %v1802, 0
        %v1887 = vsel %vm1809, %v1529, 0
        %1889 = vmatpush.bf16.msra.mxu0 0
        %1890 = vmatpush.bf16.msra.mxu0 0
        %1891 = vmatpush.bf16.msra.mxu0 0
        %1892 = vmatpush.bf16.msra.mxu0 0
        %1893 = vmatpush.bf16.msra.mxu0 0
        %1894 = vmatpush.bf16.msra.mxu0 0
        %1895 = vmatpush.bf16.msra.mxu0 0
        %1896 = vmatpush.bf16.msra.mxu0 %v1887
        %1897 = vmatmul.bf16.gmra.mxu0 %v1884
        %v1898 = vpop.f32.mrf.mxu0
        %v1899 = vadd.f32 0.0, %v1898
        %v1900 = vpop.f32.mrf.mxu0
        %1901 = vdwg.mxu0
        %v1903 = vsel %vm1533, %v1803, 0
        %v1906 = vsel %vm1809, %v1530, 0
        %1908 = vmatpush.bf16.msra.mxu0 0
        %1909 = vmatpush.bf16.msra.mxu0 0
        %1910 = vmatpush.bf16.msra.mxu0 0
        %1911 = vmatpush.bf16.msra.mxu0 0
        %1912 = vmatpush.bf16.msra.mxu0 0
        %1913 = vmatpush.bf16.msra.mxu0 0
        %1914 = vmatpush.bf16.msra.mxu0 0
        %1915 = vmatpush.bf16.msra.mxu0 %v1906
        %1916 = vmatmul.bf16.gmra.mxu0 %v1903
        %v1917 = vpop.f32.mrf.mxu0
        %v1918 = vadd.f32 0.0, %v1917
        %v1919 = vpop.f32.mrf.mxu0
        %1920 = vdwg.mxu0
        %v1922 = vsel %vm1533, %v1804, 0
        %v1925 = vsel %vm1809, %v1531, 0
        %1927 = vmatpush.bf16.msra.mxu0 0
        %1928 = vmatpush.bf16.msra.mxu0 0
        %1929 = vmatpush.bf16.msra.mxu0 0
        %1930 = vmatpush.bf16.msra.mxu0 0
        %1931 = vmatpush.bf16.msra.mxu0 0
        %1932 = vmatpush.bf16.msra.mxu0 0
        %1933 = vmatpush.bf16.msra.mxu0 0
        %1934 = vmatpush.bf16.msra.mxu0 %v1925
        %1935 = vmatmul.bf16.gmra.mxu0 %v1922
        %v1936 = vpop.f32.mrf.mxu0
        %v1937 = vadd.f32 0.0, %v1936
        %v1938 = vpop.f32.mrf.mxu0
        %1939 = vdwg.mxu0
        %v1941 = vsel %vm1533, %v1805, 0
        %v1944 = vsel %vm1809, %v1532, 0
        %1946 = vmatpush.bf16.msra.mxu0 0
        %1947 = vmatpush.bf16.msra.mxu0 0
        %1948 = vmatpush.bf16.msra.mxu0 0
        %1949 = vmatpush.bf16.msra.mxu0 0
        %1950 = vmatpush.bf16.msra.mxu0 0
        %1951 = vmatpush.bf16.msra.mxu0 0
        %1952 = vmatpush.bf16.msra.mxu0 0
        %1953 = vmatpush.bf16.msra.mxu0 %v1944
        %1954 = vmatmul.bf16.gmra.mxu0 %v1941
        %v1955 = vpop.f32.mrf.mxu0
        %v1956 = vadd.f32 0.0, %v1955
        %v1957 = vpop.f32.mrf.mxu0
        %1958 = vdwg.mxu0
        %1961 = vrot.lane.b32.xlu0 %v1861, 8
        %v1962 = vpop.permute.xlu0 %1961
        %1963 = vrot.lane.b32.xlu0 %v1880, 8
        %v1964 = vpop.permute.xlu0 %1963
        %1969 = vrot.lane.b32.xlu0 %v1899, 16
        %v1970 = vpop.permute.xlu0 %1969
        %1971 = vrot.lane.b32.xlu0 %v1918, 16
        %v1972 = vpop.permute.xlu0 %1971
        %1977 = vrot.lane.b32.xlu0 %v1937, 24
        %v1978 = vpop.permute.xlu0 %1977
        %1979 = vrot.lane.b32.xlu0 %v1956, 24
        %v1980 = vpop.permute.xlu0 %1979
        %v1983 = vsel %vm1533, %v1823, %v1962
        %v1984 = vsel %vm1533, %v1842, %v1964
        %vm1985 = vcmask 130048
        %v1986 = vsel %vm1985, %v1983, %v1970
        %v1987 = vsel %vm1985, %v1984, %v1972
        %vm1988 = vcmask 195584
        %v1989 = vsel %vm1988, %v1986, %v1978
        %v1990 = vsel %vm1988, %v1987, %v1980
        %v1991 = vpack.c.bf16 %v1990, %v1989
        %v1992 = vld [vmem:[%s1202] sm:$0xf]
        %v1993 = vld [vmem:[%s1202 + $0x4] sm:$0xf]
        %v1994 = vld [vmem:[%s1202 + $0x8] sm:$0xf]
        %v1995 = vld [vmem:[%s1202 + $0xc] sm:$0xf]
        %v1996 = vld [vmem:[%s1205] sm:$0x1]
        %v1998 = vperm.slane %v1996, 0
        %v2004 = vunpack.c.l.b16 %v1992
        %v2005 = vunpack.c.l.b16 %v1993
        %v2006 = vunpack.c.l.b16 %v1994
        %v2007 = vunpack.c.l.b16 %v1995
        %v2008 = vpack.c.b16 %v2005, %v2004
        %v2009 = vpack.c.b16 %v2007, %v2006
        %v2013 = vsel %vm1363, %v1991, 0
        %2015 = vmatpush.bf16.msra.mxu0 0
        %2016 = vmatpush.bf16.msra.mxu0 0
        %2017 = vmatpush.bf16.msra.mxu0 0
        %2018 = vmatpush.bf16.msra.mxu0 0
        %2019 = vmatpush.bf16.msra.mxu0 0
        %2020 = vmatpush.bf16.msra.mxu0 0
        %2021 = vmatpush.bf16.msra.mxu0 %v2009
        %2022 = vmatpush.bf16.msra.mxu0 %v2008
        %2023 = vmatmul.bf16.gmra.mxu0 %v2013
        %v2024 = vpop.f32.mrf.mxu0
        %v2025 = vadd.f32 %v1998, %v2024
        %v2026 = vpop.f32.mrf.mxu0
        %v2027 = vadd.f32 %v1998, %v2026
        %2028 = vdwg.mxu0
        %v2029 = vld [vmem:[%s1210] sm:$0xf]
        %v2030 = vld [vmem:[%s1210 + $0x4] sm:$0xf]
        %v2031 = vld [vmem:[%s1210 + $0x8] sm:$0xf]
        %v2032 = vld [vmem:[%s1210 + $0xc] sm:$0xf]
        %v2033 = vld [vmem:[%s1213] sm:$0x1]
        %v2034 = vld [vmem:[%s1218] sm:$0xf]
        %v2035 = vld [vmem:[%s1218 + $0x4] sm:$0xf]
        %v2036 = vld [vmem:[%s1218 + $0x8] sm:$0xf]
        %v2037 = vld [vmem:[%s1218 + $0xc] sm:$0xf]
        %v2038 = vld [vmem:[%s1218 + $0x10] sm:$0xf]
        %v2039 = vld [vmem:[%s1218 + $0x14] sm:$0xf]
        %v2040 = vld [vmem:[%s1218 + $0x18] sm:$0xf]
        %v2041 = vld [vmem:[%s1218 + $0x1c] sm:$0xf]
        %v2042 = vld [vmem:[%s1218 + $0x20] sm:$0xf]
        %v2043 = vld [vmem:[%s1218 + $0x24] sm:$0xf]
        %v2044 = vld [vmem:[%s1218 + $0x28] sm:$0xf]
        %v2045 = vld [vmem:[%s1218 + $0x2c] sm:$0xf]
        %v2046 = vld [vmem:[%s1218 + $0x30] sm:$0xf]
        %v2047 = vld [vmem:[%s1218 + $0x34] sm:$0xf]
        %v2048 = vld [vmem:[%s1218 + $0x38] sm:$0xf]
        %v2049 = vld [vmem:[%s1218 + $0x3c] sm:$0xf]
        %v2050 = vld [vmem:[%s1221] sm:$0x1]
        %v2051 = vpack.c.bf16 %v2027, %v2025
        %v2053 = vperm.slane %v2033, 0
        %v2059 = vunpack.c.l.b16 %v2029
        %v2060 = vunpack.c.l.b16 %v2030
        %v2061 = vunpack.c.l.b16 %v2031
        %v2062 = vunpack.c.l.b16 %v2032
        %v2063 = vpack.c.b16 %v2060, %v2059
        %v2064 = vpack.c.b16 %v2062, %v2061
        %v2068 = vsel %vm1363, %v2051, 0
        %2070 = vmatpush.bf16.msra.mxu0 0
        %2071 = vmatpush.bf16.msra.mxu0 0
        %2072 = vmatpush.bf16.msra.mxu0 0
        %2073 = vmatpush.bf16.msra.mxu0 0
        %2074 = vmatpush.bf16.msra.mxu0 0
        %2075 = vmatpush.bf16.msra.mxu0 0
        %2076 = vmatpush.bf16.msra.mxu0 %v2064
        %2077 = vmatpush.bf16.msra.mxu0 %v2063
        %2078 = vmatmul.bf16.gmra.mxu0 %v2068
        %v2079 = vpop.f32.mrf.mxu0
        %v2080 = vadd.f32 %v2053, %v2079
        %v2081 = vpop.f32.mrf.mxu0
        %v2082 = vadd.f32 %v2053, %v2081
        %2083 = vdwg.mxu0
        %v2084 = vmul.f32 %v2080, 0.5
        %v2085 = vmul.f32 %v2082, 0.5
        %v2086 = vmul.f32 %v2080, 0.70710677
        %v2087 = vmul.f32 %v2082, 0.70710677
        %v2088 = vmul.f32 %v2086, %v2086
        %v2089 = vmin.f32 16.0, %v2088
        %v2090 = vmul.f32 %v2089, 2.1237322e-06
        %v2091 = vadd.f32 %v2090, 0.00028619796
        %v2092 = vmul.f32 %v2089, %v2091
        %v2093 = vadd.f32 %v2092, 0.0036580483
        %v2094 = vmul.f32 %v2089, %v2093
        %v2095 = vadd.f32 %v2094, 0.05243302
        %v2096 = vmul.f32 %v2089, %v2095
        %v2097 = vadd.f32 %v2096, 0.18741608
        %v2098 = vmul.f32 %v2089, %v2097
        %v2099 = vadd.f32 %v2098, 1.1283791
        %v2100 = vmul.f32 %v2086, %v2099
        %v2101 = vmul.f32 %v2089, 3.8918573e-05
        %v2102 = vadd.f32 %v2101, 0.001143296
        %v2103 = vmul.f32 %v2089, %v2102
        %v2104 = vadd.f32 %v2103, 0.014752088
        %v2105 = vmul.f32 %v2089, %v2104
        %v2106 = vadd.f32 %v2105, 0.112945676
        %v2107 = vmul.f32 %v2089, %v2106
        %v2108 = vadd.f32 %v2107, 0.4994258
        %v2109 = vmul.f32 %v2089, %v2108
        %v2110 = vadd.f32 %v2109, 1.0
        %v2111 = vrcp.pop %v2110
        %v2112 = vmul.f32 %v2110, %v2111
        %v2113 = vsub.f32 1.0, %v2112
        %v2114 = vmul.f32 %v2111, %v2113
        %v2115 = vadd.f32 %v2111, %v2114
        %vm2116 = vweird.f32 %v2110
        %vm2117 = vweird.f32 %v2111
        %vm2118 = vmor %vm2116, %vm2117
        %v2119 = vsel %vm2118, %v2111, %v2115
        %v2120 = vand.u32 2147483647, %v2110
        %vm2121 = vcmp.eq.f32.partialorder %v2120, 8.507059e+37
        %v2122 = vand.u32 %v2110, 2147483648
        %v2123 = vor.u32 1.1754944e-38, %v2122
        %v2124 = vsel %vm2121, %v2123, %v2119
        %v2125 = vmul.f32 %v2100, %v2124
        %v2126 = vmin.f32 %v2125, 1.0
        %v2127 = vmax.f32 %v2126, -1.0
        %v2128 = vmul.f32 %v2087, %v2087
        %v2129 = vmin.f32 16.0, %v2128
        %v2130 = vmul.f32 %v2129, 2.1237322e-06
        %v2131 = vadd.f32 %v2130, 0.00028619796
        %v2132 = vmul.f32 %v2129, %v2131
        %v2133 = vadd.f32 %v2132, 0.0036580483
        %v2134 = vmul.f32 %v2129, %v2133
        %v2135 = vadd.f32 %v2134, 0.05243302
        %v2136 = vmul.f32 %v2129, %v2135
        %v2137 = vadd.f32 %v2136, 0.18741608
        %v2138 = vmul.f32 %v2129, %v2137
        %v2139 = vadd.f32 %v2138, 1.1283791
        %v2140 = vmul.f32 %v2087, %v2139
        %v2141 = vmul.f32 %v2129, 3.8918573e-05
        %v2142 = vadd.f32 %v2141, 0.001143296
        %v2143 = vmul.f32 %v2129, %v2142
        %v2144 = vadd.f32 %v2143, 0.014752088
        %v2145 = vmul.f32 %v2129, %v2144
        %v2146 = vadd.f32 %v2145, 0.112945676
        %v2147 = vmul.f32 %v2129, %v2146
        %v2148 = vadd.f32 %v2147, 0.4994258
        %v2149 = vmul.f32 %v2129, %v2148
        %v2150 = vadd.f32 %v2149, 1.0
        %v2151 = vrcp.pop %v2150
        %v2152 = vmul.f32 %v2150, %v2151
        %v2153 = vsub.f32 1.0, %v2152
        %v2154 = vmul.f32 %v2151, %v2153
        %v2155 = vadd.f32 %v2151, %v2154
        %vm2156 = vweird.f32 %v2150
        %vm2157 = vweird.f32 %v2151
        %vm2158 = vmor %vm2156, %vm2157
        %v2159 = vsel %vm2158, %v2151, %v2155
        %v2160 = vand.u32 2147483647, %v2150
        %vm2161 = vcmp.eq.f32.partialorder %v2160, 8.507059e+37
        %v2162 = vand.u32 %v2150, 2147483648
        %v2163 = vor.u32 1.1754944e-38, %v2162
        %v2164 = vsel %vm2161, %v2163, %v2159
        %v2165 = vmul.f32 %v2140, %v2164
        %v2166 = vmin.f32 %v2165, 1.0
        %v2167 = vmax.f32 %v2166, -1.0
        %v2168 = vadd.f32 %v2127, 1.0
        %v2169 = vadd.f32 %v2167, 1.0
        %v2170 = vmul.f32 %v2084, %v2168
        %v2171 = vmul.f32 %v2085, %v2169
        %v2172 = vpack.c.bf16 %v2171, %v2170
        %v2174 = vperm.slane %v2050, 0
        %v2192 = vunpack.c.l.b16 %v2034
        %v2193 = vunpack.c.l.b16 %v2035
        %v2194 = vunpack.c.l.b16 %v2036
        %v2195 = vunpack.c.l.b16 %v2037
        %v2196 = vunpack.c.l.b16 %v2038
        %v2197 = vunpack.c.l.b16 %v2039
        %v2198 = vunpack.c.l.b16 %v2040
        %v2199 = vunpack.c.l.b16 %v2041
        %v2200 = vunpack.c.l.b16 %v2042
        %v2201 = vunpack.c.l.b16 %v2043
        %v2202 = vunpack.c.l.b16 %v2044
        %v2203 = vunpack.c.l.b16 %v2045
        %v2204 = vunpack.c.l.b16 %v2046
        %v2205 = vunpack.c.l.b16 %v2047
        %v2206 = vunpack.c.l.b16 %v2048
        %v2207 = vunpack.c.l.b16 %v2049
        %v2208 = vpack.c.b16 %v2193, %v2192
        %v2209 = vpack.c.b16 %v2195, %v2194
        %v2210 = vpack.c.b16 %v2197, %v2196
        %v2211 = vpack.c.b16 %v2199, %v2198
        %v2212 = vpack.c.b16 %v2201, %v2200
        %v2213 = vpack.c.b16 %v2203, %v2202
        %v2214 = vpack.c.b16 %v2205, %v2204
        %v2215 = vpack.c.b16 %v2207, %v2206
        %2224 = vmatpush.bf16.msra.mxu0 %v2215
        %2225 = vmatpush.bf16.msra.mxu0 %v2214
        %2226 = vmatpush.bf16.msra.mxu0 %v2213
        %2227 = vmatpush.bf16.msra.mxu0 %v2212
        %2228 = vmatpush.bf16.msra.mxu0 %v2211
        %2229 = vmatpush.bf16.msra.mxu0 %v2210
        %2230 = vmatpush.bf16.msra.mxu0 %v2209
        %2231 = vmatpush.bf16.msra.mxu0 %v2208
        %2232 = vmatmul.bf16.gmra.mxu0 %v2172
        %v2233 = vpop.f32.mrf.mxu0
        %v2234 = vadd.f32 %v2174, %v2233
        %v2235 = vpop.f32.mrf.mxu0
        %v2236 = vadd.f32 %v2174, %v2235
        %2237 = vdwg.mxu0
        %v2238 = vadd.f32 %v2234, %v2025
        %v2239 = vadd.f32 %v2236, %v2027
        %v2240 = vadd.f32 %v2238, %v1340
        %v2241 = vadd.f32 %v2239, %v1341
        %v2242 = vld [vmem:[%s1224] sm:$0x1]
        %v2243 = vld [vmem:[%s1227] sm:$0x1]
        %v2244 = vsel %vm1363, %v2240, 0.0
        %2245 = vadd.xlane.f32.xlu0 %v2244
        %v2246 = vpop.xlane.xlu0 %2245
        %v2247 = vsel %vm1363, %v2241, 0.0
        %2248 = vadd.xlane.f32.xlu0 %v2247
        %v2249 = vpop.xlane.xlu0 %2248
        %v2250 = vrcp.pop 32.0
        %v2251 = vmul.f32 32.0, %v2250
        %v2252 = vsub.f32 1.0, %v2251
        %v2253 = vmul.f32 %v2250, %v2252
        %v2254 = vadd.f32 %v2250, %v2253
        %vm2255 = vweird.f32 %v2250
        %v2256 = vsel %vm2255, %v2250, %v2254
        %v2257 = vmul.f32 %v2246, %v2256
        %v2258 = vmul.f32 %v2249, %v2256
        %v2259 = vsub.f32 %v2240, %v2257
        %v2260 = vsub.f32 %v2241, %v2258
        %v2261 = vmul.f32 %v2259, %v2259
        %v2262 = vmul.f32 %v2260, %v2260
        %v2263 = vsel %vm1363, %v2261, 0.0
        %2264 = vadd.xlane.f32.xlu0 %v2263
        %v2265 = vpop.xlane.xlu0 %2264
        %v2266 = vsel %vm1363, %v2262, 0.0
        %2267 = vadd.xlane.f32.xlu0 %v2266
        %v2268 = vpop.xlane.xlu0 %2267
        %v2269 = vmul.f32 %v2265, %v2256
        %v2270 = vmul.f32 %v2268, %v2256
        %v2271 = vadd.f32 %v2269, 1e-12
        %v2272 = vadd.f32 %v2270, 1e-12
        %v2273 = vrsqrt.pop %v2271
        %v2274 = vmul.f32 %v2273, %v2271
        %v2275 = vmul.f32 %v2274, %v2273
        %v2276 = vmul.f32 0.5, %v2275
        %v2277 = vsub.f32 1.5, %v2276
        %v2278 = vmul.f32 %v2273, %v2277
        %vm2279 = vweird.f32 %v2271
        %vm2280 = vweird.f32 %v2273
        %vm2281 = vmor %vm2279, %vm2280
        %v2282 = vsel %vm2281, %v2273, %v2278
        %v2283 = vrsqrt.pop %v2272
        %v2284 = vmul.f32 %v2283, %v2272
        %v2285 = vmul.f32 %v2284, %v2283
        %v2286 = vmul.f32 0.5, %v2285
        %v2287 = vsub.f32 1.5, %v2286
        %v2288 = vmul.f32 %v2283, %v2287
        %vm2289 = vweird.f32 %v2272
        %vm2290 = vweird.f32 %v2283
        %vm2291 = vmor %vm2289, %vm2290
        %v2292 = vsel %vm2291, %v2283, %v2288
        %v2293 = vmul.f32 %v2259, %v2282
        %v2294 = vmul.f32 %v2260, %v2292
        %v2296 = vperm.slane %v2242, 0
        %v2298 = vmul.f32 %v2293, %v2296
        %v2299 = vmul.f32 %v2294, %v2296
        %v2301 = vperm.slane %v2243, 0
        %v2303 = vadd.f32 %v2298, %v2301
        %v2304 = vadd.f32 %v2299, %v2301
        %v2305 = vpack.c.bf16 %v2304, %v2303
        %v2306 = vld [vmem:[%s1232] sm:$0xf]
        %v2307 = vld [vmem:[%s1232 + $0x4] sm:$0xf]
        %v2308 = vld [vmem:[%s1232 + $0x8] sm:$0xf]
        %v2309 = vld [vmem:[%s1232 + $0xc] sm:$0xf]
        %v2310 = vld [vmem:[%s1235] sm:$0x1]
        %v2312 = vperm.slane %v2310, 0
        %v2318 = vunpack.c.l.b16 %v2306
        %v2319 = vunpack.c.l.b16 %v2307
        %v2320 = vunpack.c.l.b16 %v2308
        %v2321 = vunpack.c.l.b16 %v2309
        %v2322 = vpack.c.b16 %v2319, %v2318
        %v2323 = vpack.c.b16 %v2321, %v2320
        %v2327 = vsel %vm1363, %v2305, 0
        %2329 = vmatpush.bf16.msra.mxu0 0
        %2330 = vmatpush.bf16.msra.mxu0 0
        %2331 = vmatpush.bf16.msra.mxu0 0
        %2332 = vmatpush.bf16.msra.mxu0 0
        %2333 = vmatpush.bf16.msra.mxu0 0
        %2334 = vmatpush.bf16.msra.mxu0 0
        %2335 = vmatpush.bf16.msra.mxu0 %v2323
        %2336 = vmatpush.bf16.msra.mxu0 %v2322
        %2337 = vmatmul.bf16.gmra.mxu0 %v2327
        %v2338 = vpop.f32.mrf.mxu0
        %v2339 = vadd.f32 %v2312, %v2338
        %v2340 = vpop.f32.mrf.mxu0
        %v2341 = vadd.f32 %v2312, %v2340
        %2342 = vdwg.mxu0
        %v2343 = vmul.f32 %v2339, 0.5
        %v2344 = vmul.f32 %v2341, 0.5
        %v2345 = vmul.f32 %v2339, 0.70710677
        %v2346 = vmul.f32 %v2341, 0.70710677
        %v2347 = vmul.f32 %v2345, %v2345
        %v2348 = vmin.f32 16.0, %v2347
        %v2349 = vmul.f32 %v2348, 2.1237322e-06
        %v2350 = vadd.f32 %v2349, 0.00028619796
        %v2351 = vmul.f32 %v2348, %v2350
        %v2352 = vadd.f32 %v2351, 0.0036580483
        %v2353 = vmul.f32 %v2348, %v2352
        %v2354 = vadd.f32 %v2353, 0.05243302
        %v2355 = vmul.f32 %v2348, %v2354
        %v2356 = vadd.f32 %v2355, 0.18741608
        %v2357 = vmul.f32 %v2348, %v2356
        %v2358 = vadd.f32 %v2357, 1.1283791
        %v2359 = vmul.f32 %v2345, %v2358
        %v2360 = vmul.f32 %v2348, 3.8918573e-05
        %v2361 = vadd.f32 %v2360, 0.001143296
        %v2362 = vmul.f32 %v2348, %v2361
        %v2363 = vadd.f32 %v2362, 0.014752088
        %v2364 = vmul.f32 %v2348, %v2363
        %v2365 = vadd.f32 %v2364, 0.112945676
        %v2366 = vmul.f32 %v2348, %v2365
        %v2367 = vadd.f32 %v2366, 0.4994258
        %v2368 = vmul.f32 %v2348, %v2367
        %v2369 = vadd.f32 %v2368, 1.0
        %v2370 = vrcp.pop %v2369
        %v2371 = vmul.f32 %v2369, %v2370
        %v2372 = vsub.f32 1.0, %v2371
        %v2373 = vmul.f32 %v2370, %v2372
        %v2374 = vadd.f32 %v2370, %v2373
        %vm2375 = vweird.f32 %v2369
        %vm2376 = vweird.f32 %v2370
        %vm2377 = vmor %vm2375, %vm2376
        %v2378 = vsel %vm2377, %v2370, %v2374
        %v2379 = vand.u32 2147483647, %v2369
        %vm2380 = vcmp.eq.f32.partialorder %v2379, 8.507059e+37
        %v2381 = vand.u32 %v2369, 2147483648
        %v2382 = vor.u32 1.1754944e-38, %v2381
        %v2383 = vsel %vm2380, %v2382, %v2378
        %v2384 = vmul.f32 %v2359, %v2383
        %v2385 = vmin.f32 %v2384, 1.0
        %v2386 = vmax.f32 %v2385, -1.0
        %v2387 = vmul.f32 %v2346, %v2346
        %v2388 = vmin.f32 16.0, %v2387
        %v2389 = vmul.f32 %v2388, 2.1237322e-06
        %v2390 = vadd.f32 %v2389, 0.00028619796
        %v2391 = vmul.f32 %v2388, %v2390
        %v2392 = vadd.f32 %v2391, 0.0036580483
        %v2393 = vmul.f32 %v2388, %v2392
        %v2394 = vadd.f32 %v2393, 0.05243302
        %v2395 = vmul.f32 %v2388, %v2394
        %v2396 = vadd.f32 %v2395, 0.18741608
        %v2397 = vmul.f32 %v2388, %v2396
        %v2398 = vadd.f32 %v2397, 1.1283791
        %v2399 = vmul.f32 %v2346, %v2398
        %v2400 = vmul.f32 %v2388, 3.8918573e-05
        %v2401 = vadd.f32 %v2400, 0.001143296
        %v2402 = vmul.f32 %v2388, %v2401
        %v2403 = vadd.f32 %v2402, 0.014752088
        %v2404 = vmul.f32 %v2388, %v2403
        %v2405 = vadd.f32 %v2404, 0.112945676
        %v2406 = vmul.f32 %v2388, %v2405
        %v2407 = vadd.f32 %v2406, 0.4994258
        %v2408 = vmul.f32 %v2388, %v2407
        %v2409 = vadd.f32 %v2408, 1.0
        %v2410 = vrcp.pop %v2409
        %v2411 = vmul.f32 %v2409, %v2410
        %v2412 = vsub.f32 1.0, %v2411
        %v2413 = vmul.f32 %v2410, %v2412
        %v2414 = vadd.f32 %v2410, %v2413
        %vm2415 = vweird.f32 %v2409
        %vm2416 = vweird.f32 %v2410
        %vm2417 = vmor %vm2415, %vm2416
        %v2418 = vsel %vm2417, %v2410, %v2414
        %v2419 = vand.u32 2147483647, %v2409
        %vm2420 = vcmp.eq.f32.partialorder %v2419, 8.507059e+37
        %v2421 = vand.u32 %v2409, 2147483648
        %v2422 = vor.u32 1.1754944e-38, %v2421
        %v2423 = vsel %vm2420, %v2422, %v2418
        %v2424 = vmul.f32 %v2399, %v2423
        %v2425 = vmin.f32 %v2424, 1.0
        %v2426 = vmax.f32 %v2425, -1.0
        %v2427 = vadd.f32 %v2386, 1.0
        %v2428 = vadd.f32 %v2426, 1.0
        %v2429 = vmul.f32 %v2343, %v2427
        %v2430 = vmul.f32 %v2344, %v2428
        %v2431 = vpack.c.bf16 %v2430, %v2429
        %v2432 = vld [vmem:[%s1240] sm:$0xf]
        %v2433 = vld [vmem:[%s1240 + $0x4] sm:$0xf]
        %v2434 = vld [vmem:[%s1240 + $0x8] sm:$0xf]
        %v2435 = vld [vmem:[%s1240 + $0xc] sm:$0xf]
        %v2436 = vld [vmem:[%s1240 + $0x10] sm:$0xf]
        %v2437 = vld [vmem:[%s1240 + $0x14] sm:$0xf]
        %v2438 = vld [vmem:[%s1240 + $0x18] sm:$0xf]
        %v2439 = vld [vmem:[%s1240 + $0x1c] sm:$0xf]
        %v2440 = vld [vmem:[%s1240 + $0x20] sm:$0xf]
        %v2441 = vld [vmem:[%s1240 + $0x24] sm:$0xf]
        %v2442 = vld [vmem:[%s1240 + $0x28] sm:$0xf]
        %v2443 = vld [vmem:[%s1240 + $0x2c] sm:$0xf]
        %v2444 = vld [vmem:[%s1240 + $0x30] sm:$0xf]
        %v2445 = vld [vmem:[%s1240 + $0x34] sm:$0xf]
        %v2446 = vld [vmem:[%s1240 + $0x38] sm:$0xf]
        %v2447 = vld [vmem:[%s1240 + $0x3c] sm:$0xf]
        %v2448 = vld [vmem:[%s1243] sm:$0x1]
        %v2450 = vperm.slane %v2448, 0
        %v2468 = vunpack.c.l.b16 %v2432
        %v2469 = vunpack.c.l.b16 %v2433
        %v2470 = vunpack.c.l.b16 %v2434
        %v2471 = vunpack.c.l.b16 %v2435
        %v2472 = vunpack.c.l.b16 %v2436
        %v2473 = vunpack.c.l.b16 %v2437
        %v2474 = vunpack.c.l.b16 %v2438
        %v2475 = vunpack.c.l.b16 %v2439
        %v2476 = vunpack.c.l.b16 %v2440
        %v2477 = vunpack.c.l.b16 %v2441
        %v2478 = vunpack.c.l.b16 %v2442
        %v2479 = vunpack.c.l.b16 %v2443
        %v2480 = vunpack.c.l.b16 %v2444
        %v2481 = vunpack.c.l.b16 %v2445
        %v2482 = vunpack.c.l.b16 %v2446
        %v2483 = vunpack.c.l.b16 %v2447
        %v2484 = vpack.c.b16 %v2469, %v2468
        %v2485 = vpack.c.b16 %v2471, %v2470
        %v2486 = vpack.c.b16 %v2473, %v2472
        %v2487 = vpack.c.b16 %v2475, %v2474
        %v2488 = vpack.c.b16 %v2477, %v2476
        %v2489 = vpack.c.b16 %v2479, %v2478
        %v2490 = vpack.c.b16 %v2481, %v2480
        %v2491 = vpack.c.b16 %v2483, %v2482
        %2500 = vmatpush.bf16.msra.mxu0 %v2491
        %2501 = vmatpush.bf16.msra.mxu0 %v2490
        %2502 = vmatpush.bf16.msra.mxu0 %v2489
        %2503 = vmatpush.bf16.msra.mxu0 %v2488
        %2504 = vmatpush.bf16.msra.mxu0 %v2487
        %2505 = vmatpush.bf16.msra.mxu0 %v2486
        %2506 = vmatpush.bf16.msra.mxu0 %v2485
        %2507 = vmatpush.bf16.msra.mxu0 %v2484
        %2508 = vmatmul.bf16.gmra.mxu0 %v2431
        %v2509 = vpop.f32.mrf.mxu0
        %v2510 = vadd.f32 %v2450, %v2509
        %v2511 = vpop.f32.mrf.mxu0
        %v2512 = vadd.f32 %v2450, %v2511
        %2513 = vdwg.mxu0
        %v2514 = vld [vmem:[%s1248] sm:$0xf]
        %v2515 = vld [vmem:[%s1248 + $0x4] sm:$0xf]
        %v2516 = vld [vmem:[%s1248 + $0x8] sm:$0xf]
        %v2517 = vld [vmem:[%s1248 + $0xc] sm:$0xf]
        %v2518 = vld [vmem:[%s1251] sm:$0x1]
        %v2519 = vld [vmem:[%s1256] sm:$0xf]
        %v2520 = vld [vmem:[%s1256 + $0x4] sm:$0xf]
        %v2521 = vld [vmem:[%s1256 + $0x8] sm:$0xf]
        %v2522 = vld [vmem:[%s1256 + $0xc] sm:$0xf]
        %v2523 = vld [vmem:[%s1256 + $0x10] sm:$0xf]
        %v2524 = vld [vmem:[%s1256 + $0x14] sm:$0xf]
        %v2525 = vld [vmem:[%s1256 + $0x18] sm:$0xf]
        %v2526 = vld [vmem:[%s1256 + $0x1c] sm:$0xf]
        %v2527 = vld [vmem:[%s1256 + $0x20] sm:$0xf]
        %v2528 = vld [vmem:[%s1256 + $0x24] sm:$0xf]
        %v2529 = vld [vmem:[%s1256 + $0x28] sm:$0xf]
        %v2530 = vld [vmem:[%s1256 + $0x2c] sm:$0xf]
        %v2531 = vld [vmem:[%s1256 + $0x30] sm:$0xf]
        %v2532 = vld [vmem:[%s1256 + $0x34] sm:$0xf]
        %v2533 = vld [vmem:[%s1256 + $0x38] sm:$0xf]
        %v2534 = vld [vmem:[%s1256 + $0x3c] sm:$0xf]
        %v2535 = vld [vmem:[%s1259] sm:$0x1]
        %v2536 = vpack.c.bf16 %v2512, %v2510
        %v2538 = vperm.slane %v2518, 0
        %v2544 = vunpack.c.l.b16 %v2514
        %v2545 = vunpack.c.l.b16 %v2515
        %v2546 = vunpack.c.l.b16 %v2516
        %v2547 = vunpack.c.l.b16 %v2517
        %v2548 = vpack.c.b16 %v2545, %v2544
        %v2549 = vpack.c.b16 %v2547, %v2546
        %v2553 = vsel %vm1363, %v2536, 0
        %2555 = vmatpush.bf16.msra.mxu0 0
        %2556 = vmatpush.bf16.msra.mxu0 0
        %2557 = vmatpush.bf16.msra.mxu0 0
        %2558 = vmatpush.bf16.msra.mxu0 0
        %2559 = vmatpush.bf16.msra.mxu0 0
        %2560 = vmatpush.bf16.msra.mxu0 0
        %2561 = vmatpush.bf16.msra.mxu0 %v2549
        %2562 = vmatpush.bf16.msra.mxu0 %v2548
        %2563 = vmatmul.bf16.gmra.mxu0 %v2553
        %v2564 = vpop.f32.mrf.mxu0
        %v2565 = vadd.f32 %v2538, %v2564
        %v2566 = vpop.f32.mrf.mxu0
        %v2567 = vadd.f32 %v2538, %v2566
        %2568 = vdwg.mxu0
        %v2569 = vmul.f32 %v2565, 0.5
        %v2570 = vmul.f32 %v2567, 0.5
        %v2571 = vmul.f32 %v2565, 0.70710677
        %v2572 = vmul.f32 %v2567, 0.70710677
        %v2573 = vmul.f32 %v2571, %v2571
        %v2574 = vmin.f32 16.0, %v2573
        %v2575 = vmul.f32 %v2574, 2.1237322e-06
        %v2576 = vadd.f32 %v2575, 0.00028619796
        %v2577 = vmul.f32 %v2574, %v2576
        %v2578 = vadd.f32 %v2577, 0.0036580483
        %v2579 = vmul.f32 %v2574, %v2578
        %v2580 = vadd.f32 %v2579, 0.05243302
        %v2581 = vmul.f32 %v2574, %v2580
        %v2582 = vadd.f32 %v2581, 0.18741608
        %v2583 = vmul.f32 %v2574, %v2582
        %v2584 = vadd.f32 %v2583, 1.1283791
        %v2585 = vmul.f32 %v2571, %v2584
        %v2586 = vmul.f32 %v2574, 3.8918573e-05
        %v2587 = vadd.f32 %v2586, 0.001143296
        %v2588 = vmul.f32 %v2574, %v2587
        %v2589 = vadd.f32 %v2588, 0.014752088
        %v2590 = vmul.f32 %v2574, %v2589
        %v2591 = vadd.f32 %v2590, 0.112945676
        %v2592 = vmul.f32 %v2574, %v2591
        %v2593 = vadd.f32 %v2592, 0.4994258
        %v2594 = vmul.f32 %v2574, %v2593
        %v2595 = vadd.f32 %v2594, 1.0
        %v2596 = vrcp.pop %v2595
        %v2597 = vmul.f32 %v2595, %v2596
        %v2598 = vsub.f32 1.0, %v2597
        %v2599 = vmul.f32 %v2596, %v2598
        %v2600 = vadd.f32 %v2596, %v2599
        %vm2601 = vweird.f32 %v2595
        %vm2602 = vweird.f32 %v2596
        %vm2603 = vmor %vm2601, %vm2602
        %v2604 = vsel %vm2603, %v2596, %v2600
        %v2605 = vand.u32 2147483647, %v2595
        %vm2606 = vcmp.eq.f32.partialorder %v2605, 8.507059e+37
        %v2607 = vand.u32 %v2595, 2147483648
        %v2608 = vor.u32 1.1754944e-38, %v2607
        %v2609 = vsel %vm2606, %v2608, %v2604
        %v2610 = vmul.f32 %v2585, %v2609
        %v2611 = vmin.f32 %v2610, 1.0
        %v2612 = vmax.f32 %v2611, -1.0
        %v2613 = vmul.f32 %v2572, %v2572
        %v2614 = vmin.f32 16.0, %v2613
        %v2615 = vmul.f32 %v2614, 2.1237322e-06
        %v2616 = vadd.f32 %v2615, 0.00028619796
        %v2617 = vmul.f32 %v2614, %v2616
        %v2618 = vadd.f32 %v2617, 0.0036580483
        %v2619 = vmul.f32 %v2614, %v2618
        %v2620 = vadd.f32 %v2619, 0.05243302
        %v2621 = vmul.f32 %v2614, %v2620
        %v2622 = vadd.f32 %v2621, 0.18741608
        %v2623 = vmul.f32 %v2614, %v2622
        %v2624 = vadd.f32 %v2623, 1.1283791
        %v2625 = vmul.f32 %v2572, %v2624
        %v2626 = vmul.f32 %v2614, 3.8918573e-05
        %v2627 = vadd.f32 %v2626, 0.001143296
        %v2628 = vmul.f32 %v2614, %v2627
        %v2629 = vadd.f32 %v2628, 0.014752088
        %v2630 = vmul.f32 %v2614, %v2629
        %v2631 = vadd.f32 %v2630, 0.112945676
        %v2632 = vmul.f32 %v2614, %v2631
        %v2633 = vadd.f32 %v2632, 0.4994258
        %v2634 = vmul.f32 %v2614, %v2633
        %v2635 = vadd.f32 %v2634, 1.0
        %v2636 = vrcp.pop %v2635
        %v2637 = vmul.f32 %v2635, %v2636
        %v2638 = vsub.f32 1.0, %v2637
        %v2639 = vmul.f32 %v2636, %v2638
        %v2640 = vadd.f32 %v2636, %v2639
        %vm2641 = vweird.f32 %v2635
        %vm2642 = vweird.f32 %v2636
        %vm2643 = vmor %vm2641, %vm2642
        %v2644 = vsel %vm2643, %v2636, %v2640
        %v2645 = vand.u32 2147483647, %v2635
        %vm2646 = vcmp.eq.f32.partialorder %v2645, 8.507059e+37
        %v2647 = vand.u32 %v2635, 2147483648
        %v2648 = vor.u32 1.1754944e-38, %v2647
        %v2649 = vsel %vm2646, %v2648, %v2644
        %v2650 = vmul.f32 %v2625, %v2649
        %v2651 = vmin.f32 %v2650, 1.0
        %v2652 = vmax.f32 %v2651, -1.0
        %v2653 = vadd.f32 %v2612, 1.0
        %v2654 = vadd.f32 %v2652, 1.0
        %v2655 = vmul.f32 %v2569, %v2653
        %v2656 = vmul.f32 %v2570, %v2654
        %v2657 = vpack.c.bf16 %v2656, %v2655
        %v2659 = vperm.slane %v2535, 0
        %v2677 = vunpack.c.l.b16 %v2519
        %v2678 = vunpack.c.l.b16 %v2520
        %v2679 = vunpack.c.l.b16 %v2521
        %v2680 = vunpack.c.l.b16 %v2522
        %v2681 = vunpack.c.l.b16 %v2523
        %v2682 = vunpack.c.l.b16 %v2524
        %v2683 = vunpack.c.l.b16 %v2525
        %v2684 = vunpack.c.l.b16 %v2526
        %v2685 = vunpack.c.l.b16 %v2527
        %v2686 = vunpack.c.l.b16 %v2528
        %v2687 = vunpack.c.l.b16 %v2529
        %v2688 = vunpack.c.l.b16 %v2530
        %v2689 = vunpack.c.l.b16 %v2531
        %v2690 = vunpack.c.l.b16 %v2532
        %v2691 = vunpack.c.l.b16 %v2533
        %v2692 = vunpack.c.l.b16 %v2534
        %v2693 = vpack.c.b16 %v2678, %v2677
        %v2694 = vpack.c.b16 %v2680, %v2679
        %v2695 = vpack.c.b16 %v2682, %v2681
        %v2696 = vpack.c.b16 %v2684, %v2683
        %v2697 = vpack.c.b16 %v2686, %v2685
        %v2698 = vpack.c.b16 %v2688, %v2687
        %v2699 = vpack.c.b16 %v2690, %v2689
        %v2700 = vpack.c.b16 %v2692, %v2691
        %2709 = vmatpush.bf16.msra.mxu0 %v2700
        %2710 = vmatpush.bf16.msra.mxu0 %v2699
        %2711 = vmatpush.bf16.msra.mxu0 %v2698
        %2712 = vmatpush.bf16.msra.mxu0 %v2697
        %2713 = vmatpush.bf16.msra.mxu0 %v2696
        %2714 = vmatpush.bf16.msra.mxu0 %v2695
        %2715 = vmatpush.bf16.msra.mxu0 %v2694
        %2716 = vmatpush.bf16.msra.mxu0 %v2693
        %2717 = vmatmul.bf16.gmra.mxu0 %v2657
        %v2718 = vpop.f32.mrf.mxu0
        %v2719 = vadd.f32 %v2659, %v2718
        %v2720 = vpop.f32.mrf.mxu0
        %v2721 = vadd.f32 %v2659, %v2720
        %2722 = vdwg.mxu0
        %v2723 = vadd.f32 %v2719, %v2510
        %v2724 = vadd.f32 %v2721, %v2512
        %v2725 = vadd.f32 %v2303, %v2723
        %v2726 = vadd.f32 %v2304, %v2724
        %v2727 = vld [vmem:[%s1262] sm:$0x1]
        %v2728 = vld [vmem:[%s1265] sm:$0x1]
        %v2729 = vsel %vm1363, %v2725, 0.0
        %2730 = vadd.xlane.f32.xlu0 %v2729
        %v2731 = vpop.xlane.xlu0 %2730
        %v2732 = vsel %vm1363, %v2726, 0.0
        %2733 = vadd.xlane.f32.xlu0 %v2732
        %v2734 = vpop.xlane.xlu0 %2733
        %v2735 = vmul.f32 %v2731, %v2256
        %v2736 = vmul.f32 %v2734, %v2256
        %v2737 = vsub.f32 %v2725, %v2735
        %v2738 = vsub.f32 %v2726, %v2736
        %v2739 = vmul.f32 %v2737, %v2737
        %v2740 = vmul.f32 %v2738, %v2738
        %v2741 = vsel %vm1363, %v2739, 0.0
        %2742 = vadd.xlane.f32.xlu0 %v2741
        %v2743 = vpop.xlane.xlu0 %2742
        %v2744 = vsel %vm1363, %v2740, 0.0
        %2745 = vadd.xlane.f32.xlu0 %v2744
        %v2746 = vpop.xlane.xlu0 %2745
        %v2747 = vmul.f32 %v2743, %v2256
        %v2748 = vmul.f32 %v2746, %v2256
        %v2749 = vadd.f32 %v2747, 1e-12
        %v2750 = vadd.f32 %v2748, 1e-12
        %v2751 = vrsqrt.pop %v2749
        %v2752 = vmul.f32 %v2751, %v2749
        %v2753 = vmul.f32 %v2752, %v2751
        %v2754 = vmul.f32 0.5, %v2753
        %v2755 = vsub.f32 1.5, %v2754
        %v2756 = vmul.f32 %v2751, %v2755
        %vm2757 = vweird.f32 %v2749
        %vm2758 = vweird.f32 %v2751
        %vm2759 = vmor %vm2757, %vm2758
        %v2760 = vsel %vm2759, %v2751, %v2756
        %v2761 = vrsqrt.pop %v2750
        %v2762 = vmul.f32 %v2761, %v2750
        %v2763 = vmul.f32 %v2762, %v2761
        %v2764 = vmul.f32 0.5, %v2763
        %v2765 = vsub.f32 1.5, %v2764
        %v2766 = vmul.f32 %v2761, %v2765
        %vm2767 = vweird.f32 %v2750
        %vm2768 = vweird.f32 %v2761
        %vm2769 = vmor %vm2767, %vm2768
        %v2770 = vsel %vm2769, %v2761, %v2766
        %v2771 = vmul.f32 %v2737, %v2760
        %v2772 = vmul.f32 %v2738, %v2770
        %v2774 = vperm.slane %v2727, 0
        %v2776 = vmul.f32 %v2771, %v2774
        %v2777 = vmul.f32 %v2772, %v2774
        %v2779 = vperm.slane %v2728, 0
        %v2781 = vadd.f32 %v2776, %v2779
        %v2782 = vadd.f32 %v2777, %v2779
        %2783 = vst.msk [vmem:[#allocation2] sm:$0xff] %vm1363, %v2781
        %2784 = vst.msk [vmem:[#allocation2 + $0x8] sm:$0xff] %vm1363, %v2782
        %2785 = vst.msk [vmem:[#allocation3] sm:$0xff] %vm1363, %v2781
        %2786 = vst.msk [vmem:[#allocation3 + $0x8] sm:$0xff] %vm1363, %v2782
        // Predicated region
        $region137: #{tpu_custom_call.1} parent=131 // pred_check
          %p2787 = pneg %p788
        $region138: #{tpu_custom_call.1} parent=131 // pred_check_branch
          %2789 = sbr.rel (%p2787) target = $region140
        $region139: #{tpu_custom_call.1} parent=131 // pred_region
          %s2790 = smul.u32 2, %s44
          %2792 = vsyncadd [#allocation4], 0
          %s2793 = smul.addr %s2790, 8
          %s2794 = scalar_lea.hbm %s28, %s2793
          %s2795 = sshll.u32 [#allocation3], 4
          %s2796 = int_to_ptr.vmem [resolvable:$true] %s2795
          %s2797 = sshll.u32 %s2794, 4
          %s2798 = int_to_ptr.hbm [resolvable:$true] %s2797
          %2803 = dma.vmem_to_hbm [thread:$0]  %s2796, 256, %s2798, [#allocation4], 128, 128, 8
        $region140: #{tpu_custom_call.1} parent=131 // pred_fallthru
          _
        // Predicated region
        $region141: #{tpu_custom_call.1} parent=131 // pred_check
          %p2804 = pneg %p788
        $region142: #{tpu_custom_call.1} parent=131 // pred_check_branch
          %2806 = sbr.rel (%p2804) target = $region144
        $region143: #{tpu_custom_call.1} parent=131 // pred_region
          %2808 = dma.done [#allocation4], 256
        $region144: #{tpu_custom_call.1} parent=131 // pred_fallthru
          _
      $region132: #{tpu_custom_call.1} parent=5 // pred_fallthru
        _
      %p2809 = scmp.le.s32.totalorder 2, %s35
      // Predicated region
      $region145: #{tpu_custom_call.1} parent=5 // pred_check
        %p2810 = pneg %p2809
      $region146: #{tpu_custom_call.1} parent=5 // pred_check_branch
        %2812 = sbr.rel (%p2810) target = $region148
      $region147: #{tpu_custom_call.1} parent=5 // pred_region
        %s2813 = ssub.s32 %s35, 2
      $region148: #{tpu_custom_call.1} parent=5 // pred_fallthru
        _
    $region6: #{tpu_custom_call.1} parent=1 // loop_footer
      %s39 = sadd.s32 1, %s35
    $region7: #{tpu_custom_call.1} parent=1 // loop_footer_branch
      %34 = sbr.rel target = $region3
    $region8: #{tpu_custom_call.1} parent=1 // loop_exit
      _
    %2814 = vsyncpa [#allocation4], 1
    %s2815 = scalar_lea.sflag [#allocation4], 1
    %2816 = vsyncpa %s2815, 1

</llo_original>
